<compile_context>
chip_gen: v7x
topology: tpu7x:2x2x1
jax: 0.10.0
libtpu: 0.0.40
codegen_flags: <defaults>
</compile_context>

<pallas_src>
import functools

import jax
import jax.numpy as jnp
from jax.experimental import pallas as pl
from jax.experimental.pallas import tpu as pltpu


def mlp_table_encoder_kernel(x_ref, w1_ref, b1_ref, w2_ref, b2_ref,
                             w3_ref, b3_ref, o_ref, *, precision):
    # Weights arrive already in the compute dtype (bf16 or fp32); accumulate
    # in fp32 on the MXU, keep bias add / ReLU in fp32 (v5e VPU has no bf16
    # path), cast only at the final store.
    cdt = w1_ref.dtype

    # Layer 1: (TB, in) @ (in, 64) + (1, 64), ReLU
    h = jnp.dot(x_ref[...].astype(cdt), w1_ref[...],
                preferred_element_type=jnp.float32, precision=precision)
    h = jnp.maximum(h + b1_ref[...], 0.0)
    # Layer 2: (TB, 64) @ (64, 128) + (1, 128), ReLU
    h = jnp.dot(h.astype(cdt), w2_ref[...],
                preferred_element_type=jnp.float32, precision=precision)
    h = jnp.maximum(h + b2_ref[...], 0.0)
    # Layer 3: (TB, 128) @ (128, out) + (1, out), ReLU
    h = jnp.dot(h.astype(cdt), w3_ref[...],
                preferred_element_type=jnp.float32, precision=precision)
    h = jnp.maximum(h + b3_ref[...], 0.0)

    o_ref[...] = h.astype(o_ref.dtype)


@functools.partial(
    jax.jit,
    static_argnames=("block_b", "out_dtype", "compute_dtype", "precision"))
def mlp_table_encoder(x, params, *, block_b=1024,
                      out_dtype=jnp.float32, compute_dtype=jnp.bfloat16,
                      precision=None):
    """Fused 3-layer MLP encoder.

    x: (B, input_dim) float32.
    block_b: batch tile. Must be a multiple of 16 (bf16 sublane packing) and
             MXU-aligned; 1024 amortizes the per-grid-step overhead while
             keeping per-step VMEM a few MiB (fits v7x's smaller VMEM).
    compute_dtype: bf16 by default (fp32 accumulation on the MXU). For a
             bit-faithful fp32 path, pass compute_dtype=jnp.float32 and
             precision=jax.lax.Precision.HIGHEST.
    out_dtype: set to jnp.bfloat16 to halve the dominant output writeback.
    """
    w1, b1, w2, b2, w3, b3 = params
    B, in_dim = x.shape
    out_dim = w3.shape[1]

    assert block_b % 16 == 0, "block_b must be a multiple of 16"

    # Cast weights once in the wrapper (tiny, VMEM-resident); biases stay fp32.
    w1c = w1.astype(compute_dtype)
    w2c = w2.astype(compute_dtype)
    w3c = w3.astype(compute_dtype)

    # Tile selection. No padding / slicing of x or the output: the last
    # (possibly ragged) tile uses Pallas' bounded partial-block reads/writes.
    if B <= block_b:
        tile_b = B                      # single whole-array tile (always legal)
        num_tiles = 1
    else:
        tile_b = block_b
        num_tiles = pl.cdiv(B, tile_b)
        # v7x shards the "parallel" grid axis across its 2 TensorCores; an odd
        # tile count (>1) leaves one core idle for the tail tile. Halving the
        # tile once fixes the imbalance at negligible extra per-step overhead
        # (no effect on single-TC v5e/v6e correctness or traffic).
        if num_tiles % 2 == 1 and tile_b % 32 == 0:
            tile_b //= 2
            num_tiles = pl.cdiv(B, tile_b)

    out_itemsize = jnp.dtype(out_dtype).itemsize
    w_itemsize = jnp.dtype(compute_dtype).itemsize
    cost = pl.CostEstimate(
        flops=2 * B * (in_dim * 64 + 64 * 128 + 128 * out_dim),
        transcendentals=0,
        bytes_accessed=(
            B * in_dim * x.dtype.itemsize                  # x read
            + B * out_dim * out_itemsize                   # output write (dominant)
            + (in_dim * 64 + 64 * 128 + 128 * out_dim) * w_itemsize
            + (64 + 128 + out_dim) * 4                     # biases
        ),
    )

    kernel = functools.partial(mlp_table_encoder_kernel, precision=precision)

    return pl.pallas_call(
        kernel,
        out_shape=jax.ShapeDtypeStruct((B, out_dim), out_dtype),
        grid_spec=pltpu.PrefetchScalarGridSpec(
            num_scalar_prefetch=0,
            grid=(num_tiles,),
            in_specs=[
                pl.BlockSpec((tile_b, in_dim), lambda i: (i, 0)),  # x tile
                pl.BlockSpec(w1c.shape, lambda i: (0, 0)),         # w1 (resident)
                pl.BlockSpec(b1.shape, lambda i: (0, 0)),          # b1
                pl.BlockSpec(w2c.shape, lambda i: (0, 0)),         # w2
                pl.BlockSpec(b2.shape, lambda i: (0, 0)),          # b2
                pl.BlockSpec(w3c.shape, lambda i: (0, 0)),         # w3
                pl.BlockSpec(b3.shape, lambda i: (0, 0)),          # b3
            ],
            out_specs=pl.BlockSpec((tile_b, out_dim), lambda i: (i, 0)),
        ),
        compiler_params=pltpu.CompilerParams(
            dimension_semantics=("parallel",)),
        cost_estimate=cost,
    )(x, w1c, b1, w2c, b2, w3c, b3)


def init_params(key, input_dim=9, output_dim=256):
    """Deterministic synthetic parameters; shapes match the PyTorch module.

    Weights stored as (in_features, out_features) so y = x @ W + b.
    """
    dims = [(input_dim, 64), (64, 128), (128, output_dim)]
    params = []
    for (fan_in, fan_out) in dims:
        kw, kb, key = jax.random.split(key, 3)
        bound = 1.0 / (fan_in ** 0.5)  # PyTorch Linear default init range
        w = jax.random.uniform(kw, (fan_in, fan_out), jnp.float32, -bound, bound)
        b = jax.random.uniform(kb, (1, fan_out), jnp.float32, -bound, bound)
        params += [w, b]
    return tuple(params)


def reference_mlp(x, params):
    w1, b1, w2, b2, w3, b3 = params
    h = jnp.maximum(x @ w1 + b1, 0.0)
    h = jnp.maximum(h @ w2 + b2, 0.0)
    return jnp.maximum(h @ w3 + b3, 0.0)


if __name__ == "__main__":
    key = jax.random.PRNGKey(0)
    kx, kp = jax.random.split(key)

    # Non-multiple batch so the ragged-last-tile path (bounded partial-block
    # read/write, no pad/slice round-trip) and a multi-step grid are exercised:
    # pl.cdiv(1030, 1024) = 2 tiles, second tile has only 6 valid rows.
    B, INPUT_DIM, OUTPUT_DIM = 1030, 9, 256
    x = jax.random.normal(kx, (B, INPUT_DIM), dtype=jnp.float32)
    params = init_params(kp, INPUT_DIM, OUTPUT_DIM)

    ref = reference_mlp(x, params)

    # 1) Default roofline path: bf16 MXU operands, fp32 accumulation, fp32 out.
    out_def = mlp_table_encoder(x, params)
    out_def = jax.block_until_ready(out_def)
    assert out_def.shape == (B, OUTPUT_DIM)
    assert jnp.allclose(out_def, ref, atol=5e-2, rtol=5e-2)

    # 2) Bandwidth-optimized path: bf16 output halves the dominant writeback.
    out_bf16 = mlp_table_encoder(x, params, out_dtype=jnp.bfloat16)
    out_bf16 = jax.block_until_ready(out_bf16)
    assert out_bf16.dtype == jnp.bfloat16
    assert jnp.allclose(out_bf16.astype(jnp.float32), ref, atol=5e-2, rtol=5e-2)

    # 3) Exact-semantics path (fp32 operands, HIGHEST MXU precision).
    out_fp32 = mlp_table_encoder(x, params,
                                 compute_dtype=jnp.float32,
                                 precision=jax.lax.Precision.HIGHEST)
    out_fp32 = jax.block_until_ready(out_fp32)
    assert jnp.allclose(out_fp32, ref, atol=1e-5, rtol=1e-5)

    print("KERNEL_OK")
</pallas_src>

<mosaic_0001>
module attributes {stable_mosaic.version = 11 : i64} {
  func.func @mlp_table_encoder_kernel(%arg0: i32, %arg1: memref<1024x9xf32, #tpu.memory_space<vmem>>, %arg2: memref<9x64xbf16, #tpu.memory_space<vmem>>, %arg3: memref<1x64xf32, #tpu.memory_space<vmem>>, %arg4: memref<64x128xbf16, #tpu.memory_space<vmem>>, %arg5: memref<1x128xf32, #tpu.memory_space<vmem>>, %arg6: memref<128x256xbf16, #tpu.memory_space<vmem>>, %arg7: memref<1x256xf32, #tpu.memory_space<vmem>>, %arg8: memref<1024x256xf32, #tpu.memory_space<vmem>>) attributes {dimension_semantics = [#tpu.dimension_semantics<parallel>], iteration_bounds = array<i64: 2>, scalar_prefetch = 0 : i64, scratch_operands = 0 : i64, tpu.core_type = #tpu.core_type<tc>, window_params = [{transform_indices = @transform_0, window_bounds = array<i64: 1024, 9>}, {pipeline_mode = #tpu.pipeline_mode<synchronous>, transform_indices = @transform_1, window_bounds = array<i64: 9, 64>}, {pipeline_mode = #tpu.pipeline_mode<synchronous>, transform_indices = @transform_2, window_bounds = array<i64: 1, 64>}, {pipeline_mode = #tpu.pipeline_mode<synchronous>, transform_indices = @transform_3, window_bounds = array<i64: 64, 128>}, {pipeline_mode = #tpu.pipeline_mode<synchronous>, transform_indices = @transform_4, window_bounds = array<i64: 1, 128>}, {pipeline_mode = #tpu.pipeline_mode<synchronous>, transform_indices = @transform_5, window_bounds = array<i64: 128, 256>}, {pipeline_mode = #tpu.pipeline_mode<synchronous>, transform_indices = @transform_6, window_bounds = array<i64: 1, 256>}, {transform_indices = @transform_7, window_bounds = array<i64: 1024, 256>}]} {
    %c0 = arith.constant 0 : index
    %c0_0 = arith.constant 0 : index
    %0 = vector.load %arg1[%c0, %c0_0] : memref<1024x9xf32, #tpu.memory_space<vmem>>, vector<1024x9xf32>
    %1 = arith.truncf %0 : vector<1024x9xf32> to vector<1024x9xbf16>
    %c0_1 = arith.constant 0 : index
    %c0_2 = arith.constant 0 : index
    %2 = vector.load %arg2[%c0_1, %c0_2] : memref<9x64xbf16, #tpu.memory_space<vmem>>, vector<9x64xbf16>
    %cst = arith.constant dense<0.000000e+00> : vector<1024x64xf32>
    %3 = tpu.matmul %1, %2, %cst {dimension_numbers = #tpu.dot_dimension_numbers<[1], [0], [0], [1], [0, 0, 1, 1], [], []>} : vector<1024x9xbf16>, vector<9x64xbf16>, vector<1024x64xf32> -> vector<1024x64xf32>
    %c0_3 = arith.constant 0 : index
    %c0_4 = arith.constant 0 : index
    %4 = vector.load %arg3[%c0_3, %c0_4] : memref<1x64xf32, #tpu.memory_space<vmem>>, vector<1x64xf32>
    %5 = vector.broadcast %4 : vector<1x64xf32> to vector<1024x64xf32>
    %6 = arith.addf %3, %5 : vector<1024x64xf32>
    %cst_5 = arith.constant 0.000000e+00 : f32
    %7 = vector.broadcast %cst_5 : f32 to vector<1024x64xf32>
    %8 = arith.maximumf %6, %7 : vector<1024x64xf32>
    %9 = arith.truncf %8 : vector<1024x64xf32> to vector<1024x64xbf16>
    %c0_6 = arith.constant 0 : index
    %c0_7 = arith.constant 0 : index
    %10 = vector.load %arg4[%c0_6, %c0_7] : memref<64x128xbf16, #tpu.memory_space<vmem>>, vector<64x128xbf16>
    %cst_8 = arith.constant dense<0.000000e+00> : vector<1024x128xf32>
    %11 = tpu.matmul %9, %10, %cst_8 {dimension_numbers = #tpu.dot_dimension_numbers<[1], [0], [0], [1], [0, 0, 1, 1], [], []>} : vector<1024x64xbf16>, vector<64x128xbf16>, vector<1024x128xf32> -> vector<1024x128xf32>
    %c0_9 = arith.constant 0 : index
    %c0_10 = arith.constant 0 : index
    %12 = vector.load %arg5[%c0_9, %c0_10] : memref<1x128xf32, #tpu.memory_space<vmem>>, vector<1x128xf32>
    %13 = vector.broadcast %12 : vector<1x128xf32> to vector<1024x128xf32>
    %14 = arith.addf %11, %13 : vector<1024x128xf32>
    %cst_11 = arith.constant 0.000000e+00 : f32
    %15 = vector.broadcast %cst_11 : f32 to vector<1024x128xf32>
    %16 = arith.maximumf %14, %15 : vector<1024x128xf32>
    %17 = arith.truncf %16 : vector<1024x128xf32> to vector<1024x128xbf16>
    %c0_12 = arith.constant 0 : index
    %c0_13 = arith.constant 0 : index
    %18 = vector.load %arg6[%c0_12, %c0_13] : memref<128x256xbf16, #tpu.memory_space<vmem>>, vector<128x256xbf16>
    %cst_14 = arith.constant dense<0.000000e+00> : vector<1024x256xf32>
    %19 = tpu.matmul %17, %18, %cst_14 {dimension_numbers = #tpu.dot_dimension_numbers<[1], [0], [0], [1], [0, 0, 1, 1], [], []>} : vector<1024x128xbf16>, vector<128x256xbf16>, vector<1024x256xf32> -> vector<1024x256xf32>
    %c0_15 = arith.constant 0 : index
    %c0_16 = arith.constant 0 : index
    %20 = vector.load %arg7[%c0_15, %c0_16] : memref<1x256xf32, #tpu.memory_space<vmem>>, vector<1x256xf32>
    %21 = vector.broadcast %20 : vector<1x256xf32> to vector<1024x256xf32>
    %22 = arith.addf %19, %21 : vector<1024x256xf32>
    %cst_17 = arith.constant 0.000000e+00 : f32
    %23 = vector.broadcast %cst_17 : f32 to vector<1024x256xf32>
    %24 = arith.maximumf %22, %23 : vector<1024x256xf32>
    %c0_18 = arith.constant 0 : index
    %c0_19 = arith.constant 0 : index
    %25 = vector.load %arg8[%c0_18, %c0_19] : memref<1024x256xf32, #tpu.memory_space<vmem>>, vector<1024x256xf32>
    tpu.vector_store %arg8[%c0_18, %c0_19], %24 {strides = array<i32>} : memref<1024x256xf32, #tpu.memory_space<vmem>>, vector<1024x256xf32>,
    return
  }
  func.func @transform_0(%arg0: i32) -> (i32, i32) {
    %c0_i32 = arith.constant 0 : i32
    %c0_i32_0 = arith.constant 0 : i32
    return %arg0, %c0_i32 : i32, i32
  }
  func.func @transform_1(%arg0: i32) -> (i32, i32) {
    %c0_i32 = arith.constant 0 : i32
    %c0_i32_0 = arith.constant 0 : i32
    %c0_i32_1 = arith.constant 0 : i32
    return %c0_i32, %c0_i32_0 : i32, i32
  }
  func.func @transform_2(%arg0: i32) -> (i32, i32) {
    %c0_i32 = arith.constant 0 : i32
    %c0_i32_0 = arith.constant 0 : i32
    %c0_i32_1 = arith.constant 0 : i32
    return %c0_i32, %c0_i32_0 : i32, i32
  }
  func.func @transform_3(%arg0: i32) -> (i32, i32) {
    %c0_i32 = arith.constant 0 : i32
    %c0_i32_0 = arith.constant 0 : i32
    %c0_i32_1 = arith.constant 0 : i32
    return %c0_i32, %c0_i32_0 : i32, i32
  }
  func.func @transform_4(%arg0: i32) -> (i32, i32) {
    %c0_i32 = arith.constant 0 : i32
    %c0_i32_0 = arith.constant 0 : i32
    %c0_i32_1 = arith.constant 0 : i32
    return %c0_i32, %c0_i32_0 : i32, i32
  }
  func.func @transform_5(%arg0: i32) -> (i32, i32) {
    %c0_i32 = arith.constant 0 : i32
    %c0_i32_0 = arith.constant 0 : i32
    %c0_i32_1 = arith.constant 0 : i32
    return %c0_i32, %c0_i32_0 : i32, i32
  }
  func.func @transform_6(%arg0: i32) -> (i32, i32) {
    %c0_i32 = arith.constant 0 : i32
    %c0_i32_0 = arith.constant 0 : i32
    %c0_i32_1 = arith.constant 0 : i32
    return %c0_i32, %c0_i32_0 : i32, i32
  }
  func.func @transform_7(%arg0: i32) -> (i32, i32) {
    %c0_i32 = arith.constant 0 : i32
    %c0_i32_0 = arith.constant 0 : i32
    return %arg0, %c0_i32 : i32, i32
  }
}

</mosaic_0001>

<llo_original>
// kernel: mlp_table_encoder.1
$region0: #{mlp_table_encoder.1}
  #allocation0 [shape = 'u32[]', space=smem, size = 0x4, offset = 0x4, fixed_abs, tag = 'smem constant byte address 0x4 - core index']
  #allocation1 [shape = 'u32[144,128]{1,0:T(1,128)}', space=vmem, size = 0x12000, scoped, tag = 'internal scratch']
  %s0 = inlined_call_operand.vmem [shape: f32[1030,9], index: 0, kind: input, shape index: {}]
  %s1 = inlined_call_operand.vmem [shape: bf16[9,64], index: 1, kind: input, shape index: {}]
  %s2 = inlined_call_operand.hbm [shape: f32[1,64], index: 2, kind: input, shape index: {}]
  %s3 = inlined_call_operand.vmem [shape: bf16[64,128], index: 3, kind: input, shape index: {}]
  %s4 = inlined_call_operand.hbm [shape: f32[1,128], index: 4, kind: input, shape index: {}]
  %s5 = inlined_call_operand.vmem [shape: bf16[128,256], index: 5, kind: input, shape index: {}]
  %s6 = inlined_call_operand.hbm [shape: f32[1,256], index: 6, kind: input, shape index: {}]
  %s7 = inlined_call_operand.hbm [shape: f32[1030,256], index: 7, kind: output, shape index: {}]
  %s8 = sld [smem:[#allocation0]]
  $region73: #{mlp_table_encoder.1} parent=0
    _
  %s10 = ssub.s32 1, %s8
  %s11 = scalar_select 0, %s10, %s8
  $region1: #{mlp_table_encoder.1} parent=0
    #allocation2 [shape = 'u8[512]{0}', space=vmem, size = 0x400, scoped, tag = 'input window, operand 2, single buffered']
    #allocation3 [shape = 's32[2]{0}', space=sflag, size = 0x8, scoped, tag = 'scoped memory for mlp_table_encoder.1']
    #allocation4 [shape = 's32[2]{0}', space=sflag, size = 0x8, scoped, tag = 'scoped memory for mlp_table_encoder.1']
    #allocation5 [shape = 'u8[512]{0}', space=vmem, size = 0x400, scoped, tag = 'input window, operand 4, single buffered']
    #allocation6 [shape = 's32[1]{0}', space=sflag, size = 0x4, scoped, tag = 'scoped memory for mlp_table_encoder.1']
    #allocation7 [shape = 'u8[1024]{0}', space=vmem, size = 0x400, scoped, tag = 'input window, operand 6, single buffered']
    #allocation8 [shape = 'u8[2097152]{0}', space=vmem, size = 0x200000, scoped, tag = 'output window, operand 0']
    %12 = vsyncpa [#allocation3], 0
    %13 = vsyncpa [#allocation6], 0
    %14 = vsyncpa [#allocation4], 0
    %s15 = scalar_lea.sflag [#allocation4], 1
    %16 = vsyncpa %s15, 0
    loop: start=0, step=1, limit=4
    $region2: #{mlp_table_encoder.1} parent=1 // loop_pre_header
      _
    $region3: #{mlp_table_encoder.1} parent=1 // loop_header
      %s18 = sphi 0, %s22
      %p19 = scmp.ge.s32.totalorder %s18, 4
      %s28 = sphi 0, %s30
      %s31 = sphi 0, %s28
      %s32 = sphi 0, %s31
      %s48 = sphi 0, %s32
      %s52 = sphi 0, %s52
      %s54 = sphi 0, %s52
      %s55 = sphi 0, %s54
      %s69 = sphi 0, %s55
      %s73 = sphi 0, %s73
      %s75 = sphi 0, %s73
      %s76 = sphi 0, %s75
      %s90 = sphi 0, %s76
      %s94 = sphi 0, %s94
      %s96 = sphi 0, %s94
      %s97 = sphi 0, %s96
      %s111 = sphi 0, %s97
      %s115 = sphi 0, %s115
      %s117 = sphi 0, %s115
      %s118 = sphi 0, %s117
      %s132 = sphi 0, %s118
      %s136 = sphi 0, %s136
      %s138 = sphi 0, %s136
      %s139 = sphi 0, %s138
      %s153 = sphi 0, %s139
      %s157 = sphi 0, %s157
      %s159 = sphi 0, %s157
      %s160 = sphi 0, %s159
      %s174 = sphi 0, %s160
      %s180 = sphi 0, %s182
      %s183 = sphi 0, %s180
      %s184 = sphi 0, %s183
      %s200 = sphi 0, %s184
    $region4: #{mlp_table_encoder.1} parent=1 // loop_header_branch
      %21 = sbr.rel (%p19) target = $region8
    $region5: #{mlp_table_encoder.1} parent=1 // loop_body
      %s23 = ssub.s32 %s18, 1
      %s24 = ssub.s32 %s18, 2
      %s25 = sadd.s32 %s18, 1
      %s26 = ssub.s32 %s18, %s25
      %p27 = scmp.eq.s32.totalorder %s26, 0
      %s29 = sadd.s32 %s28, 1
      %s30 = scalar_select %p27, %s28, %s29
      %p33 = pneg %p27
      %p34 = scmp.eq.s32.totalorder %s18, 1
      %p35 = por %p33, %p34
      %p36 = scmp.ne.s32.totalorder %s28, %s31
      %p37 = scmp.eq.s32.totalorder %s18, 0
      %p38 = por %p36, %p37
      %p39 = scmp.ne.s32.totalorder %s28, %s31
      %p40 = scmp.eq.s32.totalorder %s23, 1
      %p41 = por %p39, %p40
      %p42 = scmp.ne.s32.totalorder %s31, %s32
      %p43 = scmp.eq.s32.totalorder %s23, 0
      %p44 = por %p42, %p43
      %p45 = scmp.ne.s32.totalorder %s31, %s32
      %p46 = scmp.eq.s32.totalorder %s24, 1
      %p47 = por %p45, %p46
      %p49 = scmp.ne.s32.totalorder %s32, %s48
      %p50 = scmp.eq.s32.totalorder %s24, 0
      %p51 = por %p49, %p50
      %s53 = sadd.s32 %s52, 1
      %p56 = scmp.eq.s32.totalorder %s18, 1
      %p57 = scmp.ne.s32.totalorder %s52, %s54
      %p58 = scmp.eq.s32.totalorder %s18, 0
      %p59 = por %p57, %p58
      %p60 = scmp.ne.s32.totalorder %s52, %s54
      %p61 = scmp.eq.s32.totalorder %s23, 1
      %p62 = por %p60, %p61
      %p63 = scmp.ne.s32.totalorder %s54, %s55
      %p64 = scmp.eq.s32.totalorder %s23, 0
      %p65 = por %p63, %p64
      %p66 = scmp.ne.s32.totalorder %s54, %s55
      %p67 = scmp.eq.s32.totalorder %s24, 1
      %p68 = por %p66, %p67
      %p70 = scmp.ne.s32.totalorder %s55, %s69
      %p71 = scmp.eq.s32.totalorder %s24, 0
      %p72 = por %p70, %p71
      %s74 = sadd.s32 %s73, 1
      %p77 = scmp.eq.s32.totalorder %s18, 1
      %p78 = scmp.ne.s32.totalorder %s73, %s75
      %p79 = scmp.eq.s32.totalorder %s18, 0
      %p80 = por %p78, %p79
      %p81 = scmp.ne.s32.totalorder %s73, %s75
      %p82 = scmp.eq.s32.totalorder %s23, 1
      %p83 = por %p81, %p82
      %p84 = scmp.ne.s32.totalorder %s75, %s76
      %p85 = scmp.eq.s32.totalorder %s23, 0
      %p86 = por %p84, %p85
      %p87 = scmp.ne.s32.totalorder %s75, %s76
      %p88 = scmp.eq.s32.totalorder %s24, 1
      %p89 = por %p87, %p88
      %p91 = scmp.ne.s32.totalorder %s76, %s90
      %p92 = scmp.eq.s32.totalorder %s24, 0
      %p93 = por %p91, %p92
      %s95 = sadd.s32 %s94, 1
      %p98 = scmp.eq.s32.totalorder %s18, 1
      %p99 = scmp.ne.s32.totalorder %s94, %s96
      %p100 = scmp.eq.s32.totalorder %s18, 0
      %p101 = por %p99, %p100
      %p102 = scmp.ne.s32.totalorder %s94, %s96
      %p103 = scmp.eq.s32.totalorder %s23, 1
      %p104 = por %p102, %p103
      %p105 = scmp.ne.s32.totalorder %s96, %s97
      %p106 = scmp.eq.s32.totalorder %s23, 0
      %p107 = por %p105, %p106
      %p108 = scmp.ne.s32.totalorder %s96, %s97
      %p109 = scmp.eq.s32.totalorder %s24, 1
      %p110 = por %p108, %p109
      %p112 = scmp.ne.s32.totalorder %s97, %s111
      %p113 = scmp.eq.s32.totalorder %s24, 0
      %p114 = por %p112, %p113
      %s116 = sadd.s32 %s115, 1
      %p119 = scmp.eq.s32.totalorder %s18, 1
      %p120 = scmp.ne.s32.totalorder %s115, %s117
      %p121 = scmp.eq.s32.totalorder %s18, 0
      %p122 = por %p120, %p121
      %p123 = scmp.ne.s32.totalorder %s115, %s117
      %p124 = scmp.eq.s32.totalorder %s23, 1
      %p125 = por %p123, %p124
      %p126 = scmp.ne.s32.totalorder %s117, %s118
      %p127 = scmp.eq.s32.totalorder %s23, 0
      %p128 = por %p126, %p127
      %p129 = scmp.ne.s32.totalorder %s117, %s118
      %p130 = scmp.eq.s32.totalorder %s24, 1
      %p131 = por %p129, %p130
      %p133 = scmp.ne.s32.totalorder %s118, %s132
      %p134 = scmp.eq.s32.totalorder %s24, 0
      %p135 = por %p133, %p134
      %s137 = sadd.s32 %s136, 1
      %p140 = scmp.eq.s32.totalorder %s18, 1
      %p141 = scmp.ne.s32.totalorder %s136, %s138
      %p142 = scmp.eq.s32.totalorder %s18, 0
      %p143 = por %p141, %p142
      %p144 = scmp.ne.s32.totalorder %s136, %s138
      %p145 = scmp.eq.s32.totalorder %s23, 1
      %p146 = por %p144, %p145
      %p147 = scmp.ne.s32.totalorder %s138, %s139
      %p148 = scmp.eq.s32.totalorder %s23, 0
      %p149 = por %p147, %p148
      %p150 = scmp.ne.s32.totalorder %s138, %s139
      %p151 = scmp.eq.s32.totalorder %s24, 1
      %p152 = por %p150, %p151
      %p154 = scmp.ne.s32.totalorder %s139, %s153
      %p155 = scmp.eq.s32.totalorder %s24, 0
      %p156 = por %p154, %p155
      %s158 = sadd.s32 %s157, 1
      %p161 = scmp.eq.s32.totalorder %s18, 1
      %p162 = scmp.ne.s32.totalorder %s157, %s159
      %p163 = scmp.eq.s32.totalorder %s18, 0
      %p164 = por %p162, %p163
      %p165 = scmp.ne.s32.totalorder %s157, %s159
      %p166 = scmp.eq.s32.totalorder %s23, 1
      %p167 = por %p165, %p166
      %p168 = scmp.ne.s32.totalorder %s159, %s160
      %p169 = scmp.eq.s32.totalorder %s23, 0
      %p170 = por %p168, %p169
      %p171 = scmp.ne.s32.totalorder %s159, %s160
      %p172 = scmp.eq.s32.totalorder %s24, 1
      %p173 = por %p171, %p172
      %p175 = scmp.ne.s32.totalorder %s160, %s174
      %p176 = scmp.eq.s32.totalorder %s24, 0
      %p177 = por %p175, %p176
      %s178 = ssub.s32 %s18, %s25
      %p179 = scmp.eq.s32.totalorder %s178, 0
      %s181 = sadd.s32 %s180, 1
      %s182 = scalar_select %p179, %s180, %s181
      %p185 = pneg %p179
      %p186 = scmp.eq.s32.totalorder %s18, 1
      %p187 = por %p185, %p186
      %p188 = scmp.ne.s32.totalorder %s180, %s183
      %p189 = scmp.eq.s32.totalorder %s18, 0
      %p190 = por %p188, %p189
      %p191 = scmp.ne.s32.totalorder %s180, %s183
      %p192 = scmp.eq.s32.totalorder %s23, 1
      %p193 = por %p191, %p192
      %p194 = scmp.ne.s32.totalorder %s183, %s184
      %p195 = scmp.eq.s32.totalorder %s23, 0
      %p196 = por %p194, %p195
      %p197 = scmp.ne.s32.totalorder %s183, %s184
      %p198 = scmp.eq.s32.totalorder %s24, 1
      %p199 = por %p197, %p198
      %p201 = scmp.ne.s32.totalorder %s184, %s200
      %p202 = scmp.eq.s32.totalorder %s24, 0
      %p203 = por %p201, %p202
      %p204 = scmp.le.s32.totalorder 1, %s18
      %p205 = scmp.lt.s32.totalorder %s18, 3
      %p206 = pnand %p204, %p205
      %p207 = pneg %p206
      // Predicated region
      $region9: #{mlp_table_encoder.1} parent=5 // pred_check
        _
      $region10: #{mlp_table_encoder.1} parent=5 // pred_check_branch
        %209 = sbr.rel (%p206) target = $region12
      $region11: #{mlp_table_encoder.1} parent=5 // pred_region
        %s210 = ssub.s32 %s18, 1
        // Predicated region
        $region13: #{mlp_table_encoder.1} parent=11 // pred_check
          %p211 = pneg %p65
        $region14: #{mlp_table_encoder.1} parent=11 // pred_check_branch
          %213 = sbr.rel (%p211) target = $region16
        $region15: #{mlp_table_encoder.1} parent=11 // pred_region
          _
        $region16: #{mlp_table_encoder.1} parent=11 // pred_fallthru
          _
        // Predicated region
        $region17: #{mlp_table_encoder.1} parent=11 // pred_check
          %p214 = pneg %p86
        $region18: #{mlp_table_encoder.1} parent=11 // pred_check_branch
          %216 = sbr.rel (%p214) target = $region20
        $region19: #{mlp_table_encoder.1} parent=11 // pred_region
          %s218 = ssub.s32 16, 16
          %219 = vsyncadd [#allocation3], %s218
          %s221 = sshll.u32 [#allocation2], 4
          %s222 = int_to_ptr.vmem [resolvable:$true] %s221
          %224 = dma.hbm_to_vmem [thread:$0]  %s2, 16, %s222, [#allocation3]
        $region20: #{mlp_table_encoder.1} parent=11 // pred_fallthru
          _
        // Predicated region
        $region21: #{mlp_table_encoder.1} parent=11 // pred_check
          %p225 = pneg %p107
        $region22: #{mlp_table_encoder.1} parent=11 // pred_check_branch
          %227 = sbr.rel (%p225) target = $region24
        $region23: #{mlp_table_encoder.1} parent=11 // pred_region
          _
        $region24: #{mlp_table_encoder.1} parent=11 // pred_fallthru
          _
        // Predicated region
        $region25: #{mlp_table_encoder.1} parent=11 // pred_check
          %p228 = pneg %p128
        $region26: #{mlp_table_encoder.1} parent=11 // pred_check_branch
          %230 = sbr.rel (%p228) target = $region28
        $region27: #{mlp_table_encoder.1} parent=11 // pred_region
          %s232 = ssub.s32 16, 16
          %233 = vsyncadd [#allocation6], %s232
          %s235 = sshll.u32 [#allocation5], 4
          %s236 = int_to_ptr.vmem [resolvable:$true] %s235
          %238 = dma.hbm_to_vmem [thread:$0]  %s4, 16, %s236, [#allocation6]
        $region28: #{mlp_table_encoder.1} parent=11 // pred_fallthru
          _
        // Predicated region
        $region29: #{mlp_table_encoder.1} parent=11 // pred_check
          %p239 = pneg %p149
        $region30: #{mlp_table_encoder.1} parent=11 // pred_check_branch
          %241 = sbr.rel (%p239) target = $region32
        $region31: #{mlp_table_encoder.1} parent=11 // pred_region
          _
        $region32: #{mlp_table_encoder.1} parent=11 // pred_fallthru
          _
        // Predicated region
        $region33: #{mlp_table_encoder.1} parent=11 // pred_check
          %p242 = pneg %p170
        $region34: #{mlp_table_encoder.1} parent=11 // pred_check_branch
          %244 = sbr.rel (%p242) target = $region36
        $region35: #{mlp_table_encoder.1} parent=11 // pred_region
          %s246 = ssub.s32 32, 32
          %247 = vsyncadd [#allocation6], %s246
          %s249 = sshll.u32 [#allocation7], 4
          %s250 = int_to_ptr.vmem [resolvable:$true] %s249
          %252 = dma.hbm_to_vmem [thread:$0]  %s6, 32, %s250, [#allocation6]
        $region36: #{mlp_table_encoder.1} parent=11 // pred_fallthru
          _
      $region12: #{mlp_table_encoder.1} parent=5 // pred_fallthru
        _
      %p253 = scmp.lt.s32.totalorder %s18, 2
      // Predicated region
      $region37: #{mlp_table_encoder.1} parent=5 // pred_check
        %p254 = pneg %p253
      $region38: #{mlp_table_encoder.1} parent=5 // pred_check_branch
        %256 = sbr.rel (%p254) target = $region40
      $region39: #{mlp_table_encoder.1} parent=5 // pred_region
        // Predicated region
        $region41: #{mlp_table_encoder.1} parent=39 // pred_check
          %p257 = pneg %p38
        $region42: #{mlp_table_encoder.1} parent=39 // pred_check_branch
          %259 = sbr.rel (%p257) target = $region44
        $region43: #{mlp_table_encoder.1} parent=39 // pred_region
          %s260 = smul.u32 128, %s18
          %s261 = ssub.s32 129, %s260
          %p262 = scmp.lt.s32.totalorder %s261, 128
          %s263 = scalar_select %p262, %s261, 128
          %s264 = smul.u32 128, %s263
          %p265 = scmp.lt.s32.totalorder %s260, 128
          %s266 = scalar_select %p265, %s260, 128
          %s267 = smul.addr %s266, 8
          %s268 = scalar_lea.vmem %s0, %s267
          %s269 = smul.u32 128, %s18
          %s270 = ssub.s32 129, %s269
          %p271 = scmp.lt.s32.totalorder %s270, 128
          %s272 = scalar_select %p271, %s270, 128
          %s273 = smul.u32 128, %s272
        $region44: #{mlp_table_encoder.1} parent=39 // pred_fallthru
          _
      $region40: #{mlp_table_encoder.1} parent=5 // pred_fallthru
        _
      %p274 = scmp.le.s32.totalorder 1, %s18
      %p275 = scmp.lt.s32.totalorder %s18, 3
      %p276 = pnand %p274, %p275
      %p277 = pneg %p276
      // Predicated region
      $region45: #{mlp_table_encoder.1} parent=5 // pred_check
        _
      $region46: #{mlp_table_encoder.1} parent=5 // pred_check_branch
        %279 = sbr.rel (%p276) target = $region48
      $region47: #{mlp_table_encoder.1} parent=5 // pred_region
        %s280 = ssub.s32 %s18, 1
        // Predicated region
        $region49: #{mlp_table_encoder.1} parent=47 // pred_check
          %p281 = pneg %p86
        $region50: #{mlp_table_encoder.1} parent=47 // pred_check_branch
          %283 = sbr.rel (%p281) target = $region52
        $region51: #{mlp_table_encoder.1} parent=47 // pred_region
          %284 = dma.done [#allocation3], 16
        $region52: #{mlp_table_encoder.1} parent=47 // pred_fallthru
          _
        // Predicated region
        $region53: #{mlp_table_encoder.1} parent=47 // pred_check
          %p285 = pneg %p128
        $region54: #{mlp_table_encoder.1} parent=47 // pred_check_branch
          %287 = sbr.rel (%p285) target = $region56
        $region55: #{mlp_table_encoder.1} parent=47 // pred_region
          %288 = dma.done [#allocation6], 16
        $region56: #{mlp_table_encoder.1} parent=47 // pred_fallthru
          _
        // Predicated region
        $region57: #{mlp_table_encoder.1} parent=47 // pred_check
          %p289 = pneg %p170
        $region58: #{mlp_table_encoder.1} parent=47 // pred_check_branch
          %291 = sbr.rel (%p289) target = $region60
        $region59: #{mlp_table_encoder.1} parent=47 // pred_region
          %292 = dma.done [#allocation6], 32
        $region60: #{mlp_table_encoder.1} parent=47 // pred_fallthru
          _
        %s293 = smul.u32 128, %s23
        %s294 = ssub.s32 129, %s293
        %p295 = scmp.lt.s32.totalorder %s294, 128
        %s296 = scalar_select %p295, %s294, 128
        %s297 = smul.u32 128, %s296
        %p298 = scmp.lt.s32.totalorder %s293, 128
        %s299 = scalar_select %p298, %s293, 128
        %s300 = smul.addr %s299, 8
        %s301 = scalar_lea.vmem %s0, %s300
        %p302 = pneg %p44
        %p303 = pneg %p41
        %p304 = pneg %p65
        %p305 = pneg %p62
        %p306 = pneg %p86
        %p307 = pneg %p83
        %p308 = pneg %p107
        %p309 = pneg %p104
        %p310 = pneg %p128
        %p311 = pneg %p125
        %p312 = pneg %p149
        %p313 = pneg %p146
        %p314 = pneg %p170
        %p315 = pneg %p167
        %p316 = pneg %p196
        %p317 = pneg %p193
        %s318 = sand.u32 %s183, 1
        %s319 = scalar_lea.sflag [#allocation4], %s318
        %s320 = sand.u32 %s183, 1
        %s321 = smul.addr %s320, 2048
        %s322 = scalar_lea.vmem [#allocation8], %s321
        %s323 = smul.u32 128, %s23
        %s324 = ssub.s32 129, %s323
        %p325 = scmp.lt.s32.totalorder %s324, 128
        %s326 = scalar_select %p325, %s324, 128
        %s327 = smul.u32 128, %s326
        %p328 = scmp.lt.s32.totalorder %s323, 128
        %s329 = scalar_select %p328, %s323, 128
        %s330 = smul.addr %s329, 8
        %s331 = scalar_lea.vmem %s0, %s330
        %s332 = smul.u32 128, %s23
        %s333 = ssub.s32 129, %s332
        %p334 = scmp.lt.s32.totalorder %s333, 128
        %s335 = scalar_select %p334, %s333, 128
        %s336 = smul.u32 128, %s335
        %s337 = smul.u32 128, %s23
        %s338 = ssub.s32 129, %s337
        %p339 = scmp.lt.s32.totalorder %s338, 128
        %s340 = scalar_select %p339, %s338, 128
        %s341 = smul.u32 128, %s340
        %s342 = smul.u32 %s341, 2
        %v344 = vld [vmem:[%s331] sm:$0xff]
        %v345 = vld [vmem:[%s331 + $0x8] sm:$0xff]
        %v346 = vld [vmem:[%s331 + $0x10] sm:$0xff]
        %v347 = vld [vmem:[%s331 + $0x18] sm:$0xff]
        %v348 = vld [vmem:[%s331 + $0x20] sm:$0xff]
        %v349 = vld [vmem:[%s331 + $0x28] sm:$0xff]
        %v350 = vld [vmem:[%s331 + $0x30] sm:$0xff]
        %v351 = vld [vmem:[%s331 + $0x38] sm:$0xff]
        %v352 = vld [vmem:[%s331 + $0x40] sm:$0xff]
        %v353 = vld [vmem:[%s331 + $0x48] sm:$0xff]
        %v354 = vld [vmem:[%s331 + $0x50] sm:$0xff]
        %v355 = vld [vmem:[%s331 + $0x58] sm:$0xff]
        %v356 = vld [vmem:[%s331 + $0x60] sm:$0xff]
        %v357 = vld [vmem:[%s331 + $0x68] sm:$0xff]
        %v358 = vld [vmem:[%s331 + $0x70] sm:$0xff]
        %v359 = vld [vmem:[%s331 + $0x78] sm:$0xff]
        %v360 = vld [vmem:[%s331 + $0x80] sm:$0xff]
        %v361 = vld [vmem:[%s331 + $0x88] sm:$0xff]
        %v362 = vld [vmem:[%s331 + $0x90] sm:$0xff]
        %v363 = vld [vmem:[%s331 + $0x98] sm:$0xff]
        %v364 = vld [vmem:[%s331 + $0xa0] sm:$0xff]
        %v365 = vld [vmem:[%s331 + $0xa8] sm:$0xff]
        %v366 = vld [vmem:[%s331 + $0xb0] sm:$0xff]
        %v367 = vld [vmem:[%s331 + $0xb8] sm:$0xff]
        %v368 = vld [vmem:[%s331 + $0xc0] sm:$0xff]
        %v369 = vld [vmem:[%s331 + $0xc8] sm:$0xff]
        %v370 = vld [vmem:[%s331 + $0xd0] sm:$0xff]
        %v371 = vld [vmem:[%s331 + $0xd8] sm:$0xff]
        %v372 = vld [vmem:[%s331 + $0xe0] sm:$0xff]
        %v373 = vld [vmem:[%s331 + $0xe8] sm:$0xff]
        %v374 = vld [vmem:[%s331 + $0xf0] sm:$0xff]
        %v375 = vld [vmem:[%s331 + $0xf8] sm:$0xff]
        %v376 = vld [vmem:[%s331 + $0x100] sm:$0xff]
        %v377 = vld [vmem:[%s331 + $0x108] sm:$0xff]
        %v378 = vld [vmem:[%s331 + $0x110] sm:$0xff]
        %v379 = vld [vmem:[%s331 + $0x118] sm:$0xff]
        %v380 = vld [vmem:[%s331 + $0x120] sm:$0xff]
        %v381 = vld [vmem:[%s331 + $0x128] sm:$0xff]
        %v382 = vld [vmem:[%s331 + $0x130] sm:$0xff]
        %v383 = vld [vmem:[%s331 + $0x138] sm:$0xff]
        %v384 = vld [vmem:[%s331 + $0x140] sm:$0xff]
        %v385 = vld [vmem:[%s331 + $0x148] sm:$0xff]
        %v386 = vld [vmem:[%s331 + $0x150] sm:$0xff]
        %v387 = vld [vmem:[%s331 + $0x158] sm:$0xff]
        %v388 = vld [vmem:[%s331 + $0x160] sm:$0xff]
        %v389 = vld [vmem:[%s331 + $0x168] sm:$0xff]
        %v390 = vld [vmem:[%s331 + $0x170] sm:$0xff]
        %v391 = vld [vmem:[%s331 + $0x178] sm:$0xff]
        %v392 = vld [vmem:[%s331 + $0x180] sm:$0xff]
        %v393 = vld [vmem:[%s331 + $0x188] sm:$0xff]
        %v394 = vld [vmem:[%s331 + $0x190] sm:$0xff]
        %v395 = vld [vmem:[%s331 + $0x198] sm:$0xff]
        %v396 = vld [vmem:[%s331 + $0x1a0] sm:$0xff]
        %v397 = vld [vmem:[%s331 + $0x1a8] sm:$0xff]
        %v398 = vld [vmem:[%s331 + $0x1b0] sm:$0xff]
        %v399 = vld [vmem:[%s331 + $0x1b8] sm:$0xff]
        %v400 = vld [vmem:[%s331 + $0x1c0] sm:$0xff]
        %v401 = vld [vmem:[%s331 + $0x1c8] sm:$0xff]
        %v402 = vld [vmem:[%s331 + $0x1d0] sm:$0xff]
        %v403 = vld [vmem:[%s331 + $0x1d8] sm:$0xff]
        %v404 = vld [vmem:[%s331 + $0x1e0] sm:$0xff]
        %v405 = vld [vmem:[%s331 + $0x1e8] sm:$0xff]
        %v406 = vld [vmem:[%s331 + $0x1f0] sm:$0xff]
        %v407 = vld [vmem:[%s331 + $0x1f8] sm:$0xff]
        %v408 = vld [vmem:[%s331 + $0x200] sm:$0xff]
        %v409 = vld [vmem:[%s331 + $0x208] sm:$0xff]
        %v410 = vld [vmem:[%s331 + $0x210] sm:$0xff]
        %v411 = vld [vmem:[%s331 + $0x218] sm:$0xff]
        %v412 = vld [vmem:[%s331 + $0x220] sm:$0xff]
        %v413 = vld [vmem:[%s331 + $0x228] sm:$0xff]
        %v414 = vld [vmem:[%s331 + $0x230] sm:$0xff]
        %v415 = vld [vmem:[%s331 + $0x238] sm:$0xff]
        %v416 = vld [vmem:[%s331 + $0x240] sm:$0xff]
        %v417 = vld [vmem:[%s331 + $0x248] sm:$0xff]
        %v418 = vld [vmem:[%s331 + $0x250] sm:$0xff]
        %v419 = vld [vmem:[%s331 + $0x258] sm:$0xff]
        %v420 = vld [vmem:[%s331 + $0x260] sm:$0xff]
        %v421 = vld [vmem:[%s331 + $0x268] sm:$0xff]
        %v422 = vld [vmem:[%s331 + $0x270] sm:$0xff]
        %v423 = vld [vmem:[%s331 + $0x278] sm:$0xff]
        %v424 = vld [vmem:[%s331 + $0x280] sm:$0xff]
        %v425 = vld [vmem:[%s331 + $0x288] sm:$0xff]
        %v426 = vld [vmem:[%s331 + $0x290] sm:$0xff]
        %v427 = vld [vmem:[%s331 + $0x298] sm:$0xff]
        %v428 = vld [vmem:[%s331 + $0x2a0] sm:$0xff]
        %v429 = vld [vmem:[%s331 + $0x2a8] sm:$0xff]
        %v430 = vld [vmem:[%s331 + $0x2b0] sm:$0xff]
        %v431 = vld [vmem:[%s331 + $0x2b8] sm:$0xff]
        %v432 = vld [vmem:[%s331 + $0x2c0] sm:$0xff]
        %v433 = vld [vmem:[%s331 + $0x2c8] sm:$0xff]
        %v434 = vld [vmem:[%s331 + $0x2d0] sm:$0xff]
        %v435 = vld [vmem:[%s331 + $0x2d8] sm:$0xff]
        %v436 = vld [vmem:[%s331 + $0x2e0] sm:$0xff]
        %v437 = vld [vmem:[%s331 + $0x2e8] sm:$0xff]
        %v438 = vld [vmem:[%s331 + $0x2f0] sm:$0xff]
        %v439 = vld [vmem:[%s331 + $0x2f8] sm:$0xff]
        %v440 = vld [vmem:[%s331 + $0x300] sm:$0xff]
        %v441 = vld [vmem:[%s331 + $0x308] sm:$0xff]
        %v442 = vld [vmem:[%s331 + $0x310] sm:$0xff]
        %v443 = vld [vmem:[%s331 + $0x318] sm:$0xff]
        %v444 = vld [vmem:[%s331 + $0x320] sm:$0xff]
        %v445 = vld [vmem:[%s331 + $0x328] sm:$0xff]
        %v446 = vld [vmem:[%s331 + $0x330] sm:$0xff]
        %v447 = vld [vmem:[%s331 + $0x338] sm:$0xff]
        %v448 = vld [vmem:[%s331 + $0x340] sm:$0xff]
        %v449 = vld [vmem:[%s331 + $0x348] sm:$0xff]
        %v450 = vld [vmem:[%s331 + $0x350] sm:$0xff]
        %v451 = vld [vmem:[%s331 + $0x358] sm:$0xff]
        %v452 = vld [vmem:[%s331 + $0x360] sm:$0xff]
        %v453 = vld [vmem:[%s331 + $0x368] sm:$0xff]
        %v454 = vld [vmem:[%s331 + $0x370] sm:$0xff]
        %v455 = vld [vmem:[%s331 + $0x378] sm:$0xff]
        %v456 = vld [vmem:[%s331 + $0x380] sm:$0xff]
        %v457 = vld [vmem:[%s331 + $0x388] sm:$0xff]
        %v458 = vld [vmem:[%s331 + $0x390] sm:$0xff]
        %v459 = vld [vmem:[%s331 + $0x398] sm:$0xff]
        %v460 = vld [vmem:[%s331 + $0x3a0] sm:$0xff]
        %v461 = vld [vmem:[%s331 + $0x3a8] sm:$0xff]
        %v462 = vld [vmem:[%s331 + $0x3b0] sm:$0xff]
        %v463 = vld [vmem:[%s331 + $0x3b8] sm:$0xff]
        %v464 = vld [vmem:[%s331 + $0x3c0] sm:$0xff]
        %v465 = vld [vmem:[%s331 + $0x3c8] sm:$0xff]
        %v466 = vld [vmem:[%s331 + $0x3d0] sm:$0xff]
        %v467 = vld [vmem:[%s331 + $0x3d8] sm:$0xff]
        %v468 = vld [vmem:[%s331 + $0x3e0] sm:$0xff]
        %v469 = vld [vmem:[%s331 + $0x3e8] sm:$0xff]
        %v470 = vld [vmem:[%s331 + $0x3f0] sm:$0xff]
        %v471 = vld [vmem:[%s331 + $0x3f8] sm:$0xff]
        %v472 = vpack.c.bf16 %v345, %v344
        %v473 = vpack.c.bf16 %v347, %v346
        %v474 = vpack.c.bf16 %v349, %v348
        %v475 = vpack.c.bf16 %v351, %v350
        %v476 = vpack.c.bf16 %v353, %v352
        %v477 = vpack.c.bf16 %v355, %v354
        %v478 = vpack.c.bf16 %v357, %v356
        %v479 = vpack.c.bf16 %v359, %v358
        %v480 = vpack.c.bf16 %v361, %v360
        %v481 = vpack.c.bf16 %v363, %v362
        %v482 = vpack.c.bf16 %v365, %v364
        %v483 = vpack.c.bf16 %v367, %v366
        %v484 = vpack.c.bf16 %v369, %v368
        %v485 = vpack.c.bf16 %v371, %v370
        %v486 = vpack.c.bf16 %v373, %v372
        %v487 = vpack.c.bf16 %v375, %v374
        %v488 = vpack.c.bf16 %v377, %v376
        %v489 = vpack.c.bf16 %v379, %v378
        %v490 = vpack.c.bf16 %v381, %v380
        %v491 = vpack.c.bf16 %v383, %v382
        %v492 = vpack.c.bf16 %v385, %v384
        %v493 = vpack.c.bf16 %v387, %v386
        %v494 = vpack.c.bf16 %v389, %v388
        %v495 = vpack.c.bf16 %v391, %v390
        %v496 = vpack.c.bf16 %v393, %v392
        %v497 = vpack.c.bf16 %v395, %v394
        %v498 = vpack.c.bf16 %v397, %v396
        %v499 = vpack.c.bf16 %v399, %v398
        %v500 = vpack.c.bf16 %v401, %v400
        %v501 = vpack.c.bf16 %v403, %v402
        %v502 = vpack.c.bf16 %v405, %v404
        %v503 = vpack.c.bf16 %v407, %v406
        %v504 = vpack.c.bf16 %v409, %v408
        %v505 = vpack.c.bf16 %v411, %v410
        %v506 = vpack.c.bf16 %v413, %v412
        %v507 = vpack.c.bf16 %v415, %v414
        %v508 = vpack.c.bf16 %v417, %v416
        %v509 = vpack.c.bf16 %v419, %v418
        %v510 = vpack.c.bf16 %v421, %v420
        %v511 = vpack.c.bf16 %v423, %v422
        %v512 = vpack.c.bf16 %v425, %v424
        %v513 = vpack.c.bf16 %v427, %v426
        %v514 = vpack.c.bf16 %v429, %v428
        %v515 = vpack.c.bf16 %v431, %v430
        %v516 = vpack.c.bf16 %v433, %v432
        %v517 = vpack.c.bf16 %v435, %v434
        %v518 = vpack.c.bf16 %v437, %v436
        %v519 = vpack.c.bf16 %v439, %v438
        %v520 = vpack.c.bf16 %v441, %v440
        %v521 = vpack.c.bf16 %v443, %v442
        %v522 = vpack.c.bf16 %v445, %v444
        %v523 = vpack.c.bf16 %v447, %v446
        %v524 = vpack.c.bf16 %v449, %v448
        %v525 = vpack.c.bf16 %v451, %v450
        %v526 = vpack.c.bf16 %v453, %v452
        %v527 = vpack.c.bf16 %v455, %v454
        %v528 = vpack.c.bf16 %v457, %v456
        %v529 = vpack.c.bf16 %v459, %v458
        %v530 = vpack.c.bf16 %v461, %v460
        %v531 = vpack.c.bf16 %v463, %v462
        %v532 = vpack.c.bf16 %v465, %v464
        %v533 = vpack.c.bf16 %v467, %v466
        %v534 = vpack.c.bf16 %v469, %v468
        %v535 = vpack.c.bf16 %v471, %v470
        %v536 = vld [vmem:[%s1] sm:$0xf]
        %v537 = vld [vmem:[%s1 + $0x4] sm:$0x1]
        %v538 = vld [vmem:[#allocation2] sm:$0x1]
        %v540 = vlaneseq
        %v541 = vshrl.u32 %v540, 7
        %v542 = vsub.s32 0, %v541
        %v543 = vrot.slane %v538, %v542
        %v547 = vunpack.c.l.b16 %v536
        %v548 = vunpack.c.l.b16 %v537
        %v549 = vpack.c.b16 %v548, %v547
        %vm550 = vcmask 72704
        %v552 = vsel %vm550, %v472, 0
        %v555 = vsel %vm550, %v473, 0
        %v558 = vsel %vm550, %v474, 0
        %v561 = vsel %vm550, %v475, 0
        %v564 = vsel %vm550, %v476, 0
        %v567 = vsel %vm550, %v477, 0
        %v570 = vsel %vm550, %v478, 0
        %v573 = vsel %vm550, %v479, 0
        %v576 = vsel %vm550, %v480, 0
        %v579 = vsel %vm550, %v481, 0
        %v582 = vsel %vm550, %v482, 0
        %v585 = vsel %vm550, %v483, 0
        %v588 = vsel %vm550, %v484, 0
        %v591 = vsel %vm550, %v485, 0
        %v594 = vsel %vm550, %v486, 0
        %v597 = vsel %vm550, %v487, 0
        %v600 = vsel %vm550, %v488, 0
        %v603 = vsel %vm550, %v489, 0
        %v606 = vsel %vm550, %v490, 0
        %v609 = vsel %vm550, %v491, 0
        %v612 = vsel %vm550, %v492, 0
        %v615 = vsel %vm550, %v493, 0
        %v618 = vsel %vm550, %v494, 0
        %v621 = vsel %vm550, %v495, 0
        %v624 = vsel %vm550, %v496, 0
        %v627 = vsel %vm550, %v497, 0
        %v630 = vsel %vm550, %v498, 0
        %v633 = vsel %vm550, %v499, 0
        %v636 = vsel %vm550, %v500, 0
        %v639 = vsel %vm550, %v501, 0
        %v642 = vsel %vm550, %v502, 0
        %v645 = vsel %vm550, %v503, 0
        %v648 = vsel %vm550, %v504, 0
        %v651 = vsel %vm550, %v505, 0
        %v654 = vsel %vm550, %v506, 0
        %v657 = vsel %vm550, %v507, 0
        %v660 = vsel %vm550, %v508, 0
        %v663 = vsel %vm550, %v509, 0
        %v666 = vsel %vm550, %v510, 0
        %v669 = vsel %vm550, %v511, 0
        %v672 = vsel %vm550, %v512, 0
        %v675 = vsel %vm550, %v513, 0
        %v678 = vsel %vm550, %v514, 0
        %v681 = vsel %vm550, %v515, 0
        %v684 = vsel %vm550, %v516, 0
        %v687 = vsel %vm550, %v517, 0
        %v690 = vsel %vm550, %v518, 0
        %v693 = vsel %vm550, %v519, 0
        %v696 = vsel %vm550, %v520, 0
        %v699 = vsel %vm550, %v521, 0
        %v702 = vsel %vm550, %v522, 0
        %v705 = vsel %vm550, %v523, 0
        %v708 = vsel %vm550, %v524, 0
        %v711 = vsel %vm550, %v525, 0
        %v714 = vsel %vm550, %v526, 0
        %v717 = vsel %vm550, %v527, 0
        %v720 = vsel %vm550, %v528, 0
        %v723 = vsel %vm550, %v529, 0
        %v726 = vsel %vm550, %v530, 0
        %v729 = vsel %vm550, %v531, 0
        %v732 = vsel %vm550, %v532, 0
        %v735 = vsel %vm550, %v533, 0
        %v738 = vsel %vm550, %v534, 0
        %v741 = vsel %vm550, %v535, 0
        %vm743 = vcmask 1043456
        %vm744 = vcmask 1044480
        %v745 = vsel %vm743, 4294967295, 65535
        %v746 = vsel %vm744, %v745, 0
        %v748 = vand.u32 %v549, %v746
        %750 = vmatprep.subr.bf16.mxu0 0
        %751 = vmatpush1.bf16.msra.mxu0 %v748
        %752 = vmatprep.subr.bf16.mxu0 0
        %753 = vmatpush1.bf16.msra.mxu0 0
        %754 = vmatprep.subr.bf16.mxu0 0
        %755 = vmatpush1.bf16.msra.mxu0 0
        %756 = vmatprep.subr.bf16.mxu0 0
        %757 = vmatpush1.bf16.msra.mxu0 0
        %758 = vmatprep.subr.bf16.mxu0 0
        %759 = vmatpush1.bf16.msra.mxu0 0
        %760 = vmatprep.subr.bf16.mxu0 0
        %761 = vmatpush1.bf16.msra.mxu0 0
        %762 = vmatprep.subr.bf16.mxu0 0
        %763 = vmatpush1.bf16.msra.mxu0 0
        %764 = vmatprep.subr.bf16.mxu0 0
        %765 = vmatpush1.bf16.msra.mxu0 0
        %766 = vmatprep.subr.bf16.mxu0 0
        %767 = vmatpush1.bf16.msra.mxu0 0
        %768 = vmatprep.subr.bf16.mxu0 0
        %769 = vmatpush1.bf16.msra.mxu0 0
        %770 = vmatprep.subr.bf16.mxu0 0
        %771 = vmatpush1.bf16.msra.mxu0 0
        %772 = vmatprep.subr.bf16.mxu0 0
        %773 = vmatpush1.bf16.msra.mxu0 0
        %774 = vmatprep.subr.bf16.mxu0 0
        %775 = vmatpush1.bf16.msra.mxu0 0
        %776 = vmatprep.subr.bf16.mxu0 0
        %777 = vmatpush1.bf16.msra.mxu0 0
        %778 = vmatprep.subr.bf16.mxu0 0
        %779 = vmatpush1.bf16.msra.mxu0 0
        %780 = vmatprep.subr.bf16.mxu0 0
        %781 = vmatpush1.bf16.msra.mxu0 0
        %782 = vmatprep.mubr.bf16.mxu0 0
        %783 = vmatmul.mubr.bf16.gmra.mrb[0].mxu0 %v552
        %v784 = vpop.f32.mrb[0].mxu0
        %v785 = vadd.f32 %v543, %v784
        %v786 = vpop.f32.mrb[0].mxu0
        %v787 = vpop.f32.mrb[0].mxu0
        %v788 = vadd.f32 %v543, %v787
        %v789 = vpop.f32.mrb[0].mxu0
        %790 = vmatprep.mubr.bf16.mxu0 0
        %791 = vmatmul.mubr.bf16.gmra.mrb[0].mxu0 %v555
        %v792 = vpop.f32.mrb[0].mxu0
        %v793 = vadd.f32 %v543, %v792
        %v794 = vpop.f32.mrb[0].mxu0
        %v795 = vpop.f32.mrb[0].mxu0
        %v796 = vadd.f32 %v543, %v795
        %v797 = vpop.f32.mrb[0].mxu0
        %798 = vmatprep.mubr.bf16.mxu0 0
        %799 = vmatmul.mubr.bf16.gmra.mrb[0].mxu0 %v558
        %v800 = vpop.f32.mrb[0].mxu0
        %v801 = vadd.f32 %v543, %v800
        %v802 = vpop.f32.mrb[0].mxu0
        %v803 = vpop.f32.mrb[0].mxu0
        %v804 = vadd.f32 %v543, %v803
        %v805 = vpop.f32.mrb[0].mxu0
        %806 = vmatprep.mubr.bf16.mxu0 0
        %807 = vmatmul.mubr.bf16.gmra.mrb[0].mxu0 %v561
        %v808 = vpop.f32.mrb[0].mxu0
        %v809 = vadd.f32 %v543, %v808
        %v810 = vpop.f32.mrb[0].mxu0
        %v811 = vpop.f32.mrb[0].mxu0
        %v812 = vadd.f32 %v543, %v811
        %v813 = vpop.f32.mrb[0].mxu0
        %814 = vmatprep.mubr.bf16.mxu0 0
        %815 = vmatmul.mubr.bf16.gmra.mrb[0].mxu0 %v564
        %v816 = vpop.f32.mrb[0].mxu0
        %v817 = vadd.f32 %v543, %v816
        %v818 = vpop.f32.mrb[0].mxu0
        %v819 = vpop.f32.mrb[0].mxu0
        %v820 = vadd.f32 %v543, %v819
        %v821 = vpop.f32.mrb[0].mxu0
        %822 = vmatprep.mubr.bf16.mxu0 0
        %823 = vmatmul.mubr.bf16.gmra.mrb[0].mxu0 %v567
        %v824 = vpop.f32.mrb[0].mxu0
        %v825 = vadd.f32 %v543, %v824
        %v826 = vpop.f32.mrb[0].mxu0
        %v827 = vpop.f32.mrb[0].mxu0
        %v828 = vadd.f32 %v543, %v827
        %v829 = vpop.f32.mrb[0].mxu0
        %830 = vmatprep.mubr.bf16.mxu0 0
        %831 = vmatmul.mubr.bf16.gmra.mrb[0].mxu0 %v570
        %v832 = vpop.f32.mrb[0].mxu0
        %v833 = vadd.f32 %v543, %v832
        %v834 = vpop.f32.mrb[0].mxu0
        %v835 = vpop.f32.mrb[0].mxu0
        %v836 = vadd.f32 %v543, %v835
        %v837 = vpop.f32.mrb[0].mxu0
        %838 = vmatprep.mubr.bf16.mxu0 0
        %839 = vmatmul.mubr.bf16.gmra.mrb[0].mxu0 %v573
        %v840 = vpop.f32.mrb[0].mxu0
        %v841 = vadd.f32 %v543, %v840
        %v842 = vpop.f32.mrb[0].mxu0
        %v843 = vpop.f32.mrb[0].mxu0
        %v844 = vadd.f32 %v543, %v843
        %v845 = vpop.f32.mrb[0].mxu0
        %846 = vmatprep.mubr.bf16.mxu0 0
        %847 = vmatmul.mubr.bf16.gmra.mrb[0].mxu0 %v576
        %v848 = vpop.f32.mrb[0].mxu0
        %v849 = vadd.f32 %v543, %v848
        %v850 = vpop.f32.mrb[0].mxu0
        %v851 = vpop.f32.mrb[0].mxu0
        %v852 = vadd.f32 %v543, %v851
        %v853 = vpop.f32.mrb[0].mxu0
        %854 = vmatprep.mubr.bf16.mxu0 0
        %855 = vmatmul.mubr.bf16.gmra.mrb[0].mxu0 %v579
        %v856 = vpop.f32.mrb[0].mxu0
        %v857 = vadd.f32 %v543, %v856
        %v858 = vpop.f32.mrb[0].mxu0
        %v859 = vpop.f32.mrb[0].mxu0
        %v860 = vadd.f32 %v543, %v859
        %v861 = vpop.f32.mrb[0].mxu0
        %862 = vmatprep.mubr.bf16.mxu0 0
        %863 = vmatmul.mubr.bf16.gmra.mrb[0].mxu0 %v582
        %v864 = vpop.f32.mrb[0].mxu0
        %v865 = vadd.f32 %v543, %v864
        %v866 = vpop.f32.mrb[0].mxu0
        %v867 = vpop.f32.mrb[0].mxu0
        %v868 = vadd.f32 %v543, %v867
        %v869 = vpop.f32.mrb[0].mxu0
        %870 = vmatprep.mubr.bf16.mxu0 0
        %871 = vmatmul.mubr.bf16.gmra.mrb[0].mxu0 %v585
        %v872 = vpop.f32.mrb[0].mxu0
        %v873 = vadd.f32 %v543, %v872
        %v874 = vpop.f32.mrb[0].mxu0
        %v875 = vpop.f32.mrb[0].mxu0
        %v876 = vadd.f32 %v543, %v875
        %v877 = vpop.f32.mrb[0].mxu0
        %878 = vmatprep.mubr.bf16.mxu0 0
        %879 = vmatmul.mubr.bf16.gmra.mrb[0].mxu0 %v588
        %v880 = vpop.f32.mrb[0].mxu0
        %v881 = vadd.f32 %v543, %v880
        %v882 = vpop.f32.mrb[0].mxu0
        %v883 = vpop.f32.mrb[0].mxu0
        %v884 = vadd.f32 %v543, %v883
        %v885 = vpop.f32.mrb[0].mxu0
        %886 = vmatprep.mubr.bf16.mxu0 0
        %887 = vmatmul.mubr.bf16.gmra.mrb[0].mxu0 %v591
        %v888 = vpop.f32.mrb[0].mxu0
        %v889 = vadd.f32 %v543, %v888
        %v890 = vpop.f32.mrb[0].mxu0
        %v891 = vpop.f32.mrb[0].mxu0
        %v892 = vadd.f32 %v543, %v891
        %v893 = vpop.f32.mrb[0].mxu0
        %894 = vmatprep.mubr.bf16.mxu0 0
        %895 = vmatmul.mubr.bf16.gmra.mrb[0].mxu0 %v594
        %v896 = vpop.f32.mrb[0].mxu0
        %v897 = vadd.f32 %v543, %v896
        %v898 = vpop.f32.mrb[0].mxu0
        %v899 = vpop.f32.mrb[0].mxu0
        %v900 = vadd.f32 %v543, %v899
        %v901 = vpop.f32.mrb[0].mxu0
        %902 = vmatprep.mubr.bf16.mxu0 0
        %903 = vmatmul.mubr.bf16.gmra.mrb[0].mxu0 %v597
        %v904 = vpop.f32.mrb[0].mxu0
        %v905 = vadd.f32 %v543, %v904
        %v906 = vpop.f32.mrb[0].mxu0
        %v907 = vpop.f32.mrb[0].mxu0
        %v908 = vadd.f32 %v543, %v907
        %v909 = vpop.f32.mrb[0].mxu0
        %910 = vmatprep.mubr.bf16.mxu0 0
        %911 = vmatmul.mubr.bf16.gmra.mrb[0].mxu0 %v600
        %v912 = vpop.f32.mrb[0].mxu0
        %v913 = vadd.f32 %v543, %v912
        %v914 = vpop.f32.mrb[0].mxu0
        %v915 = vpop.f32.mrb[0].mxu0
        %v916 = vadd.f32 %v543, %v915
        %v917 = vpop.f32.mrb[0].mxu0
        %918 = vmatprep.mubr.bf16.mxu0 0
        %919 = vmatmul.mubr.bf16.gmra.mrb[0].mxu0 %v603
        %v920 = vpop.f32.mrb[0].mxu0
        %v921 = vadd.f32 %v543, %v920
        %v922 = vpop.f32.mrb[0].mxu0
        %v923 = vpop.f32.mrb[0].mxu0
        %v924 = vadd.f32 %v543, %v923
        %v925 = vpop.f32.mrb[0].mxu0
        %926 = vmatprep.mubr.bf16.mxu0 0
        %927 = vmatmul.mubr.bf16.gmra.mrb[0].mxu0 %v606
        %v928 = vpop.f32.mrb[0].mxu0
        %v929 = vadd.f32 %v543, %v928
        %v930 = vpop.f32.mrb[0].mxu0
        %v931 = vpop.f32.mrb[0].mxu0
        %v932 = vadd.f32 %v543, %v931
        %v933 = vpop.f32.mrb[0].mxu0
        %934 = vmatprep.mubr.bf16.mxu0 0
        %935 = vmatmul.mubr.bf16.gmra.mrb[0].mxu0 %v609
        %v936 = vpop.f32.mrb[0].mxu0
        %v937 = vadd.f32 %v543, %v936
        %v938 = vpop.f32.mrb[0].mxu0
        %v939 = vpop.f32.mrb[0].mxu0
        %v940 = vadd.f32 %v543, %v939
        %v941 = vpop.f32.mrb[0].mxu0
        %942 = vmatprep.mubr.bf16.mxu0 0
        %943 = vmatmul.mubr.bf16.gmra.mrb[0].mxu0 %v612
        %v944 = vpop.f32.mrb[0].mxu0
        %v945 = vadd.f32 %v543, %v944
        %v946 = vpop.f32.mrb[0].mxu0
        %v947 = vpop.f32.mrb[0].mxu0
        %v948 = vadd.f32 %v543, %v947
        %v949 = vpop.f32.mrb[0].mxu0
        %950 = vmatprep.mubr.bf16.mxu0 0
        %951 = vmatmul.mubr.bf16.gmra.mrb[0].mxu0 %v615
        %v952 = vpop.f32.mrb[0].mxu0
        %v953 = vadd.f32 %v543, %v952
        %v954 = vpop.f32.mrb[0].mxu0
        %v955 = vpop.f32.mrb[0].mxu0
        %v956 = vadd.f32 %v543, %v955
        %v957 = vpop.f32.mrb[0].mxu0
        %958 = vmatprep.mubr.bf16.mxu0 0
        %959 = vmatmul.mubr.bf16.gmra.mrb[0].mxu0 %v618
        %v960 = vpop.f32.mrb[0].mxu0
        %v961 = vadd.f32 %v543, %v960
        %v962 = vpop.f32.mrb[0].mxu0
        %v963 = vpop.f32.mrb[0].mxu0
        %v964 = vadd.f32 %v543, %v963
        %v965 = vpop.f32.mrb[0].mxu0
        %966 = vmatprep.mubr.bf16.mxu0 0
        %967 = vmatmul.mubr.bf16.gmra.mrb[0].mxu0 %v621
        %v968 = vpop.f32.mrb[0].mxu0
        %v969 = vadd.f32 %v543, %v968
        %v970 = vpop.f32.mrb[0].mxu0
        %v971 = vpop.f32.mrb[0].mxu0
        %v972 = vadd.f32 %v543, %v971
        %v973 = vpop.f32.mrb[0].mxu0
        %974 = vmatprep.mubr.bf16.mxu0 0
        %975 = vmatmul.mubr.bf16.gmra.mrb[0].mxu0 %v624
        %v976 = vpop.f32.mrb[0].mxu0
        %v977 = vadd.f32 %v543, %v976
        %v978 = vpop.f32.mrb[0].mxu0
        %v979 = vpop.f32.mrb[0].mxu0
        %v980 = vadd.f32 %v543, %v979
        %v981 = vpop.f32.mrb[0].mxu0
        %982 = vmatprep.mubr.bf16.mxu0 0
        %983 = vmatmul.mubr.bf16.gmra.mrb[0].mxu0 %v627
        %v984 = vpop.f32.mrb[0].mxu0
        %v985 = vadd.f32 %v543, %v984
        %v986 = vpop.f32.mrb[0].mxu0
        %v987 = vpop.f32.mrb[0].mxu0
        %v988 = vadd.f32 %v543, %v987
        %v989 = vpop.f32.mrb[0].mxu0
        %990 = vmatprep.mubr.bf16.mxu0 0
        %991 = vmatmul.mubr.bf16.gmra.mrb[0].mxu0 %v630
        %v992 = vpop.f32.mrb[0].mxu0
        %v993 = vadd.f32 %v543, %v992
        %v994 = vpop.f32.mrb[0].mxu0
        %v995 = vpop.f32.mrb[0].mxu0
        %v996 = vadd.f32 %v543, %v995
        %v997 = vpop.f32.mrb[0].mxu0
        %998 = vmatprep.mubr.bf16.mxu0 0
        %999 = vmatmul.mubr.bf16.gmra.mrb[0].mxu0 %v633
        %v1000 = vpop.f32.mrb[0].mxu0
        %v1001 = vadd.f32 %v543, %v1000
        %v1002 = vpop.f32.mrb[0].mxu0
        %v1003 = vpop.f32.mrb[0].mxu0
        %v1004 = vadd.f32 %v543, %v1003
        %v1005 = vpop.f32.mrb[0].mxu0
        %1006 = vmatprep.mubr.bf16.mxu0 0
        %1007 = vmatmul.mubr.bf16.gmra.mrb[0].mxu0 %v636
        %v1008 = vpop.f32.mrb[0].mxu0
        %v1009 = vadd.f32 %v543, %v1008
        %v1010 = vpop.f32.mrb[0].mxu0
        %v1011 = vpop.f32.mrb[0].mxu0
        %v1012 = vadd.f32 %v543, %v1011
        %v1013 = vpop.f32.mrb[0].mxu0
        %1014 = vmatprep.mubr.bf16.mxu0 0
        %1015 = vmatmul.mubr.bf16.gmra.mrb[0].mxu0 %v639
        %v1016 = vpop.f32.mrb[0].mxu0
        %v1017 = vadd.f32 %v543, %v1016
        %v1018 = vpop.f32.mrb[0].mxu0
        %v1019 = vpop.f32.mrb[0].mxu0
        %v1020 = vadd.f32 %v543, %v1019
        %v1021 = vpop.f32.mrb[0].mxu0
        %1022 = vmatprep.mubr.bf16.mxu0 0
        %1023 = vmatmul.mubr.bf16.gmra.mrb[0].mxu0 %v642
        %v1024 = vpop.f32.mrb[0].mxu0
        %v1025 = vadd.f32 %v543, %v1024
        %v1026 = vpop.f32.mrb[0].mxu0
        %v1027 = vpop.f32.mrb[0].mxu0
        %v1028 = vadd.f32 %v543, %v1027
        %v1029 = vpop.f32.mrb[0].mxu0
        %1030 = vmatprep.mubr.bf16.mxu0 0
        %1031 = vmatmul.mubr.bf16.gmra.mrb[0].mxu0 %v645
        %v1032 = vpop.f32.mrb[0].mxu0
        %v1033 = vadd.f32 %v543, %v1032
        %v1034 = vpop.f32.mrb[0].mxu0
        %v1035 = vpop.f32.mrb[0].mxu0
        %v1036 = vadd.f32 %v543, %v1035
        %v1037 = vpop.f32.mrb[0].mxu0
        %1038 = vmatprep.mubr.bf16.mxu0 0
        %1039 = vmatmul.mubr.bf16.gmra.mrb[0].mxu0 %v648
        %v1040 = vpop.f32.mrb[0].mxu0
        %v1041 = vadd.f32 %v543, %v1040
        %v1042 = vpop.f32.mrb[0].mxu0
        %v1043 = vpop.f32.mrb[0].mxu0
        %v1044 = vadd.f32 %v543, %v1043
        %v1045 = vpop.f32.mrb[0].mxu0
        %1046 = vmatprep.mubr.bf16.mxu0 0
        %1047 = vmatmul.mubr.bf16.gmra.mrb[0].mxu0 %v651
        %v1048 = vpop.f32.mrb[0].mxu0
        %v1049 = vadd.f32 %v543, %v1048
        %v1050 = vpop.f32.mrb[0].mxu0
        %v1051 = vpop.f32.mrb[0].mxu0
        %v1052 = vadd.f32 %v543, %v1051
        %v1053 = vpop.f32.mrb[0].mxu0
        %1054 = vmatprep.mubr.bf16.mxu0 0
        %1055 = vmatmul.mubr.bf16.gmra.mrb[0].mxu0 %v654
        %v1056 = vpop.f32.mrb[0].mxu0
        %v1057 = vadd.f32 %v543, %v1056
        %v1058 = vpop.f32.mrb[0].mxu0
        %v1059 = vpop.f32.mrb[0].mxu0
        %v1060 = vadd.f32 %v543, %v1059
        %v1061 = vpop.f32.mrb[0].mxu0
        %1062 = vmatprep.mubr.bf16.mxu0 0
        %1063 = vmatmul.mubr.bf16.gmra.mrb[0].mxu0 %v657
        %v1064 = vpop.f32.mrb[0].mxu0
        %v1065 = vadd.f32 %v543, %v1064
        %v1066 = vpop.f32.mrb[0].mxu0
        %v1067 = vpop.f32.mrb[0].mxu0
        %v1068 = vadd.f32 %v543, %v1067
        %v1069 = vpop.f32.mrb[0].mxu0
        %1070 = vmatprep.mubr.bf16.mxu0 0
        %1071 = vmatmul.mubr.bf16.gmra.mrb[0].mxu0 %v660
        %v1072 = vpop.f32.mrb[0].mxu0
        %v1073 = vadd.f32 %v543, %v1072
        %v1074 = vpop.f32.mrb[0].mxu0
        %v1075 = vpop.f32.mrb[0].mxu0
        %v1076 = vadd.f32 %v543, %v1075
        %v1077 = vpop.f32.mrb[0].mxu0
        %1078 = vmatprep.mubr.bf16.mxu0 0
        %1079 = vmatmul.mubr.bf16.gmra.mrb[0].mxu0 %v663
        %v1080 = vpop.f32.mrb[0].mxu0
        %v1081 = vadd.f32 %v543, %v1080
        %v1082 = vpop.f32.mrb[0].mxu0
        %v1083 = vpop.f32.mrb[0].mxu0
        %v1084 = vadd.f32 %v543, %v1083
        %v1085 = vpop.f32.mrb[0].mxu0
        %1086 = vmatprep.mubr.bf16.mxu0 0
        %1087 = vmatmul.mubr.bf16.gmra.mrb[0].mxu0 %v666
        %v1088 = vpop.f32.mrb[0].mxu0
        %v1089 = vadd.f32 %v543, %v1088
        %v1090 = vpop.f32.mrb[0].mxu0
        %v1091 = vpop.f32.mrb[0].mxu0
        %v1092 = vadd.f32 %v543, %v1091
        %v1093 = vpop.f32.mrb[0].mxu0
        %1094 = vmatprep.mubr.bf16.mxu0 0
        %1095 = vmatmul.mubr.bf16.gmra.mrb[0].mxu0 %v669
        %v1096 = vpop.f32.mrb[0].mxu0
        %v1097 = vadd.f32 %v543, %v1096
        %v1098 = vpop.f32.mrb[0].mxu0
        %v1099 = vpop.f32.mrb[0].mxu0
        %v1100 = vadd.f32 %v543, %v1099
        %v1101 = vpop.f32.mrb[0].mxu0
        %1102 = vmatprep.mubr.bf16.mxu0 0
        %1103 = vmatmul.mubr.bf16.gmra.mrb[0].mxu0 %v672
        %v1104 = vpop.f32.mrb[0].mxu0
        %v1105 = vadd.f32 %v543, %v1104
        %v1106 = vpop.f32.mrb[0].mxu0
        %v1107 = vpop.f32.mrb[0].mxu0
        %v1108 = vadd.f32 %v543, %v1107
        %v1109 = vpop.f32.mrb[0].mxu0
        %1110 = vmatprep.mubr.bf16.mxu0 0
        %1111 = vmatmul.mubr.bf16.gmra.mrb[0].mxu0 %v675
        %v1112 = vpop.f32.mrb[0].mxu0
        %v1113 = vadd.f32 %v543, %v1112
        %v1114 = vpop.f32.mrb[0].mxu0
        %v1115 = vpop.f32.mrb[0].mxu0
        %v1116 = vadd.f32 %v543, %v1115
        %v1117 = vpop.f32.mrb[0].mxu0
        %1118 = vmatprep.mubr.bf16.mxu0 0
        %1119 = vmatmul.mubr.bf16.gmra.mrb[0].mxu0 %v678
        %v1120 = vpop.f32.mrb[0].mxu0
        %v1121 = vadd.f32 %v543, %v1120
        %v1122 = vpop.f32.mrb[0].mxu0
        %v1123 = vpop.f32.mrb[0].mxu0
        %v1124 = vadd.f32 %v543, %v1123
        %v1125 = vpop.f32.mrb[0].mxu0
        %1126 = vmatprep.mubr.bf16.mxu0 0
        %1127 = vmatmul.mubr.bf16.gmra.mrb[0].mxu0 %v681
        %v1128 = vpop.f32.mrb[0].mxu0
        %v1129 = vadd.f32 %v543, %v1128
        %v1130 = vpop.f32.mrb[0].mxu0
        %v1131 = vpop.f32.mrb[0].mxu0
        %v1132 = vadd.f32 %v543, %v1131
        %v1133 = vpop.f32.mrb[0].mxu0
        %1134 = vmatprep.mubr.bf16.mxu0 0
        %1135 = vmatmul.mubr.bf16.gmra.mrb[0].mxu0 %v684
        %v1136 = vpop.f32.mrb[0].mxu0
        %v1137 = vadd.f32 %v543, %v1136
        %v1138 = vpop.f32.mrb[0].mxu0
        %v1139 = vpop.f32.mrb[0].mxu0
        %v1140 = vadd.f32 %v543, %v1139
        %v1141 = vpop.f32.mrb[0].mxu0
        %1142 = vmatprep.mubr.bf16.mxu0 0
        %1143 = vmatmul.mubr.bf16.gmra.mrb[0].mxu0 %v687
        %v1144 = vpop.f32.mrb[0].mxu0
        %v1145 = vadd.f32 %v543, %v1144
        %v1146 = vpop.f32.mrb[0].mxu0
        %v1147 = vpop.f32.mrb[0].mxu0
        %v1148 = vadd.f32 %v543, %v1147
        %v1149 = vpop.f32.mrb[0].mxu0
        %1150 = vmatprep.mubr.bf16.mxu0 0
        %1151 = vmatmul.mubr.bf16.gmra.mrb[0].mxu0 %v690
        %v1152 = vpop.f32.mrb[0].mxu0
        %v1153 = vadd.f32 %v543, %v1152
        %v1154 = vpop.f32.mrb[0].mxu0
        %v1155 = vpop.f32.mrb[0].mxu0
        %v1156 = vadd.f32 %v543, %v1155
        %v1157 = vpop.f32.mrb[0].mxu0
        %1158 = vmatprep.mubr.bf16.mxu0 0
        %1159 = vmatmul.mubr.bf16.gmra.mrb[0].mxu0 %v693
        %v1160 = vpop.f32.mrb[0].mxu0
        %v1161 = vadd.f32 %v543, %v1160
        %v1162 = vpop.f32.mrb[0].mxu0
        %v1163 = vpop.f32.mrb[0].mxu0
        %v1164 = vadd.f32 %v543, %v1163
        %v1165 = vpop.f32.mrb[0].mxu0
        %1166 = vmatprep.mubr.bf16.mxu0 0
        %1167 = vmatmul.mubr.bf16.gmra.mrb[0].mxu0 %v696
        %v1168 = vpop.f32.mrb[0].mxu0
        %v1169 = vadd.f32 %v543, %v1168
        %v1170 = vpop.f32.mrb[0].mxu0
        %v1171 = vpop.f32.mrb[0].mxu0
        %v1172 = vadd.f32 %v543, %v1171
        %v1173 = vpop.f32.mrb[0].mxu0
        %1174 = vmatprep.mubr.bf16.mxu0 0
        %1175 = vmatmul.mubr.bf16.gmra.mrb[0].mxu0 %v699
        %v1176 = vpop.f32.mrb[0].mxu0
        %v1177 = vadd.f32 %v543, %v1176
        %v1178 = vpop.f32.mrb[0].mxu0
        %v1179 = vpop.f32.mrb[0].mxu0
        %v1180 = vadd.f32 %v543, %v1179
        %v1181 = vpop.f32.mrb[0].mxu0
        %1182 = vmatprep.mubr.bf16.mxu0 0
        %1183 = vmatmul.mubr.bf16.gmra.mrb[0].mxu0 %v702
        %v1184 = vpop.f32.mrb[0].mxu0
        %v1185 = vadd.f32 %v543, %v1184
        %v1186 = vpop.f32.mrb[0].mxu0
        %v1187 = vpop.f32.mrb[0].mxu0
        %v1188 = vadd.f32 %v543, %v1187
        %v1189 = vpop.f32.mrb[0].mxu0
        %1190 = vmatprep.mubr.bf16.mxu0 0
        %1191 = vmatmul.mubr.bf16.gmra.mrb[0].mxu0 %v705
        %v1192 = vpop.f32.mrb[0].mxu0
        %v1193 = vadd.f32 %v543, %v1192
        %v1194 = vpop.f32.mrb[0].mxu0
        %v1195 = vpop.f32.mrb[0].mxu0
        %v1196 = vadd.f32 %v543, %v1195
        %v1197 = vpop.f32.mrb[0].mxu0
        %1198 = vmatprep.mubr.bf16.mxu0 0
        %1199 = vmatmul.mubr.bf16.gmra.mrb[0].mxu0 %v708
        %v1200 = vpop.f32.mrb[0].mxu0
        %v1201 = vadd.f32 %v543, %v1200
        %v1202 = vpop.f32.mrb[0].mxu0
        %v1203 = vpop.f32.mrb[0].mxu0
        %v1204 = vadd.f32 %v543, %v1203
        %v1205 = vpop.f32.mrb[0].mxu0
        %1206 = vmatprep.mubr.bf16.mxu0 0
        %1207 = vmatmul.mubr.bf16.gmra.mrb[0].mxu0 %v711
        %v1208 = vpop.f32.mrb[0].mxu0
        %v1209 = vadd.f32 %v543, %v1208
        %v1210 = vpop.f32.mrb[0].mxu0
        %v1211 = vpop.f32.mrb[0].mxu0
        %v1212 = vadd.f32 %v543, %v1211
        %v1213 = vpop.f32.mrb[0].mxu0
        %1214 = vmatprep.mubr.bf16.mxu0 0
        %1215 = vmatmul.mubr.bf16.gmra.mrb[0].mxu0 %v714
        %v1216 = vpop.f32.mrb[0].mxu0
        %v1217 = vadd.f32 %v543, %v1216
        %v1218 = vpop.f32.mrb[0].mxu0
        %v1219 = vpop.f32.mrb[0].mxu0
        %v1220 = vadd.f32 %v543, %v1219
        %v1221 = vpop.f32.mrb[0].mxu0
        %1222 = vmatprep.mubr.bf16.mxu0 0
        %1223 = vmatmul.mubr.bf16.gmra.mrb[0].mxu0 %v717
        %v1224 = vpop.f32.mrb[0].mxu0
        %v1225 = vadd.f32 %v543, %v1224
        %v1226 = vpop.f32.mrb[0].mxu0
        %v1227 = vpop.f32.mrb[0].mxu0
        %v1228 = vadd.f32 %v543, %v1227
        %v1229 = vpop.f32.mrb[0].mxu0
        %1230 = vmatprep.mubr.bf16.mxu0 0
        %1231 = vmatmul.mubr.bf16.gmra.mrb[0].mxu0 %v720
        %v1232 = vpop.f32.mrb[0].mxu0
        %v1233 = vadd.f32 %v543, %v1232
        %v1234 = vpop.f32.mrb[0].mxu0
        %v1235 = vpop.f32.mrb[0].mxu0
        %v1236 = vadd.f32 %v543, %v1235
        %v1237 = vpop.f32.mrb[0].mxu0
        %1238 = vmatprep.mubr.bf16.mxu0 0
        %1239 = vmatmul.mubr.bf16.gmra.mrb[0].mxu0 %v723
        %v1240 = vpop.f32.mrb[0].mxu0
        %v1241 = vadd.f32 %v543, %v1240
        %v1242 = vpop.f32.mrb[0].mxu0
        %v1243 = vpop.f32.mrb[0].mxu0
        %v1244 = vadd.f32 %v543, %v1243
        %v1245 = vpop.f32.mrb[0].mxu0
        %1246 = vmatprep.mubr.bf16.mxu0 0
        %1247 = vmatmul.mubr.bf16.gmra.mrb[0].mxu0 %v726
        %v1248 = vpop.f32.mrb[0].mxu0
        %v1249 = vadd.f32 %v543, %v1248
        %v1250 = vpop.f32.mrb[0].mxu0
        %v1251 = vpop.f32.mrb[0].mxu0
        %v1252 = vadd.f32 %v543, %v1251
        %v1253 = vpop.f32.mrb[0].mxu0
        %1254 = vmatprep.mubr.bf16.mxu0 0
        %1255 = vmatmul.mubr.bf16.gmra.mrb[0].mxu0 %v729
        %v1256 = vpop.f32.mrb[0].mxu0
        %v1257 = vadd.f32 %v543, %v1256
        %v1258 = vpop.f32.mrb[0].mxu0
        %v1259 = vpop.f32.mrb[0].mxu0
        %v1260 = vadd.f32 %v543, %v1259
        %v1261 = vpop.f32.mrb[0].mxu0
        %1262 = vmatprep.mubr.bf16.mxu0 0
        %1263 = vmatmul.mubr.bf16.gmra.mrb[0].mxu0 %v732
        %v1264 = vpop.f32.mrb[0].mxu0
        %v1265 = vadd.f32 %v543, %v1264
        %v1266 = vpop.f32.mrb[0].mxu0
        %v1267 = vpop.f32.mrb[0].mxu0
        %v1268 = vadd.f32 %v543, %v1267
        %v1269 = vpop.f32.mrb[0].mxu0
        %1270 = vmatprep.mubr.bf16.mxu0 0
        %1271 = vmatmul.mubr.bf16.gmra.mrb[0].mxu0 %v735
        %v1272 = vpop.f32.mrb[0].mxu0
        %v1273 = vadd.f32 %v543, %v1272
        %v1274 = vpop.f32.mrb[0].mxu0
        %v1275 = vpop.f32.mrb[0].mxu0
        %v1276 = vadd.f32 %v543, %v1275
        %v1277 = vpop.f32.mrb[0].mxu0
        %1278 = vmatprep.mubr.bf16.mxu0 0
        %1279 = vmatmul.mubr.bf16.gmra.mrb[0].mxu0 %v738
        %v1280 = vpop.f32.mrb[0].mxu0
        %v1281 = vadd.f32 %v543, %v1280
        %v1282 = vpop.f32.mrb[0].mxu0
        %v1283 = vpop.f32.mrb[0].mxu0
        %v1284 = vadd.f32 %v543, %v1283
        %v1285 = vpop.f32.mrb[0].mxu0
        %1286 = vmatprep.mubr.bf16.mxu0 0
        %1287 = vmatmul.mubr.bf16.gmra.mrb[0].mxu0 %v741
        %v1288 = vpop.f32.mrb[0].mxu0
        %v1289 = vadd.f32 %v543, %v1288
        %v1290 = vpop.f32.mrb[0].mxu0
        %v1291 = vpop.f32.mrb[0].mxu0
        %v1292 = vadd.f32 %v543, %v1291
        %v1293 = vpop.f32.mrb[0].mxu0
        %1294 = vdwg.mxu0
        %v1295 = vmax.f32 %v785, 0.0
        %v1296 = vmax.f32 %v788, 0.0
        %v1297 = vmax.f32 %v793, 0.0
        %v1298 = vmax.f32 %v796, 0.0
        %v1299 = vmax.f32 %v801, 0.0
        %v1300 = vmax.f32 %v804, 0.0
        %v1301 = vmax.f32 %v809, 0.0
        %v1302 = vmax.f32 %v812, 0.0
        %v1303 = vmax.f32 %v817, 0.0
        %v1304 = vmax.f32 %v820, 0.0
        %v1305 = vmax.f32 %v825, 0.0
        %v1306 = vmax.f32 %v828, 0.0
        %v1307 = vmax.f32 %v833, 0.0
        %v1308 = vmax.f32 %v836, 0.0
        %v1309 = vmax.f32 %v841, 0.0
        %v1310 = vmax.f32 %v844, 0.0
        %v1311 = vmax.f32 %v849, 0.0
        %v1312 = vmax.f32 %v852, 0.0
        %v1313 = vmax.f32 %v857, 0.0
        %v1314 = vmax.f32 %v860, 0.0
        %v1315 = vmax.f32 %v865, 0.0
        %v1316 = vmax.f32 %v868, 0.0
        %v1317 = vmax.f32 %v873, 0.0
        %v1318 = vmax.f32 %v876, 0.0
        %v1319 = vmax.f32 %v881, 0.0
        %v1320 = vmax.f32 %v884, 0.0
        %v1321 = vmax.f32 %v889, 0.0
        %v1322 = vmax.f32 %v892, 0.0
        %v1323 = vmax.f32 %v897, 0.0
        %v1324 = vmax.f32 %v900, 0.0
        %v1325 = vmax.f32 %v905, 0.0
        %v1326 = vmax.f32 %v908, 0.0
        %v1327 = vmax.f32 %v913, 0.0
        %v1328 = vmax.f32 %v916, 0.0
        %v1329 = vmax.f32 %v921, 0.0
        %v1330 = vmax.f32 %v924, 0.0
        %v1331 = vmax.f32 %v929, 0.0
        %v1332 = vmax.f32 %v932, 0.0
        %v1333 = vmax.f32 %v937, 0.0
        %v1334 = vmax.f32 %v940, 0.0
        %v1335 = vmax.f32 %v945, 0.0
        %v1336 = vmax.f32 %v948, 0.0
        %v1337 = vmax.f32 %v953, 0.0
        %v1338 = vmax.f32 %v956, 0.0
        %v1339 = vmax.f32 %v961, 0.0
        %v1340 = vmax.f32 %v964, 0.0
        %v1341 = vmax.f32 %v969, 0.0
        %v1342 = vmax.f32 %v972, 0.0
        %v1343 = vmax.f32 %v977, 0.0
        %v1344 = vmax.f32 %v980, 0.0
        %v1345 = vmax.f32 %v985, 0.0
        %v1346 = vmax.f32 %v988, 0.0
        %v1347 = vmax.f32 %v993, 0.0
        %v1348 = vmax.f32 %v996, 0.0
        %v1349 = vmax.f32 %v1001, 0.0
        %v1350 = vmax.f32 %v1004, 0.0
        %v1351 = vmax.f32 %v1009, 0.0
        %v1352 = vmax.f32 %v1012, 0.0
        %v1353 = vmax.f32 %v1017, 0.0
        %v1354 = vmax.f32 %v1020, 0.0
        %v1355 = vmax.f32 %v1025, 0.0
        %v1356 = vmax.f32 %v1028, 0.0
        %v1357 = vmax.f32 %v1033, 0.0
        %v1358 = vmax.f32 %v1036, 0.0
        %v1359 = vmax.f32 %v1041, 0.0
        %v1360 = vmax.f32 %v1044, 0.0
        %v1361 = vmax.f32 %v1049, 0.0
        %v1362 = vmax.f32 %v1052, 0.0
        %v1363 = vmax.f32 %v1057, 0.0
        %v1364 = vmax.f32 %v1060, 0.0
        %v1365 = vmax.f32 %v1065, 0.0
        %v1366 = vmax.f32 %v1068, 0.0
        %v1367 = vmax.f32 %v1073, 0.0
        %v1368 = vmax.f32 %v1076, 0.0
        %v1369 = vmax.f32 %v1081, 0.0
        %v1370 = vmax.f32 %v1084, 0.0
        %v1371 = vmax.f32 %v1089, 0.0
        %v1372 = vmax.f32 %v1092, 0.0
        %v1373 = vmax.f32 %v1097, 0.0
        %v1374 = vmax.f32 %v1100, 0.0
        %v1375 = vmax.f32 %v1105, 0.0
        %v1376 = vmax.f32 %v1108, 0.0
        %v1377 = vmax.f32 %v1113, 0.0
        %v1378 = vmax.f32 %v1116, 0.0
        %v1379 = vmax.f32 %v1121, 0.0
        %v1380 = vmax.f32 %v1124, 0.0
        %v1381 = vmax.f32 %v1129, 0.0
        %v1382 = vmax.f32 %v1132, 0.0
        %v1383 = vmax.f32 %v1137, 0.0
        %v1384 = vmax.f32 %v1140, 0.0
        %v1385 = vmax.f32 %v1145, 0.0
        %v1386 = vmax.f32 %v1148, 0.0
        %v1387 = vmax.f32 %v1153, 0.0
        %v1388 = vmax.f32 %v1156, 0.0
        %v1389 = vmax.f32 %v1161, 0.0
        %v1390 = vmax.f32 %v1164, 0.0
        %v1391 = vmax.f32 %v1169, 0.0
        %v1392 = vmax.f32 %v1172, 0.0
        %v1393 = vmax.f32 %v1177, 0.0
        %v1394 = vmax.f32 %v1180, 0.0
        %v1395 = vmax.f32 %v1185, 0.0
        %v1396 = vmax.f32 %v1188, 0.0
        %v1397 = vmax.f32 %v1193, 0.0
        %v1398 = vmax.f32 %v1196, 0.0
        %v1399 = vmax.f32 %v1201, 0.0
        %v1400 = vmax.f32 %v1204, 0.0
        %v1401 = vmax.f32 %v1209, 0.0
        %v1402 = vmax.f32 %v1212, 0.0
        %v1403 = vmax.f32 %v1217, 0.0
        %v1404 = vmax.f32 %v1220, 0.0
        %v1405 = vmax.f32 %v1225, 0.0
        %v1406 = vmax.f32 %v1228, 0.0
        %v1407 = vmax.f32 %v1233, 0.0
        %v1408 = vmax.f32 %v1236, 0.0
        %v1409 = vmax.f32 %v1241, 0.0
        %v1410 = vmax.f32 %v1244, 0.0
        %v1411 = vmax.f32 %v1249, 0.0
        %v1412 = vmax.f32 %v1252, 0.0
        %v1413 = vmax.f32 %v1257, 0.0
        %v1414 = vmax.f32 %v1260, 0.0
        %v1415 = vmax.f32 %v1265, 0.0
        %v1416 = vmax.f32 %v1268, 0.0
        %v1417 = vmax.f32 %v1273, 0.0
        %v1418 = vmax.f32 %v1276, 0.0
        %v1419 = vmax.f32 %v1281, 0.0
        %v1420 = vmax.f32 %v1284, 0.0
        %v1421 = vmax.f32 %v1289, 0.0
        %v1422 = vmax.f32 %v1292, 0.0
        %v1423 = vpack.c.bf16 %v1296, %v1295
        %v1424 = vpack.c.bf16 %v1298, %v1297
        %v1425 = vpack.c.bf16 %v1300, %v1299
        %v1426 = vpack.c.bf16 %v1302, %v1301
        %v1427 = vpack.c.bf16 %v1304, %v1303
        %v1428 = vpack.c.bf16 %v1306, %v1305
        %v1429 = vpack.c.bf16 %v1308, %v1307
        %v1430 = vpack.c.bf16 %v1310, %v1309
        %v1431 = vpack.c.bf16 %v1312, %v1311
        %v1432 = vpack.c.bf16 %v1314, %v1313
        %v1433 = vpack.c.bf16 %v1316, %v1315
        %v1434 = vpack.c.bf16 %v1318, %v1317
        %v1435 = vpack.c.bf16 %v1320, %v1319
        %v1436 = vpack.c.bf16 %v1322, %v1321
        %v1437 = vpack.c.bf16 %v1324, %v1323
        %v1438 = vpack.c.bf16 %v1326, %v1325
        %v1439 = vpack.c.bf16 %v1328, %v1327
        %v1440 = vpack.c.bf16 %v1330, %v1329
        %v1441 = vpack.c.bf16 %v1332, %v1331
        %v1442 = vpack.c.bf16 %v1334, %v1333
        %v1443 = vpack.c.bf16 %v1336, %v1335
        %v1444 = vpack.c.bf16 %v1338, %v1337
        %v1445 = vpack.c.bf16 %v1340, %v1339
        %v1446 = vpack.c.bf16 %v1342, %v1341
        %v1447 = vpack.c.bf16 %v1344, %v1343
        %v1448 = vpack.c.bf16 %v1346, %v1345
        %v1449 = vpack.c.bf16 %v1348, %v1347
        %v1450 = vpack.c.bf16 %v1350, %v1349
        %v1451 = vpack.c.bf16 %v1352, %v1351
        %v1452 = vpack.c.bf16 %v1354, %v1353
        %v1453 = vpack.c.bf16 %v1356, %v1355
        %v1454 = vpack.c.bf16 %v1358, %v1357
        %v1455 = vpack.c.bf16 %v1360, %v1359
        %v1456 = vpack.c.bf16 %v1362, %v1361
        %v1457 = vpack.c.bf16 %v1364, %v1363
        %v1458 = vpack.c.bf16 %v1366, %v1365
        %v1459 = vpack.c.bf16 %v1368, %v1367
        %v1460 = vpack.c.bf16 %v1370, %v1369
        %v1461 = vpack.c.bf16 %v1372, %v1371
        %v1462 = vpack.c.bf16 %v1374, %v1373
        %v1463 = vpack.c.bf16 %v1376, %v1375
        %v1464 = vpack.c.bf16 %v1378, %v1377
        %v1465 = vpack.c.bf16 %v1380, %v1379
        %v1466 = vpack.c.bf16 %v1382, %v1381
        %v1467 = vpack.c.bf16 %v1384, %v1383
        %v1468 = vpack.c.bf16 %v1386, %v1385
        %v1469 = vpack.c.bf16 %v1388, %v1387
        %v1470 = vpack.c.bf16 %v1390, %v1389
        %v1471 = vpack.c.bf16 %v1392, %v1391
        %v1472 = vpack.c.bf16 %v1394, %v1393
        %v1473 = vpack.c.bf16 %v1396, %v1395
        %v1474 = vpack.c.bf16 %v1398, %v1397
        %v1475 = vpack.c.bf16 %v1400, %v1399
        %v1476 = vpack.c.bf16 %v1402, %v1401
        %v1477 = vpack.c.bf16 %v1404, %v1403
        %v1478 = vpack.c.bf16 %v1406, %v1405
        %v1479 = vpack.c.bf16 %v1408, %v1407
        %v1480 = vpack.c.bf16 %v1410, %v1409
        %v1481 = vpack.c.bf16 %v1412, %v1411
        %v1482 = vpack.c.bf16 %v1414, %v1413
        %v1483 = vpack.c.bf16 %v1416, %v1415
        %v1484 = vpack.c.bf16 %v1418, %v1417
        %v1485 = vpack.c.bf16 %v1420, %v1419
        %v1486 = vpack.c.bf16 %v1422, %v1421
        %v1487 = vld [vmem:[%s3] sm:$0xf]
        %v1488 = vld [vmem:[%s3 + $0x4] sm:$0xf]
        %v1489 = vld [vmem:[%s3 + $0x8] sm:$0xf]
        %v1490 = vld [vmem:[%s3 + $0xc] sm:$0xf]
        %v1491 = vld [vmem:[%s3 + $0x10] sm:$0xf]
        %v1492 = vld [vmem:[%s3 + $0x14] sm:$0xf]
        %v1493 = vld [vmem:[%s3 + $0x18] sm:$0xf]
        %v1494 = vld [vmem:[%s3 + $0x1c] sm:$0xf]
        %v1495 = vld [vmem:[#allocation5] sm:$0x1]
        %v1497 = vlaneseq
        %v1498 = vshrl.u32 %v1497, 7
        %v1499 = vsub.s32 0, %v1498
        %v1500 = vrot.slane %v1495, %v1499
        %v1510 = vunpack.c.l.b16 %v1487
        %v1511 = vunpack.c.l.b16 %v1488
        %v1512 = vunpack.c.l.b16 %v1489
        %v1513 = vunpack.c.l.b16 %v1490
        %v1514 = vunpack.c.l.b16 %v1491
        %v1515 = vunpack.c.l.b16 %v1492
        %v1516 = vunpack.c.l.b16 %v1493
        %v1517 = vunpack.c.l.b16 %v1494
        %v1518 = vpack.c.b16 %v1511, %v1510
        %v1519 = vpack.c.b16 %v1513, %v1512
        %v1520 = vpack.c.b16 %v1515, %v1514
        %v1521 = vpack.c.b16 %v1517, %v1516
        %vm1526 = vcmask 523264
        %v1528 = vsel %vm1526, %v1423, 0
        %v1531 = vsel %vm1526, %v1424, 0
        %v1534 = vsel %vm1526, %v1425, 0
        %v1537 = vsel %vm1526, %v1426, 0
        %v1540 = vsel %vm1526, %v1427, 0
        %v1543 = vsel %vm1526, %v1428, 0
        %v1546 = vsel %vm1526, %v1429, 0
        %v1549 = vsel %vm1526, %v1430, 0
        %v1552 = vsel %vm1526, %v1431, 0
        %v1555 = vsel %vm1526, %v1432, 0
        %v1558 = vsel %vm1526, %v1433, 0
        %v1561 = vsel %vm1526, %v1434, 0
        %v1564 = vsel %vm1526, %v1435, 0
        %v1567 = vsel %vm1526, %v1436, 0
        %v1570 = vsel %vm1526, %v1437, 0
        %v1573 = vsel %vm1526, %v1438, 0
        %v1576 = vsel %vm1526, %v1439, 0
        %v1579 = vsel %vm1526, %v1440, 0
        %v1582 = vsel %vm1526, %v1441, 0
        %v1585 = vsel %vm1526, %v1442, 0
        %v1588 = vsel %vm1526, %v1443, 0
        %v1591 = vsel %vm1526, %v1444, 0
        %v1594 = vsel %vm1526, %v1445, 0
        %v1597 = vsel %vm1526, %v1446, 0
        %v1600 = vsel %vm1526, %v1447, 0
        %v1603 = vsel %vm1526, %v1448, 0
        %v1606 = vsel %vm1526, %v1449, 0
        %v1609 = vsel %vm1526, %v1450, 0
        %v1612 = vsel %vm1526, %v1451, 0
        %v1615 = vsel %vm1526, %v1452, 0
        %v1618 = vsel %vm1526, %v1453, 0
        %v1621 = vsel %vm1526, %v1454, 0
        %v1624 = vsel %vm1526, %v1455, 0
        %v1627 = vsel %vm1526, %v1456, 0
        %v1630 = vsel %vm1526, %v1457, 0
        %v1633 = vsel %vm1526, %v1458, 0
        %v1636 = vsel %vm1526, %v1459, 0
        %v1639 = vsel %vm1526, %v1460, 0
        %v1642 = vsel %vm1526, %v1461, 0
        %v1645 = vsel %vm1526, %v1462, 0
        %v1648 = vsel %vm1526, %v1463, 0
        %v1651 = vsel %vm1526, %v1464, 0
        %v1654 = vsel %vm1526, %v1465, 0
        %v1657 = vsel %vm1526, %v1466, 0
        %v1660 = vsel %vm1526, %v1467, 0
        %v1663 = vsel %vm1526, %v1468, 0
        %v1666 = vsel %vm1526, %v1469, 0
        %v1669 = vsel %vm1526, %v1470, 0
        %v1672 = vsel %vm1526, %v1471, 0
        %v1675 = vsel %vm1526, %v1472, 0
        %v1678 = vsel %vm1526, %v1473, 0
        %v1681 = vsel %vm1526, %v1474, 0
        %v1684 = vsel %vm1526, %v1475, 0
        %v1687 = vsel %vm1526, %v1476, 0
        %v1690 = vsel %vm1526, %v1477, 0
        %v1693 = vsel %vm1526, %v1478, 0
        %v1696 = vsel %vm1526, %v1479, 0
        %v1699 = vsel %vm1526, %v1480, 0
        %v1702 = vsel %vm1526, %v1481, 0
        %v1705 = vsel %vm1526, %v1482, 0
        %v1708 = vsel %vm1526, %v1483, 0
        %v1711 = vsel %vm1526, %v1484, 0
        %v1714 = vsel %vm1526, %v1485, 0
        %v1717 = vsel %vm1526, %v1486, 0
        %1719 = vmatprep.subr.bf16.mxu0 0
        %1720 = vmatpush1.bf16.msra.mxu0 %v1518
        %1721 = vmatprep.subr.bf16.mxu0 0
        %1722 = vmatpush1.bf16.msra.mxu0 %v1519
        %1723 = vmatprep.subr.bf16.mxu0 0
        %1724 = vmatpush1.bf16.msra.mxu0 %v1520
        %1725 = vmatprep.subr.bf16.mxu0 0
        %1726 = vmatpush1.bf16.msra.mxu0 %v1521
        %1727 = vmatprep.subr.bf16.mxu0 0
        %1728 = vmatpush1.bf16.msra.mxu0 0
        %1729 = vmatprep.subr.bf16.mxu0 0
        %1730 = vmatpush1.bf16.msra.mxu0 0
        %1731 = vmatprep.subr.bf16.mxu0 0
        %1732 = vmatpush1.bf16.msra.mxu0 0
        %1733 = vmatprep.subr.bf16.mxu0 0
        %1734 = vmatpush1.bf16.msra.mxu0 0
        %1735 = vmatprep.subr.bf16.mxu0 0
        %1736 = vmatpush1.bf16.msra.mxu0 0
        %1737 = vmatprep.subr.bf16.mxu0 0
        %1738 = vmatpush1.bf16.msra.mxu0 0
        %1739 = vmatprep.subr.bf16.mxu0 0
        %1740 = vmatpush1.bf16.msra.mxu0 0
        %1741 = vmatprep.subr.bf16.mxu0 0
        %1742 = vmatpush1.bf16.msra.mxu0 0
        %1743 = vmatprep.subr.bf16.mxu0 0
        %1744 = vmatpush1.bf16.msra.mxu0 0
        %1745 = vmatprep.subr.bf16.mxu0 0
        %1746 = vmatpush1.bf16.msra.mxu0 0
        %1747 = vmatprep.subr.bf16.mxu0 0
        %1748 = vmatpush1.bf16.msra.mxu0 0
        %1749 = vmatprep.subr.bf16.mxu0 0
        %1750 = vmatpush1.bf16.msra.mxu0 0
        %1751 = vmatprep.mubr.bf16.mxu0 0
        %1752 = vmatmul.mubr.bf16.gmra.mrb[0].mxu0 %v1528
        %v1753 = vpop.f32.mrb[0].mxu0
        %v1754 = vadd.f32 %v1500, %v1753
        %v1755 = vpop.f32.mrb[0].mxu0
        %v1756 = vpop.f32.mrb[0].mxu0
        %v1757 = vadd.f32 %v1500, %v1756
        %v1758 = vpop.f32.mrb[0].mxu0
        %1759 = vmatprep.mubr.bf16.mxu0 0
        %1760 = vmatmul.mubr.bf16.gmra.mrb[0].mxu0 %v1531
        %v1761 = vpop.f32.mrb[0].mxu0
        %v1762 = vadd.f32 %v1500, %v1761
        %v1763 = vpop.f32.mrb[0].mxu0
        %v1764 = vpop.f32.mrb[0].mxu0
        %v1765 = vadd.f32 %v1500, %v1764
        %v1766 = vpop.f32.mrb[0].mxu0
        %1767 = vmatprep.mubr.bf16.mxu0 0
        %1768 = vmatmul.mubr.bf16.gmra.mrb[0].mxu0 %v1534
        %v1769 = vpop.f32.mrb[0].mxu0
        %v1770 = vadd.f32 %v1500, %v1769
        %v1771 = vpop.f32.mrb[0].mxu0
        %v1772 = vpop.f32.mrb[0].mxu0
        %v1773 = vadd.f32 %v1500, %v1772
        %v1774 = vpop.f32.mrb[0].mxu0
        %1775 = vmatprep.mubr.bf16.mxu0 0
        %1776 = vmatmul.mubr.bf16.gmra.mrb[0].mxu0 %v1537
        %v1777 = vpop.f32.mrb[0].mxu0
        %v1778 = vadd.f32 %v1500, %v1777
        %v1779 = vpop.f32.mrb[0].mxu0
        %v1780 = vpop.f32.mrb[0].mxu0
        %v1781 = vadd.f32 %v1500, %v1780
        %v1782 = vpop.f32.mrb[0].mxu0
        %1783 = vmatprep.mubr.bf16.mxu0 0
        %1784 = vmatmul.mubr.bf16.gmra.mrb[0].mxu0 %v1540
        %v1785 = vpop.f32.mrb[0].mxu0
        %v1786 = vadd.f32 %v1500, %v1785
        %v1787 = vpop.f32.mrb[0].mxu0
        %v1788 = vpop.f32.mrb[0].mxu0
        %v1789 = vadd.f32 %v1500, %v1788
        %v1790 = vpop.f32.mrb[0].mxu0
        %1791 = vmatprep.mubr.bf16.mxu0 0
        %1792 = vmatmul.mubr.bf16.gmra.mrb[0].mxu0 %v1543
        %v1793 = vpop.f32.mrb[0].mxu0
        %v1794 = vadd.f32 %v1500, %v1793
        %v1795 = vpop.f32.mrb[0].mxu0
        %v1796 = vpop.f32.mrb[0].mxu0
        %v1797 = vadd.f32 %v1500, %v1796
        %v1798 = vpop.f32.mrb[0].mxu0
        %1799 = vmatprep.mubr.bf16.mxu0 0
        %1800 = vmatmul.mubr.bf16.gmra.mrb[0].mxu0 %v1546
        %v1801 = vpop.f32.mrb[0].mxu0
        %v1802 = vadd.f32 %v1500, %v1801
        %v1803 = vpop.f32.mrb[0].mxu0
        %v1804 = vpop.f32.mrb[0].mxu0
        %v1805 = vadd.f32 %v1500, %v1804
        %v1806 = vpop.f32.mrb[0].mxu0
        %1807 = vmatprep.mubr.bf16.mxu0 0
        %1808 = vmatmul.mubr.bf16.gmra.mrb[0].mxu0 %v1549
        %v1809 = vpop.f32.mrb[0].mxu0
        %v1810 = vadd.f32 %v1500, %v1809
        %v1811 = vpop.f32.mrb[0].mxu0
        %v1812 = vpop.f32.mrb[0].mxu0
        %v1813 = vadd.f32 %v1500, %v1812
        %v1814 = vpop.f32.mrb[0].mxu0
        %1815 = vmatprep.mubr.bf16.mxu0 0
        %1816 = vmatmul.mubr.bf16.gmra.mrb[0].mxu0 %v1552
        %v1817 = vpop.f32.mrb[0].mxu0
        %v1818 = vadd.f32 %v1500, %v1817
        %v1819 = vpop.f32.mrb[0].mxu0
        %v1820 = vpop.f32.mrb[0].mxu0
        %v1821 = vadd.f32 %v1500, %v1820
        %v1822 = vpop.f32.mrb[0].mxu0
        %1823 = vmatprep.mubr.bf16.mxu0 0
        %1824 = vmatmul.mubr.bf16.gmra.mrb[0].mxu0 %v1555
        %v1825 = vpop.f32.mrb[0].mxu0
        %v1826 = vadd.f32 %v1500, %v1825
        %v1827 = vpop.f32.mrb[0].mxu0
        %v1828 = vpop.f32.mrb[0].mxu0
        %v1829 = vadd.f32 %v1500, %v1828
        %v1830 = vpop.f32.mrb[0].mxu0
        %1831 = vmatprep.mubr.bf16.mxu0 0
        %1832 = vmatmul.mubr.bf16.gmra.mrb[0].mxu0 %v1558
        %v1833 = vpop.f32.mrb[0].mxu0
        %v1834 = vadd.f32 %v1500, %v1833
        %v1835 = vpop.f32.mrb[0].mxu0
        %v1836 = vpop.f32.mrb[0].mxu0
        %v1837 = vadd.f32 %v1500, %v1836
        %v1838 = vpop.f32.mrb[0].mxu0
        %1839 = vmatprep.mubr.bf16.mxu0 0
        %1840 = vmatmul.mubr.bf16.gmra.mrb[0].mxu0 %v1561
        %v1841 = vpop.f32.mrb[0].mxu0
        %v1842 = vadd.f32 %v1500, %v1841
        %v1843 = vpop.f32.mrb[0].mxu0
        %v1844 = vpop.f32.mrb[0].mxu0
        %v1845 = vadd.f32 %v1500, %v1844
        %v1846 = vpop.f32.mrb[0].mxu0
        %1847 = vmatprep.mubr.bf16.mxu0 0
        %1848 = vmatmul.mubr.bf16.gmra.mrb[0].mxu0 %v1564
        %v1849 = vpop.f32.mrb[0].mxu0
        %v1850 = vadd.f32 %v1500, %v1849
        %v1851 = vpop.f32.mrb[0].mxu0
        %v1852 = vpop.f32.mrb[0].mxu0
        %v1853 = vadd.f32 %v1500, %v1852
        %v1854 = vpop.f32.mrb[0].mxu0
        %1855 = vmatprep.mubr.bf16.mxu0 0
        %1856 = vmatmul.mubr.bf16.gmra.mrb[0].mxu0 %v1567
        %v1857 = vpop.f32.mrb[0].mxu0
        %v1858 = vadd.f32 %v1500, %v1857
        %v1859 = vpop.f32.mrb[0].mxu0
        %v1860 = vpop.f32.mrb[0].mxu0
        %v1861 = vadd.f32 %v1500, %v1860
        %v1862 = vpop.f32.mrb[0].mxu0
        %1863 = vmatprep.mubr.bf16.mxu0 0
        %1864 = vmatmul.mubr.bf16.gmra.mrb[0].mxu0 %v1570
        %v1865 = vpop.f32.mrb[0].mxu0
        %v1866 = vadd.f32 %v1500, %v1865
        %v1867 = vpop.f32.mrb[0].mxu0
        %v1868 = vpop.f32.mrb[0].mxu0
        %v1869 = vadd.f32 %v1500, %v1868
        %v1870 = vpop.f32.mrb[0].mxu0
        %1871 = vmatprep.mubr.bf16.mxu0 0
        %1872 = vmatmul.mubr.bf16.gmra.mrb[0].mxu0 %v1573
        %v1873 = vpop.f32.mrb[0].mxu0
        %v1874 = vadd.f32 %v1500, %v1873
        %v1875 = vpop.f32.mrb[0].mxu0
        %v1876 = vpop.f32.mrb[0].mxu0
        %v1877 = vadd.f32 %v1500, %v1876
        %v1878 = vpop.f32.mrb[0].mxu0
        %1879 = vmatprep.mubr.bf16.mxu0 0
        %1880 = vmatmul.mubr.bf16.gmra.mrb[0].mxu0 %v1576
        %v1881 = vpop.f32.mrb[0].mxu0
        %v1882 = vadd.f32 %v1500, %v1881
        %v1883 = vpop.f32.mrb[0].mxu0
        %v1884 = vpop.f32.mrb[0].mxu0
        %v1885 = vadd.f32 %v1500, %v1884
        %v1886 = vpop.f32.mrb[0].mxu0
        %1887 = vmatprep.mubr.bf16.mxu0 0
        %1888 = vmatmul.mubr.bf16.gmra.mrb[0].mxu0 %v1579
        %v1889 = vpop.f32.mrb[0].mxu0
        %v1890 = vadd.f32 %v1500, %v1889
        %v1891 = vpop.f32.mrb[0].mxu0
        %v1892 = vpop.f32.mrb[0].mxu0
        %v1893 = vadd.f32 %v1500, %v1892
        %v1894 = vpop.f32.mrb[0].mxu0
        %1895 = vmatprep.mubr.bf16.mxu0 0
        %1896 = vmatmul.mubr.bf16.gmra.mrb[0].mxu0 %v1582
        %v1897 = vpop.f32.mrb[0].mxu0
        %v1898 = vadd.f32 %v1500, %v1897
        %v1899 = vpop.f32.mrb[0].mxu0
        %v1900 = vpop.f32.mrb[0].mxu0
        %v1901 = vadd.f32 %v1500, %v1900
        %v1902 = vpop.f32.mrb[0].mxu0
        %1903 = vmatprep.mubr.bf16.mxu0 0
        %1904 = vmatmul.mubr.bf16.gmra.mrb[0].mxu0 %v1585
        %v1905 = vpop.f32.mrb[0].mxu0
        %v1906 = vadd.f32 %v1500, %v1905
        %v1907 = vpop.f32.mrb[0].mxu0
        %v1908 = vpop.f32.mrb[0].mxu0
        %v1909 = vadd.f32 %v1500, %v1908
        %v1910 = vpop.f32.mrb[0].mxu0
        %1911 = vmatprep.mubr.bf16.mxu0 0
        %1912 = vmatmul.mubr.bf16.gmra.mrb[0].mxu0 %v1588
        %v1913 = vpop.f32.mrb[0].mxu0
        %v1914 = vadd.f32 %v1500, %v1913
        %v1915 = vpop.f32.mrb[0].mxu0
        %v1916 = vpop.f32.mrb[0].mxu0
        %v1917 = vadd.f32 %v1500, %v1916
        %v1918 = vpop.f32.mrb[0].mxu0
        %1919 = vmatprep.mubr.bf16.mxu0 0
        %1920 = vmatmul.mubr.bf16.gmra.mrb[0].mxu0 %v1591
        %v1921 = vpop.f32.mrb[0].mxu0
        %v1922 = vadd.f32 %v1500, %v1921
        %v1923 = vpop.f32.mrb[0].mxu0
        %v1924 = vpop.f32.mrb[0].mxu0
        %v1925 = vadd.f32 %v1500, %v1924
        %v1926 = vpop.f32.mrb[0].mxu0
        %1927 = vmatprep.mubr.bf16.mxu0 0
        %1928 = vmatmul.mubr.bf16.gmra.mrb[0].mxu0 %v1594
        %v1929 = vpop.f32.mrb[0].mxu0
        %v1930 = vadd.f32 %v1500, %v1929
        %v1931 = vpop.f32.mrb[0].mxu0
        %v1932 = vpop.f32.mrb[0].mxu0
        %v1933 = vadd.f32 %v1500, %v1932
        %v1934 = vpop.f32.mrb[0].mxu0
        %1935 = vmatprep.mubr.bf16.mxu0 0
        %1936 = vmatmul.mubr.bf16.gmra.mrb[0].mxu0 %v1597
        %v1937 = vpop.f32.mrb[0].mxu0
        %v1938 = vadd.f32 %v1500, %v1937
        %v1939 = vpop.f32.mrb[0].mxu0
        %v1940 = vpop.f32.mrb[0].mxu0
        %v1941 = vadd.f32 %v1500, %v1940
        %v1942 = vpop.f32.mrb[0].mxu0
        %1943 = vmatprep.mubr.bf16.mxu0 0
        %1944 = vmatmul.mubr.bf16.gmra.mrb[0].mxu0 %v1600
        %v1945 = vpop.f32.mrb[0].mxu0
        %v1946 = vadd.f32 %v1500, %v1945
        %v1947 = vpop.f32.mrb[0].mxu0
        %v1948 = vpop.f32.mrb[0].mxu0
        %v1949 = vadd.f32 %v1500, %v1948
        %v1950 = vpop.f32.mrb[0].mxu0
        %1951 = vmatprep.mubr.bf16.mxu0 0
        %1952 = vmatmul.mubr.bf16.gmra.mrb[0].mxu0 %v1603
        %v1953 = vpop.f32.mrb[0].mxu0
        %v1954 = vadd.f32 %v1500, %v1953
        %v1955 = vpop.f32.mrb[0].mxu0
        %v1956 = vpop.f32.mrb[0].mxu0
        %v1957 = vadd.f32 %v1500, %v1956
        %v1958 = vpop.f32.mrb[0].mxu0
        %1959 = vmatprep.mubr.bf16.mxu0 0
        %1960 = vmatmul.mubr.bf16.gmra.mrb[0].mxu0 %v1606
        %v1961 = vpop.f32.mrb[0].mxu0
        %v1962 = vadd.f32 %v1500, %v1961
        %v1963 = vpop.f32.mrb[0].mxu0
        %v1964 = vpop.f32.mrb[0].mxu0
        %v1965 = vadd.f32 %v1500, %v1964
        %v1966 = vpop.f32.mrb[0].mxu0
        %1967 = vmatprep.mubr.bf16.mxu0 0
        %1968 = vmatmul.mubr.bf16.gmra.mrb[0].mxu0 %v1609
        %v1969 = vpop.f32.mrb[0].mxu0
        %v1970 = vadd.f32 %v1500, %v1969
        %v1971 = vpop.f32.mrb[0].mxu0
        %v1972 = vpop.f32.mrb[0].mxu0
        %v1973 = vadd.f32 %v1500, %v1972
        %v1974 = vpop.f32.mrb[0].mxu0
        %1975 = vmatprep.mubr.bf16.mxu0 0
        %1976 = vmatmul.mubr.bf16.gmra.mrb[0].mxu0 %v1612
        %v1977 = vpop.f32.mrb[0].mxu0
        %v1978 = vadd.f32 %v1500, %v1977
        %v1979 = vpop.f32.mrb[0].mxu0
        %v1980 = vpop.f32.mrb[0].mxu0
        %v1981 = vadd.f32 %v1500, %v1980
        %v1982 = vpop.f32.mrb[0].mxu0
        %1983 = vmatprep.mubr.bf16.mxu0 0
        %1984 = vmatmul.mubr.bf16.gmra.mrb[0].mxu0 %v1615
        %v1985 = vpop.f32.mrb[0].mxu0
        %v1986 = vadd.f32 %v1500, %v1985
        %v1987 = vpop.f32.mrb[0].mxu0
        %v1988 = vpop.f32.mrb[0].mxu0
        %v1989 = vadd.f32 %v1500, %v1988
        %v1990 = vpop.f32.mrb[0].mxu0
        %1991 = vmatprep.mubr.bf16.mxu0 0
        %1992 = vmatmul.mubr.bf16.gmra.mrb[0].mxu0 %v1618
        %v1993 = vpop.f32.mrb[0].mxu0
        %v1994 = vadd.f32 %v1500, %v1993
        %v1995 = vpop.f32.mrb[0].mxu0
        %v1996 = vpop.f32.mrb[0].mxu0
        %v1997 = vadd.f32 %v1500, %v1996
        %v1998 = vpop.f32.mrb[0].mxu0
        %1999 = vmatprep.mubr.bf16.mxu0 0
        %2000 = vmatmul.mubr.bf16.gmra.mrb[0].mxu0 %v1621
        %v2001 = vpop.f32.mrb[0].mxu0
        %v2002 = vadd.f32 %v1500, %v2001
        %v2003 = vpop.f32.mrb[0].mxu0
        %v2004 = vpop.f32.mrb[0].mxu0
        %v2005 = vadd.f32 %v1500, %v2004
        %v2006 = vpop.f32.mrb[0].mxu0
        %2007 = vmatprep.mubr.bf16.mxu0 0
        %2008 = vmatmul.mubr.bf16.gmra.mrb[0].mxu0 %v1624
        %v2009 = vpop.f32.mrb[0].mxu0
        %v2010 = vadd.f32 %v1500, %v2009
        %v2011 = vpop.f32.mrb[0].mxu0
        %v2012 = vpop.f32.mrb[0].mxu0
        %v2013 = vadd.f32 %v1500, %v2012
        %v2014 = vpop.f32.mrb[0].mxu0
        %2015 = vmatprep.mubr.bf16.mxu0 0
        %2016 = vmatmul.mubr.bf16.gmra.mrb[0].mxu0 %v1627
        %v2017 = vpop.f32.mrb[0].mxu0
        %v2018 = vadd.f32 %v1500, %v2017
        %v2019 = vpop.f32.mrb[0].mxu0
        %v2020 = vpop.f32.mrb[0].mxu0
        %v2021 = vadd.f32 %v1500, %v2020
        %v2022 = vpop.f32.mrb[0].mxu0
        %2023 = vmatprep.mubr.bf16.mxu0 0
        %2024 = vmatmul.mubr.bf16.gmra.mrb[0].mxu0 %v1630
        %v2025 = vpop.f32.mrb[0].mxu0
        %v2026 = vadd.f32 %v1500, %v2025
        %v2027 = vpop.f32.mrb[0].mxu0
        %v2028 = vpop.f32.mrb[0].mxu0
        %v2029 = vadd.f32 %v1500, %v2028
        %v2030 = vpop.f32.mrb[0].mxu0
        %2031 = vmatprep.mubr.bf16.mxu0 0
        %2032 = vmatmul.mubr.bf16.gmra.mrb[0].mxu0 %v1633
        %v2033 = vpop.f32.mrb[0].mxu0
        %v2034 = vadd.f32 %v1500, %v2033
        %v2035 = vpop.f32.mrb[0].mxu0
        %v2036 = vpop.f32.mrb[0].mxu0
        %v2037 = vadd.f32 %v1500, %v2036
        %v2038 = vpop.f32.mrb[0].mxu0
        %2039 = vmatprep.mubr.bf16.mxu0 0
        %2040 = vmatmul.mubr.bf16.gmra.mrb[0].mxu0 %v1636
        %v2041 = vpop.f32.mrb[0].mxu0
        %v2042 = vadd.f32 %v1500, %v2041
        %v2043 = vpop.f32.mrb[0].mxu0
        %v2044 = vpop.f32.mrb[0].mxu0
        %v2045 = vadd.f32 %v1500, %v2044
        %v2046 = vpop.f32.mrb[0].mxu0
        %2047 = vmatprep.mubr.bf16.mxu0 0
        %2048 = vmatmul.mubr.bf16.gmra.mrb[0].mxu0 %v1639
        %v2049 = vpop.f32.mrb[0].mxu0
        %v2050 = vadd.f32 %v1500, %v2049
        %v2051 = vpop.f32.mrb[0].mxu0
        %v2052 = vpop.f32.mrb[0].mxu0
        %v2053 = vadd.f32 %v1500, %v2052
        %v2054 = vpop.f32.mrb[0].mxu0
        %2055 = vmatprep.mubr.bf16.mxu0 0
        %2056 = vmatmul.mubr.bf16.gmra.mrb[0].mxu0 %v1642
        %v2057 = vpop.f32.mrb[0].mxu0
        %v2058 = vadd.f32 %v1500, %v2057
        %v2059 = vpop.f32.mrb[0].mxu0
        %v2060 = vpop.f32.mrb[0].mxu0
        %v2061 = vadd.f32 %v1500, %v2060
        %v2062 = vpop.f32.mrb[0].mxu0
        %2063 = vmatprep.mubr.bf16.mxu0 0
        %2064 = vmatmul.mubr.bf16.gmra.mrb[0].mxu0 %v1645
        %v2065 = vpop.f32.mrb[0].mxu0
        %v2066 = vadd.f32 %v1500, %v2065
        %v2067 = vpop.f32.mrb[0].mxu0
        %v2068 = vpop.f32.mrb[0].mxu0
        %v2069 = vadd.f32 %v1500, %v2068
        %v2070 = vpop.f32.mrb[0].mxu0
        %2071 = vmatprep.mubr.bf16.mxu0 0
        %2072 = vmatmul.mubr.bf16.gmra.mrb[0].mxu0 %v1648
        %v2073 = vpop.f32.mrb[0].mxu0
        %v2074 = vadd.f32 %v1500, %v2073
        %v2075 = vpop.f32.mrb[0].mxu0
        %v2076 = vpop.f32.mrb[0].mxu0
        %v2077 = vadd.f32 %v1500, %v2076
        %v2078 = vpop.f32.mrb[0].mxu0
        %2079 = vmatprep.mubr.bf16.mxu0 0
        %2080 = vmatmul.mubr.bf16.gmra.mrb[0].mxu0 %v1651
        %v2081 = vpop.f32.mrb[0].mxu0
        %v2082 = vadd.f32 %v1500, %v2081
        %v2083 = vpop.f32.mrb[0].mxu0
        %v2084 = vpop.f32.mrb[0].mxu0
        %v2085 = vadd.f32 %v1500, %v2084
        %v2086 = vpop.f32.mrb[0].mxu0
        %2087 = vmatprep.mubr.bf16.mxu0 0
        %2088 = vmatmul.mubr.bf16.gmra.mrb[0].mxu0 %v1654
        %v2089 = vpop.f32.mrb[0].mxu0
        %v2090 = vadd.f32 %v1500, %v2089
        %v2091 = vpop.f32.mrb[0].mxu0
        %v2092 = vpop.f32.mrb[0].mxu0
        %v2093 = vadd.f32 %v1500, %v2092
        %v2094 = vpop.f32.mrb[0].mxu0
        %2095 = vmatprep.mubr.bf16.mxu0 0
        %2096 = vmatmul.mubr.bf16.gmra.mrb[0].mxu0 %v1657
        %v2097 = vpop.f32.mrb[0].mxu0
        %v2098 = vadd.f32 %v1500, %v2097
        %v2099 = vpop.f32.mrb[0].mxu0
        %v2100 = vpop.f32.mrb[0].mxu0
        %v2101 = vadd.f32 %v1500, %v2100
        %v2102 = vpop.f32.mrb[0].mxu0
        %2103 = vmatprep.mubr.bf16.mxu0 0
        %2104 = vmatmul.mubr.bf16.gmra.mrb[0].mxu0 %v1660
        %v2105 = vpop.f32.mrb[0].mxu0
        %v2106 = vadd.f32 %v1500, %v2105
        %v2107 = vpop.f32.mrb[0].mxu0
        %v2108 = vpop.f32.mrb[0].mxu0
        %v2109 = vadd.f32 %v1500, %v2108
        %v2110 = vpop.f32.mrb[0].mxu0
        %2111 = vmatprep.mubr.bf16.mxu0 0
        %2112 = vmatmul.mubr.bf16.gmra.mrb[0].mxu0 %v1663
        %v2113 = vpop.f32.mrb[0].mxu0
        %v2114 = vadd.f32 %v1500, %v2113
        %v2115 = vpop.f32.mrb[0].mxu0
        %v2116 = vpop.f32.mrb[0].mxu0
        %v2117 = vadd.f32 %v1500, %v2116
        %v2118 = vpop.f32.mrb[0].mxu0
        %2119 = vmatprep.mubr.bf16.mxu0 0
        %2120 = vmatmul.mubr.bf16.gmra.mrb[0].mxu0 %v1666
        %v2121 = vpop.f32.mrb[0].mxu0
        %v2122 = vadd.f32 %v1500, %v2121
        %v2123 = vpop.f32.mrb[0].mxu0
        %v2124 = vpop.f32.mrb[0].mxu0
        %v2125 = vadd.f32 %v1500, %v2124
        %v2126 = vpop.f32.mrb[0].mxu0
        %2127 = vmatprep.mubr.bf16.mxu0 0
        %2128 = vmatmul.mubr.bf16.gmra.mrb[0].mxu0 %v1669
        %v2129 = vpop.f32.mrb[0].mxu0
        %v2130 = vadd.f32 %v1500, %v2129
        %v2131 = vpop.f32.mrb[0].mxu0
        %v2132 = vpop.f32.mrb[0].mxu0
        %v2133 = vadd.f32 %v1500, %v2132
        %v2134 = vpop.f32.mrb[0].mxu0
        %2135 = vmatprep.mubr.bf16.mxu0 0
        %2136 = vmatmul.mubr.bf16.gmra.mrb[0].mxu0 %v1672
        %v2137 = vpop.f32.mrb[0].mxu0
        %v2138 = vadd.f32 %v1500, %v2137
        %v2139 = vpop.f32.mrb[0].mxu0
        %v2140 = vpop.f32.mrb[0].mxu0
        %v2141 = vadd.f32 %v1500, %v2140
        %v2142 = vpop.f32.mrb[0].mxu0
        %2143 = vmatprep.mubr.bf16.mxu0 0
        %2144 = vmatmul.mubr.bf16.gmra.mrb[0].mxu0 %v1675
        %v2145 = vpop.f32.mrb[0].mxu0
        %v2146 = vadd.f32 %v1500, %v2145
        %v2147 = vpop.f32.mrb[0].mxu0
        %v2148 = vpop.f32.mrb[0].mxu0
        %v2149 = vadd.f32 %v1500, %v2148
        %v2150 = vpop.f32.mrb[0].mxu0
        %2151 = vmatprep.mubr.bf16.mxu0 0
        %2152 = vmatmul.mubr.bf16.gmra.mrb[0].mxu0 %v1678
        %v2153 = vpop.f32.mrb[0].mxu0
        %v2154 = vadd.f32 %v1500, %v2153
        %v2155 = vpop.f32.mrb[0].mxu0
        %v2156 = vpop.f32.mrb[0].mxu0
        %v2157 = vadd.f32 %v1500, %v2156
        %v2158 = vpop.f32.mrb[0].mxu0
        %2159 = vmatprep.mubr.bf16.mxu0 0
        %2160 = vmatmul.mubr.bf16.gmra.mrb[0].mxu0 %v1681
        %v2161 = vpop.f32.mrb[0].mxu0
        %v2162 = vadd.f32 %v1500, %v2161
        %v2163 = vpop.f32.mrb[0].mxu0
        %v2164 = vpop.f32.mrb[0].mxu0
        %v2165 = vadd.f32 %v1500, %v2164
        %v2166 = vpop.f32.mrb[0].mxu0
        %2167 = vmatprep.mubr.bf16.mxu0 0
        %2168 = vmatmul.mubr.bf16.gmra.mrb[0].mxu0 %v1684
        %v2169 = vpop.f32.mrb[0].mxu0
        %v2170 = vadd.f32 %v1500, %v2169
        %v2171 = vpop.f32.mrb[0].mxu0
        %v2172 = vpop.f32.mrb[0].mxu0
        %v2173 = vadd.f32 %v1500, %v2172
        %v2174 = vpop.f32.mrb[0].mxu0
        %2175 = vmatprep.mubr.bf16.mxu0 0
        %2176 = vmatmul.mubr.bf16.gmra.mrb[0].mxu0 %v1687
        %v2177 = vpop.f32.mrb[0].mxu0
        %v2178 = vadd.f32 %v1500, %v2177
        %v2179 = vpop.f32.mrb[0].mxu0
        %v2180 = vpop.f32.mrb[0].mxu0
        %v2181 = vadd.f32 %v1500, %v2180
        %v2182 = vpop.f32.mrb[0].mxu0
        %2183 = vmatprep.mubr.bf16.mxu0 0
        %2184 = vmatmul.mubr.bf16.gmra.mrb[0].mxu0 %v1690
        %v2185 = vpop.f32.mrb[0].mxu0
        %v2186 = vadd.f32 %v1500, %v2185
        %v2187 = vpop.f32.mrb[0].mxu0
        %v2188 = vpop.f32.mrb[0].mxu0
        %v2189 = vadd.f32 %v1500, %v2188
        %v2190 = vpop.f32.mrb[0].mxu0
        %2191 = vmatprep.mubr.bf16.mxu0 0
        %2192 = vmatmul.mubr.bf16.gmra.mrb[0].mxu0 %v1693
        %v2193 = vpop.f32.mrb[0].mxu0
        %v2194 = vadd.f32 %v1500, %v2193
        %v2195 = vpop.f32.mrb[0].mxu0
        %v2196 = vpop.f32.mrb[0].mxu0
        %v2197 = vadd.f32 %v1500, %v2196
        %v2198 = vpop.f32.mrb[0].mxu0
        %2199 = vmatprep.mubr.bf16.mxu0 0
        %2200 = vmatmul.mubr.bf16.gmra.mrb[0].mxu0 %v1696
        %v2201 = vpop.f32.mrb[0].mxu0
        %v2202 = vadd.f32 %v1500, %v2201
        %v2203 = vpop.f32.mrb[0].mxu0
        %v2204 = vpop.f32.mrb[0].mxu0
        %v2205 = vadd.f32 %v1500, %v2204
        %v2206 = vpop.f32.mrb[0].mxu0
        %2207 = vmatprep.mubr.bf16.mxu0 0
        %2208 = vmatmul.mubr.bf16.gmra.mrb[0].mxu0 %v1699
        %v2209 = vpop.f32.mrb[0].mxu0
        %v2210 = vadd.f32 %v1500, %v2209
        %v2211 = vpop.f32.mrb[0].mxu0
        %v2212 = vpop.f32.mrb[0].mxu0
        %v2213 = vadd.f32 %v1500, %v2212
        %v2214 = vpop.f32.mrb[0].mxu0
        %2215 = vmatprep.mubr.bf16.mxu0 0
        %2216 = vmatmul.mubr.bf16.gmra.mrb[0].mxu0 %v1702
        %v2217 = vpop.f32.mrb[0].mxu0
        %v2218 = vadd.f32 %v1500, %v2217
        %v2219 = vpop.f32.mrb[0].mxu0
        %v2220 = vpop.f32.mrb[0].mxu0
        %v2221 = vadd.f32 %v1500, %v2220
        %v2222 = vpop.f32.mrb[0].mxu0
        %2223 = vmatprep.mubr.bf16.mxu0 0
        %2224 = vmatmul.mubr.bf16.gmra.mrb[0].mxu0 %v1705
        %v2225 = vpop.f32.mrb[0].mxu0
        %v2226 = vadd.f32 %v1500, %v2225
        %v2227 = vpop.f32.mrb[0].mxu0
        %v2228 = vpop.f32.mrb[0].mxu0
        %v2229 = vadd.f32 %v1500, %v2228
        %v2230 = vpop.f32.mrb[0].mxu0
        %2231 = vmatprep.mubr.bf16.mxu0 0
        %2232 = vmatmul.mubr.bf16.gmra.mrb[0].mxu0 %v1708
        %v2233 = vpop.f32.mrb[0].mxu0
        %v2234 = vadd.f32 %v1500, %v2233
        %v2235 = vpop.f32.mrb[0].mxu0
        %v2236 = vpop.f32.mrb[0].mxu0
        %v2237 = vadd.f32 %v1500, %v2236
        %v2238 = vpop.f32.mrb[0].mxu0
        %2239 = vmatprep.mubr.bf16.mxu0 0
        %2240 = vmatmul.mubr.bf16.gmra.mrb[0].mxu0 %v1711
        %v2241 = vpop.f32.mrb[0].mxu0
        %v2242 = vadd.f32 %v1500, %v2241
        %v2243 = vpop.f32.mrb[0].mxu0
        %v2244 = vpop.f32.mrb[0].mxu0
        %v2245 = vadd.f32 %v1500, %v2244
        %v2246 = vpop.f32.mrb[0].mxu0
        %2247 = vmatprep.mubr.bf16.mxu0 0
        %2248 = vmatmul.mubr.bf16.gmra.mrb[0].mxu0 %v1714
        %v2249 = vpop.f32.mrb[0].mxu0
        %v2250 = vadd.f32 %v1500, %v2249
        %v2251 = vpop.f32.mrb[0].mxu0
        %v2252 = vpop.f32.mrb[0].mxu0
        %v2253 = vadd.f32 %v1500, %v2252
        %v2254 = vpop.f32.mrb[0].mxu0
        %2255 = vmatprep.mubr.bf16.mxu0 0
        %2256 = vmatmul.mubr.bf16.gmra.mrb[0].mxu0 %v1717
        %v2257 = vpop.f32.mrb[0].mxu0
        %v2258 = vadd.f32 %v1500, %v2257
        %v2259 = vpop.f32.mrb[0].mxu0
        %v2260 = vpop.f32.mrb[0].mxu0
        %v2261 = vadd.f32 %v1500, %v2260
        %v2262 = vpop.f32.mrb[0].mxu0
        %2263 = vdwg.mxu0
        %v2264 = vmax.f32 %v1754, 0.0
        %v2265 = vmax.f32 %v1757, 0.0
        %v2266 = vmax.f32 %v1762, 0.0
        %v2267 = vmax.f32 %v1765, 0.0
        %v2268 = vmax.f32 %v1770, 0.0
        %v2269 = vmax.f32 %v1773, 0.0
        %v2270 = vmax.f32 %v1778, 0.0
        %v2271 = vmax.f32 %v1781, 0.0
        %v2272 = vmax.f32 %v1786, 0.0
        %v2273 = vmax.f32 %v1789, 0.0
        %v2274 = vmax.f32 %v1794, 0.0
        %v2275 = vmax.f32 %v1797, 0.0
        %v2276 = vmax.f32 %v1802, 0.0
        %v2277 = vmax.f32 %v1805, 0.0
        %v2278 = vmax.f32 %v1810, 0.0
        %v2279 = vmax.f32 %v1813, 0.0
        %v2280 = vmax.f32 %v1818, 0.0
        %v2281 = vmax.f32 %v1821, 0.0
        %v2282 = vmax.f32 %v1826, 0.0
        %v2283 = vmax.f32 %v1829, 0.0
        %v2284 = vmax.f32 %v1834, 0.0
        %v2285 = vmax.f32 %v1837, 0.0
        %v2286 = vmax.f32 %v1842, 0.0
        %v2287 = vmax.f32 %v1845, 0.0
        %v2288 = vmax.f32 %v1850, 0.0
        %v2289 = vmax.f32 %v1853, 0.0
        %v2290 = vmax.f32 %v1858, 0.0
        %v2291 = vmax.f32 %v1861, 0.0
        %v2292 = vmax.f32 %v1866, 0.0
        %v2293 = vmax.f32 %v1869, 0.0
        %v2294 = vmax.f32 %v1874, 0.0
        %v2295 = vmax.f32 %v1877, 0.0
        %v2296 = vmax.f32 %v1882, 0.0
        %v2297 = vmax.f32 %v1885, 0.0
        %v2298 = vmax.f32 %v1890, 0.0
        %v2299 = vmax.f32 %v1893, 0.0
        %v2300 = vmax.f32 %v1898, 0.0
        %v2301 = vmax.f32 %v1901, 0.0
        %v2302 = vmax.f32 %v1906, 0.0
        %v2303 = vmax.f32 %v1909, 0.0
        %v2304 = vmax.f32 %v1914, 0.0
        %v2305 = vmax.f32 %v1917, 0.0
        %v2306 = vmax.f32 %v1922, 0.0
        %v2307 = vmax.f32 %v1925, 0.0
        %v2308 = vmax.f32 %v1930, 0.0
        %v2309 = vmax.f32 %v1933, 0.0
        %v2310 = vmax.f32 %v1938, 0.0
        %v2311 = vmax.f32 %v1941, 0.0
        %v2312 = vmax.f32 %v1946, 0.0
        %v2313 = vmax.f32 %v1949, 0.0
        %v2314 = vmax.f32 %v1954, 0.0
        %v2315 = vmax.f32 %v1957, 0.0
        %v2316 = vmax.f32 %v1962, 0.0
        %v2317 = vmax.f32 %v1965, 0.0
        %v2318 = vmax.f32 %v1970, 0.0
        %v2319 = vmax.f32 %v1973, 0.0
        %v2320 = vmax.f32 %v1978, 0.0
        %v2321 = vmax.f32 %v1981, 0.0
        %v2322 = vmax.f32 %v1986, 0.0
        %v2323 = vmax.f32 %v1989, 0.0
        %v2324 = vmax.f32 %v1994, 0.0
        %v2325 = vmax.f32 %v1997, 0.0
        %v2326 = vmax.f32 %v2002, 0.0
        %v2327 = vmax.f32 %v2005, 0.0
        %v2328 = vmax.f32 %v2010, 0.0
        %v2329 = vmax.f32 %v2013, 0.0
        %v2330 = vmax.f32 %v2018, 0.0
        %v2331 = vmax.f32 %v2021, 0.0
        %v2332 = vmax.f32 %v2026, 0.0
        %v2333 = vmax.f32 %v2029, 0.0
        %v2334 = vmax.f32 %v2034, 0.0
        %v2335 = vmax.f32 %v2037, 0.0
        %v2336 = vmax.f32 %v2042, 0.0
        %v2337 = vmax.f32 %v2045, 0.0
        %v2338 = vmax.f32 %v2050, 0.0
        %v2339 = vmax.f32 %v2053, 0.0
        %v2340 = vmax.f32 %v2058, 0.0
        %v2341 = vmax.f32 %v2061, 0.0
        %v2342 = vmax.f32 %v2066, 0.0
        %v2343 = vmax.f32 %v2069, 0.0
        %v2344 = vmax.f32 %v2074, 0.0
        %v2345 = vmax.f32 %v2077, 0.0
        %v2346 = vmax.f32 %v2082, 0.0
        %v2347 = vmax.f32 %v2085, 0.0
        %v2348 = vmax.f32 %v2090, 0.0
        %v2349 = vmax.f32 %v2093, 0.0
        %v2350 = vmax.f32 %v2098, 0.0
        %v2351 = vmax.f32 %v2101, 0.0
        %v2352 = vmax.f32 %v2106, 0.0
        %v2353 = vmax.f32 %v2109, 0.0
        %v2354 = vmax.f32 %v2114, 0.0
        %v2355 = vmax.f32 %v2117, 0.0
        %v2356 = vmax.f32 %v2122, 0.0
        %v2357 = vmax.f32 %v2125, 0.0
        %v2358 = vmax.f32 %v2130, 0.0
        %v2359 = vmax.f32 %v2133, 0.0
        %v2360 = vmax.f32 %v2138, 0.0
        %v2361 = vmax.f32 %v2141, 0.0
        %v2362 = vmax.f32 %v2146, 0.0
        %v2363 = vmax.f32 %v2149, 0.0
        %v2364 = vmax.f32 %v2154, 0.0
        %v2365 = vmax.f32 %v2157, 0.0
        %v2366 = vmax.f32 %v2162, 0.0
        %v2367 = vmax.f32 %v2165, 0.0
        %v2368 = vmax.f32 %v2170, 0.0
        %v2369 = vmax.f32 %v2173, 0.0
        %v2370 = vmax.f32 %v2178, 0.0
        %v2371 = vmax.f32 %v2181, 0.0
        %v2372 = vmax.f32 %v2186, 0.0
        %v2373 = vmax.f32 %v2189, 0.0
        %v2374 = vmax.f32 %v2194, 0.0
        %v2375 = vmax.f32 %v2197, 0.0
        %v2376 = vmax.f32 %v2202, 0.0
        %v2377 = vmax.f32 %v2205, 0.0
        %v2378 = vmax.f32 %v2210, 0.0
        %v2379 = vmax.f32 %v2213, 0.0
        %v2380 = vmax.f32 %v2218, 0.0
        %v2381 = vmax.f32 %v2221, 0.0
        %v2382 = vmax.f32 %v2226, 0.0
        %v2383 = vmax.f32 %v2229, 0.0
        %v2384 = vmax.f32 %v2234, 0.0
        %v2385 = vmax.f32 %v2237, 0.0
        %v2386 = vmax.f32 %v2242, 0.0
        %v2387 = vmax.f32 %v2245, 0.0
        %v2388 = vmax.f32 %v2250, 0.0
        %v2389 = vmax.f32 %v2253, 0.0
        %v2390 = vmax.f32 %v2258, 0.0
        %v2391 = vmax.f32 %v2261, 0.0
        %v2392 = vpack.c.bf16 %v2265, %v2264
        %v2393 = vpack.c.bf16 %v2267, %v2266
        %v2394 = vpack.c.bf16 %v2269, %v2268
        %v2395 = vpack.c.bf16 %v2271, %v2270
        %v2396 = vpack.c.bf16 %v2273, %v2272
        %v2397 = vpack.c.bf16 %v2275, %v2274
        %v2398 = vpack.c.bf16 %v2277, %v2276
        %v2399 = vpack.c.bf16 %v2279, %v2278
        %v2400 = vpack.c.bf16 %v2281, %v2280
        %v2401 = vpack.c.bf16 %v2283, %v2282
        %v2402 = vpack.c.bf16 %v2285, %v2284
        %v2403 = vpack.c.bf16 %v2287, %v2286
        %v2404 = vpack.c.bf16 %v2289, %v2288
        %v2405 = vpack.c.bf16 %v2291, %v2290
        %v2406 = vpack.c.bf16 %v2293, %v2292
        %v2407 = vpack.c.bf16 %v2295, %v2294
        %v2408 = vpack.c.bf16 %v2297, %v2296
        %v2409 = vpack.c.bf16 %v2299, %v2298
        %v2410 = vpack.c.bf16 %v2301, %v2300
        %v2411 = vpack.c.bf16 %v2303, %v2302
        %v2412 = vpack.c.bf16 %v2305, %v2304
        %v2413 = vpack.c.bf16 %v2307, %v2306
        %v2414 = vpack.c.bf16 %v2309, %v2308
        %v2415 = vpack.c.bf16 %v2311, %v2310
        %v2416 = vpack.c.bf16 %v2313, %v2312
        %v2417 = vpack.c.bf16 %v2315, %v2314
        %v2418 = vpack.c.bf16 %v2317, %v2316
        %v2419 = vpack.c.bf16 %v2319, %v2318
        %v2420 = vpack.c.bf16 %v2321, %v2320
        %v2421 = vpack.c.bf16 %v2323, %v2322
        %v2422 = vpack.c.bf16 %v2325, %v2324
        %v2423 = vpack.c.bf16 %v2327, %v2326
        %v2424 = vpack.c.bf16 %v2329, %v2328
        %v2425 = vpack.c.bf16 %v2331, %v2330
        %v2426 = vpack.c.bf16 %v2333, %v2332
        %v2427 = vpack.c.bf16 %v2335, %v2334
        %v2428 = vpack.c.bf16 %v2337, %v2336
        %v2429 = vpack.c.bf16 %v2339, %v2338
        %v2430 = vpack.c.bf16 %v2341, %v2340
        %v2431 = vpack.c.bf16 %v2343, %v2342
        %v2432 = vpack.c.bf16 %v2345, %v2344
        %v2433 = vpack.c.bf16 %v2347, %v2346
        %v2434 = vpack.c.bf16 %v2349, %v2348
        %v2435 = vpack.c.bf16 %v2351, %v2350
        %v2436 = vpack.c.bf16 %v2353, %v2352
        %v2437 = vpack.c.bf16 %v2355, %v2354
        %v2438 = vpack.c.bf16 %v2357, %v2356
        %v2439 = vpack.c.bf16 %v2359, %v2358
        %v2440 = vpack.c.bf16 %v2361, %v2360
        %v2441 = vpack.c.bf16 %v2363, %v2362
        %v2442 = vpack.c.bf16 %v2365, %v2364
        %v2443 = vpack.c.bf16 %v2367, %v2366
        %v2444 = vpack.c.bf16 %v2369, %v2368
        %v2445 = vpack.c.bf16 %v2371, %v2370
        %v2446 = vpack.c.bf16 %v2373, %v2372
        %v2447 = vpack.c.bf16 %v2375, %v2374
        %v2448 = vpack.c.bf16 %v2377, %v2376
        %v2449 = vpack.c.bf16 %v2379, %v2378
        %v2450 = vpack.c.bf16 %v2381, %v2380
        %v2451 = vpack.c.bf16 %v2383, %v2382
        %v2452 = vpack.c.bf16 %v2385, %v2384
        %v2453 = vpack.c.bf16 %v2387, %v2386
        %v2454 = vpack.c.bf16 %v2389, %v2388
        %v2455 = vpack.c.bf16 %v2391, %v2390
        %v2456 = vld [vmem:[%s5] sm:$0xff]
        %v2457 = vld [vmem:[%s5 + $0x8] sm:$0xff]
        %v2458 = vld [vmem:[%s5 + $0x10] sm:$0xff]
        %v2459 = vld [vmem:[%s5 + $0x18] sm:$0xff]
        %v2460 = vld [vmem:[%s5 + $0x20] sm:$0xff]
        %v2461 = vld [vmem:[%s5 + $0x28] sm:$0xff]
        %v2462 = vld [vmem:[%s5 + $0x30] sm:$0xff]
        %v2463 = vld [vmem:[%s5 + $0x38] sm:$0xff]
        %v2464 = vld [vmem:[%s5 + $0x40] sm:$0xff]
        %v2465 = vld [vmem:[%s5 + $0x48] sm:$0xff]
        %v2466 = vld [vmem:[%s5 + $0x50] sm:$0xff]
        %v2467 = vld [vmem:[%s5 + $0x58] sm:$0xff]
        %v2468 = vld [vmem:[%s5 + $0x60] sm:$0xff]
        %v2469 = vld [vmem:[%s5 + $0x68] sm:$0xff]
        %v2470 = vld [vmem:[%s5 + $0x70] sm:$0xff]
        %v2471 = vld [vmem:[%s5 + $0x78] sm:$0xff]
        %v2472 = vld [vmem:[#allocation7] sm:$0x3]
        %v2474 = vlaneseq
        %v2475 = vshrl.u32 %v2474, 7
        %v2476 = vsub.s32 0, %v2475
        %v2477 = vrot.slane %v2472, %v2476
        %v2478 = vlaneseq
        %v2479 = vshrl.u32 %v2478, 7
        %v2480 = vsub.s32 1, %v2479
        %v2481 = vrot.slane %v2472, %v2480
        %v2500 = vunpack.c.l.b16 %v2456
        %v2501 = vunpack.c.h.b16 %v2456
        %v2502 = vunpack.c.l.b16 %v2457
        %v2503 = vunpack.c.h.b16 %v2457
        %v2504 = vunpack.c.l.b16 %v2458
        %v2505 = vunpack.c.h.b16 %v2458
        %v2506 = vunpack.c.l.b16 %v2459
        %v2507 = vunpack.c.h.b16 %v2459
        %v2508 = vunpack.c.l.b16 %v2460
        %v2509 = vunpack.c.h.b16 %v2460
        %v2510 = vunpack.c.l.b16 %v2461
        %v2511 = vunpack.c.h.b16 %v2461
        %v2512 = vunpack.c.l.b16 %v2462
        %v2513 = vunpack.c.h.b16 %v2462
        %v2514 = vunpack.c.l.b16 %v2463
        %v2515 = vunpack.c.h.b16 %v2463
        %v2516 = vunpack.c.l.b16 %v2464
        %v2517 = vunpack.c.h.b16 %v2464
        %v2518 = vunpack.c.l.b16 %v2465
        %v2519 = vunpack.c.h.b16 %v2465
        %v2520 = vunpack.c.l.b16 %v2466
        %v2521 = vunpack.c.h.b16 %v2466
        %v2522 = vunpack.c.l.b16 %v2467
        %v2523 = vunpack.c.h.b16 %v2467
        %v2524 = vunpack.c.l.b16 %v2468
        %v2525 = vunpack.c.h.b16 %v2468
        %v2526 = vunpack.c.l.b16 %v2469
        %v2527 = vunpack.c.h.b16 %v2469
        %v2528 = vunpack.c.l.b16 %v2470
        %v2529 = vunpack.c.h.b16 %v2470
        %v2530 = vunpack.c.l.b16 %v2471
        %v2531 = vunpack.c.h.b16 %v2471
        %v2532 = vpack.c.b16 %v2502, %v2500
        %v2533 = vpack.c.b16 %v2503, %v2501
        %v2534 = vpack.c.b16 %v2506, %v2504
        %v2535 = vpack.c.b16 %v2507, %v2505
        %v2536 = vpack.c.b16 %v2510, %v2508
        %v2537 = vpack.c.b16 %v2511, %v2509
        %v2538 = vpack.c.b16 %v2514, %v2512
        %v2539 = vpack.c.b16 %v2515, %v2513
        %v2540 = vpack.c.b16 %v2518, %v2516
        %v2541 = vpack.c.b16 %v2519, %v2517
        %v2542 = vpack.c.b16 %v2522, %v2520
        %v2543 = vpack.c.b16 %v2523, %v2521
        %v2544 = vpack.c.b16 %v2526, %v2524
        %v2545 = vpack.c.b16 %v2527, %v2525
        %v2546 = vpack.c.b16 %v2530, %v2528
        %v2547 = vpack.c.b16 %v2531, %v2529
        %2564 = vmatprep.subr.bf16.mxu0 %v2533
        %2565 = vmatpush1.bf16.msra.mxu0 %v2532
        %2566 = vmatprep.subr.bf16.mxu0 %v2535
        %2567 = vmatpush1.bf16.msra.mxu0 %v2534
        %2568 = vmatprep.subr.bf16.mxu0 %v2537
        %2569 = vmatpush1.bf16.msra.mxu0 %v2536
        %2570 = vmatprep.subr.bf16.mxu0 %v2539
        %2571 = vmatpush1.bf16.msra.mxu0 %v2538
        %2572 = vmatprep.subr.bf16.mxu0 %v2541
        %2573 = vmatpush1.bf16.msra.mxu0 %v2540
        %2574 = vmatprep.subr.bf16.mxu0 %v2543
        %2575 = vmatpush1.bf16.msra.mxu0 %v2542
        %2576 = vmatprep.subr.bf16.mxu0 %v2545
        %2577 = vmatpush1.bf16.msra.mxu0 %v2544
        %2578 = vmatprep.subr.bf16.mxu0 %v2547
        %2579 = vmatpush1.bf16.msra.mxu0 %v2546
        %2580 = vmatprep.subr.bf16.mxu0 0
        %2581 = vmatpush1.bf16.msra.mxu0 0
        %2582 = vmatprep.subr.bf16.mxu0 0
        %2583 = vmatpush1.bf16.msra.mxu0 0
        %2584 = vmatprep.subr.bf16.mxu0 0
        %2585 = vmatpush1.bf16.msra.mxu0 0
        %2586 = vmatprep.subr.bf16.mxu0 0
        %2587 = vmatpush1.bf16.msra.mxu0 0
        %2588 = vmatprep.subr.bf16.mxu0 0
        %2589 = vmatpush1.bf16.msra.mxu0 0
        %2590 = vmatprep.subr.bf16.mxu0 0
        %2591 = vmatpush1.bf16.msra.mxu0 0
        %2592 = vmatprep.subr.bf16.mxu0 0
        %2593 = vmatpush1.bf16.msra.mxu0 0
        %2594 = vmatprep.subr.bf16.mxu0 0
        %2595 = vmatpush1.bf16.msra.mxu0 0
        %2596 = vmatprep.mubr.bf16.mxu0 0
        %2597 = vmatmul.mubr.bf16.gmra.mrb[0].mxu0 %v2392
        %v2598 = vpop.f32.mrb[0].mxu0
        %v2599 = vadd.f32 %v2477, %v2598
        %v2600 = vpop.f32.mrb[0].mxu0
        %v2601 = vadd.f32 %v2481, %v2600
        %v2602 = vpop.f32.mrb[0].mxu0
        %v2603 = vadd.f32 %v2477, %v2602
        %v2604 = vpop.f32.mrb[0].mxu0
        %v2605 = vadd.f32 %v2481, %v2604
        %2606 = vmatprep.mubr.bf16.mxu0 0
        %2607 = vmatmul.mubr.bf16.gmra.mrb[0].mxu0 %v2393
        %v2608 = vpop.f32.mrb[0].mxu0
        %v2609 = vadd.f32 %v2477, %v2608
        %v2610 = vpop.f32.mrb[0].mxu0
        %v2611 = vadd.f32 %v2481, %v2610
        %v2612 = vpop.f32.mrb[0].mxu0
        %v2613 = vadd.f32 %v2477, %v2612
        %v2614 = vpop.f32.mrb[0].mxu0
        %v2615 = vadd.f32 %v2481, %v2614
        %2616 = vmatprep.mubr.bf16.mxu0 0
        %2617 = vmatmul.mubr.bf16.gmra.mrb[0].mxu0 %v2394
        %v2618 = vpop.f32.mrb[0].mxu0
        %v2619 = vadd.f32 %v2477, %v2618
        %v2620 = vpop.f32.mrb[0].mxu0
        %v2621 = vadd.f32 %v2481, %v2620
        %v2622 = vpop.f32.mrb[0].mxu0
        %v2623 = vadd.f32 %v2477, %v2622
        %v2624 = vpop.f32.mrb[0].mxu0
        %v2625 = vadd.f32 %v2481, %v2624
        %2626 = vmatprep.mubr.bf16.mxu0 0
        %2627 = vmatmul.mubr.bf16.gmra.mrb[0].mxu0 %v2395
        %v2628 = vpop.f32.mrb[0].mxu0
        %v2629 = vadd.f32 %v2477, %v2628
        %v2630 = vpop.f32.mrb[0].mxu0
        %v2631 = vadd.f32 %v2481, %v2630
        %v2632 = vpop.f32.mrb[0].mxu0
        %v2633 = vadd.f32 %v2477, %v2632
        %v2634 = vpop.f32.mrb[0].mxu0
        %v2635 = vadd.f32 %v2481, %v2634
        %2636 = vmatprep.mubr.bf16.mxu0 0
        %2637 = vmatmul.mubr.bf16.gmra.mrb[0].mxu0 %v2396
        %v2638 = vpop.f32.mrb[0].mxu0
        %v2639 = vadd.f32 %v2477, %v2638
        %v2640 = vpop.f32.mrb[0].mxu0
        %v2641 = vadd.f32 %v2481, %v2640
        %v2642 = vpop.f32.mrb[0].mxu0
        %v2643 = vadd.f32 %v2477, %v2642
        %v2644 = vpop.f32.mrb[0].mxu0
        %v2645 = vadd.f32 %v2481, %v2644
        %2646 = vmatprep.mubr.bf16.mxu0 0
        %2647 = vmatmul.mubr.bf16.gmra.mrb[0].mxu0 %v2397
        %v2648 = vpop.f32.mrb[0].mxu0
        %v2649 = vadd.f32 %v2477, %v2648
        %v2650 = vpop.f32.mrb[0].mxu0
        %v2651 = vadd.f32 %v2481, %v2650
        %v2652 = vpop.f32.mrb[0].mxu0
        %v2653 = vadd.f32 %v2477, %v2652
        %v2654 = vpop.f32.mrb[0].mxu0
        %v2655 = vadd.f32 %v2481, %v2654
        %2656 = vmatprep.mubr.bf16.mxu0 0
        %2657 = vmatmul.mubr.bf16.gmra.mrb[0].mxu0 %v2398
        %v2658 = vpop.f32.mrb[0].mxu0
        %v2659 = vadd.f32 %v2477, %v2658
        %v2660 = vpop.f32.mrb[0].mxu0
        %v2661 = vadd.f32 %v2481, %v2660
        %v2662 = vpop.f32.mrb[0].mxu0
        %v2663 = vadd.f32 %v2477, %v2662
        %v2664 = vpop.f32.mrb[0].mxu0
        %v2665 = vadd.f32 %v2481, %v2664
        %2666 = vmatprep.mubr.bf16.mxu0 0
        %2667 = vmatmul.mubr.bf16.gmra.mrb[0].mxu0 %v2399
        %v2668 = vpop.f32.mrb[0].mxu0
        %v2669 = vadd.f32 %v2477, %v2668
        %v2670 = vpop.f32.mrb[0].mxu0
        %v2671 = vadd.f32 %v2481, %v2670
        %v2672 = vpop.f32.mrb[0].mxu0
        %v2673 = vadd.f32 %v2477, %v2672
        %v2674 = vpop.f32.mrb[0].mxu0
        %v2675 = vadd.f32 %v2481, %v2674
        %2676 = vmatprep.mubr.bf16.mxu0 0
        %2677 = vmatmul.mubr.bf16.gmra.mrb[0].mxu0 %v2400
        %v2678 = vpop.f32.mrb[0].mxu0
        %v2679 = vadd.f32 %v2477, %v2678
        %v2680 = vpop.f32.mrb[0].mxu0
        %v2681 = vadd.f32 %v2481, %v2680
        %v2682 = vpop.f32.mrb[0].mxu0
        %v2683 = vadd.f32 %v2477, %v2682
        %v2684 = vpop.f32.mrb[0].mxu0
        %v2685 = vadd.f32 %v2481, %v2684
        %2686 = vmatprep.mubr.bf16.mxu0 0
        %2687 = vmatmul.mubr.bf16.gmra.mrb[0].mxu0 %v2401
        %v2688 = vpop.f32.mrb[0].mxu0
        %v2689 = vadd.f32 %v2477, %v2688
        %v2690 = vpop.f32.mrb[0].mxu0
        %v2691 = vadd.f32 %v2481, %v2690
        %v2692 = vpop.f32.mrb[0].mxu0
        %v2693 = vadd.f32 %v2477, %v2692
        %v2694 = vpop.f32.mrb[0].mxu0
        %v2695 = vadd.f32 %v2481, %v2694
        %2696 = vmatprep.mubr.bf16.mxu0 0
        %2697 = vmatmul.mubr.bf16.gmra.mrb[0].mxu0 %v2402
        %v2698 = vpop.f32.mrb[0].mxu0
        %v2699 = vadd.f32 %v2477, %v2698
        %v2700 = vpop.f32.mrb[0].mxu0
        %v2701 = vadd.f32 %v2481, %v2700
        %v2702 = vpop.f32.mrb[0].mxu0
        %v2703 = vadd.f32 %v2477, %v2702
        %v2704 = vpop.f32.mrb[0].mxu0
        %v2705 = vadd.f32 %v2481, %v2704
        %2706 = vmatprep.mubr.bf16.mxu0 0
        %2707 = vmatmul.mubr.bf16.gmra.mrb[0].mxu0 %v2403
        %v2708 = vpop.f32.mrb[0].mxu0
        %v2709 = vadd.f32 %v2477, %v2708
        %v2710 = vpop.f32.mrb[0].mxu0
        %v2711 = vadd.f32 %v2481, %v2710
        %v2712 = vpop.f32.mrb[0].mxu0
        %v2713 = vadd.f32 %v2477, %v2712
        %v2714 = vpop.f32.mrb[0].mxu0
        %v2715 = vadd.f32 %v2481, %v2714
        %2716 = vmatprep.mubr.bf16.mxu0 0
        %2717 = vmatmul.mubr.bf16.gmra.mrb[0].mxu0 %v2404
        %v2718 = vpop.f32.mrb[0].mxu0
        %v2719 = vadd.f32 %v2477, %v2718
        %v2720 = vpop.f32.mrb[0].mxu0
        %v2721 = vadd.f32 %v2481, %v2720
        %v2722 = vpop.f32.mrb[0].mxu0
        %v2723 = vadd.f32 %v2477, %v2722
        %v2724 = vpop.f32.mrb[0].mxu0
        %v2725 = vadd.f32 %v2481, %v2724
        %2726 = vmatprep.mubr.bf16.mxu0 0
        %2727 = vmatmul.mubr.bf16.gmra.mrb[0].mxu0 %v2405
        %v2728 = vpop.f32.mrb[0].mxu0
        %v2729 = vadd.f32 %v2477, %v2728
        %v2730 = vpop.f32.mrb[0].mxu0
        %v2731 = vadd.f32 %v2481, %v2730
        %v2732 = vpop.f32.mrb[0].mxu0
        %v2733 = vadd.f32 %v2477, %v2732
        %v2734 = vpop.f32.mrb[0].mxu0
        %v2735 = vadd.f32 %v2481, %v2734
        %2736 = vmatprep.mubr.bf16.mxu0 0
        %2737 = vmatmul.mubr.bf16.gmra.mrb[0].mxu0 %v2406
        %v2738 = vpop.f32.mrb[0].mxu0
        %v2739 = vadd.f32 %v2477, %v2738
        %v2740 = vpop.f32.mrb[0].mxu0
        %v2741 = vadd.f32 %v2481, %v2740
        %v2742 = vpop.f32.mrb[0].mxu0
        %v2743 = vadd.f32 %v2477, %v2742
        %v2744 = vpop.f32.mrb[0].mxu0
        %v2745 = vadd.f32 %v2481, %v2744
        %2746 = vmatprep.mubr.bf16.mxu0 0
        %2747 = vmatmul.mubr.bf16.gmra.mrb[0].mxu0 %v2407
        %v2748 = vpop.f32.mrb[0].mxu0
        %v2749 = vadd.f32 %v2477, %v2748
        %v2750 = vpop.f32.mrb[0].mxu0
        %v2751 = vadd.f32 %v2481, %v2750
        %v2752 = vpop.f32.mrb[0].mxu0
        %v2753 = vadd.f32 %v2477, %v2752
        %v2754 = vpop.f32.mrb[0].mxu0
        %v2755 = vadd.f32 %v2481, %v2754
        %2756 = vmatprep.mubr.bf16.mxu0 0
        %2757 = vmatmul.mubr.bf16.gmra.mrb[0].mxu0 %v2408
        %v2758 = vpop.f32.mrb[0].mxu0
        %v2759 = vadd.f32 %v2477, %v2758
        %v2760 = vpop.f32.mrb[0].mxu0
        %v2761 = vadd.f32 %v2481, %v2760
        %v2762 = vpop.f32.mrb[0].mxu0
        %v2763 = vadd.f32 %v2477, %v2762
        %v2764 = vpop.f32.mrb[0].mxu0
        %v2765 = vadd.f32 %v2481, %v2764
        %2766 = vmatprep.mubr.bf16.mxu0 0
        %2767 = vmatmul.mubr.bf16.gmra.mrb[0].mxu0 %v2409
        %v2768 = vpop.f32.mrb[0].mxu0
        %v2769 = vadd.f32 %v2477, %v2768
        %v2770 = vpop.f32.mrb[0].mxu0
        %v2771 = vadd.f32 %v2481, %v2770
        %v2772 = vpop.f32.mrb[0].mxu0
        %v2773 = vadd.f32 %v2477, %v2772
        %v2774 = vpop.f32.mrb[0].mxu0
        %v2775 = vadd.f32 %v2481, %v2774
        %2776 = vmatprep.mubr.bf16.mxu0 0
        %2777 = vmatmul.mubr.bf16.gmra.mrb[0].mxu0 %v2410
        %v2778 = vpop.f32.mrb[0].mxu0
        %v2779 = vadd.f32 %v2477, %v2778
        %v2780 = vpop.f32.mrb[0].mxu0
        %v2781 = vadd.f32 %v2481, %v2780
        %v2782 = vpop.f32.mrb[0].mxu0
        %v2783 = vadd.f32 %v2477, %v2782
        %v2784 = vpop.f32.mrb[0].mxu0
        %v2785 = vadd.f32 %v2481, %v2784
        %2786 = vmatprep.mubr.bf16.mxu0 0
        %2787 = vmatmul.mubr.bf16.gmra.mrb[0].mxu0 %v2411
        %v2788 = vpop.f32.mrb[0].mxu0
        %v2789 = vadd.f32 %v2477, %v2788
        %v2790 = vpop.f32.mrb[0].mxu0
        %v2791 = vadd.f32 %v2481, %v2790
        %v2792 = vpop.f32.mrb[0].mxu0
        %v2793 = vadd.f32 %v2477, %v2792
        %v2794 = vpop.f32.mrb[0].mxu0
        %v2795 = vadd.f32 %v2481, %v2794
        %2796 = vmatprep.mubr.bf16.mxu0 0
        %2797 = vmatmul.mubr.bf16.gmra.mrb[0].mxu0 %v2412
        %v2798 = vpop.f32.mrb[0].mxu0
        %v2799 = vadd.f32 %v2477, %v2798
        %v2800 = vpop.f32.mrb[0].mxu0
        %v2801 = vadd.f32 %v2481, %v2800
        %v2802 = vpop.f32.mrb[0].mxu0
        %v2803 = vadd.f32 %v2477, %v2802
        %v2804 = vpop.f32.mrb[0].mxu0
        %v2805 = vadd.f32 %v2481, %v2804
        %2806 = vmatprep.mubr.bf16.mxu0 0
        %2807 = vmatmul.mubr.bf16.gmra.mrb[0].mxu0 %v2413
        %v2808 = vpop.f32.mrb[0].mxu0
        %v2809 = vadd.f32 %v2477, %v2808
        %v2810 = vpop.f32.mrb[0].mxu0
        %v2811 = vadd.f32 %v2481, %v2810
        %v2812 = vpop.f32.mrb[0].mxu0
        %v2813 = vadd.f32 %v2477, %v2812
        %v2814 = vpop.f32.mrb[0].mxu0
        %v2815 = vadd.f32 %v2481, %v2814
        %2816 = vmatprep.mubr.bf16.mxu0 0
        %2817 = vmatmul.mubr.bf16.gmra.mrb[0].mxu0 %v2414
        %v2818 = vpop.f32.mrb[0].mxu0
        %v2819 = vadd.f32 %v2477, %v2818
        %v2820 = vpop.f32.mrb[0].mxu0
        %v2821 = vadd.f32 %v2481, %v2820
        %v2822 = vpop.f32.mrb[0].mxu0
        %v2823 = vadd.f32 %v2477, %v2822
        %v2824 = vpop.f32.mrb[0].mxu0
        %v2825 = vadd.f32 %v2481, %v2824
        %2826 = vmatprep.mubr.bf16.mxu0 0
        %2827 = vmatmul.mubr.bf16.gmra.mrb[0].mxu0 %v2415
        %v2828 = vpop.f32.mrb[0].mxu0
        %v2829 = vadd.f32 %v2477, %v2828
        %v2830 = vpop.f32.mrb[0].mxu0
        %v2831 = vadd.f32 %v2481, %v2830
        %v2832 = vpop.f32.mrb[0].mxu0
        %v2833 = vadd.f32 %v2477, %v2832
        %v2834 = vpop.f32.mrb[0].mxu0
        %v2835 = vadd.f32 %v2481, %v2834
        %2836 = vmatprep.mubr.bf16.mxu0 0
        %2837 = vmatmul.mubr.bf16.gmra.mrb[0].mxu0 %v2416
        %v2838 = vpop.f32.mrb[0].mxu0
        %v2839 = vadd.f32 %v2477, %v2838
        %v2840 = vpop.f32.mrb[0].mxu0
        %v2841 = vadd.f32 %v2481, %v2840
        %v2842 = vpop.f32.mrb[0].mxu0
        %v2843 = vadd.f32 %v2477, %v2842
        %v2844 = vpop.f32.mrb[0].mxu0
        %v2845 = vadd.f32 %v2481, %v2844
        %2846 = vmatprep.mubr.bf16.mxu0 0
        %2847 = vmatmul.mubr.bf16.gmra.mrb[0].mxu0 %v2417
        %v2848 = vpop.f32.mrb[0].mxu0
        %v2849 = vadd.f32 %v2477, %v2848
        %v2850 = vpop.f32.mrb[0].mxu0
        %v2851 = vadd.f32 %v2481, %v2850
        %v2852 = vpop.f32.mrb[0].mxu0
        %v2853 = vadd.f32 %v2477, %v2852
        %v2854 = vpop.f32.mrb[0].mxu0
        %v2855 = vadd.f32 %v2481, %v2854
        %2856 = vmatprep.mubr.bf16.mxu0 0
        %2857 = vmatmul.mubr.bf16.gmra.mrb[0].mxu0 %v2418
        %v2858 = vpop.f32.mrb[0].mxu0
        %v2859 = vadd.f32 %v2477, %v2858
        %v2860 = vpop.f32.mrb[0].mxu0
        %v2861 = vadd.f32 %v2481, %v2860
        %v2862 = vpop.f32.mrb[0].mxu0
        %v2863 = vadd.f32 %v2477, %v2862
        %v2864 = vpop.f32.mrb[0].mxu0
        %v2865 = vadd.f32 %v2481, %v2864
        %2866 = vmatprep.mubr.bf16.mxu0 0
        %2867 = vmatmul.mubr.bf16.gmra.mrb[0].mxu0 %v2419
        %v2868 = vpop.f32.mrb[0].mxu0
        %v2869 = vadd.f32 %v2477, %v2868
        %v2870 = vpop.f32.mrb[0].mxu0
        %v2871 = vadd.f32 %v2481, %v2870
        %v2872 = vpop.f32.mrb[0].mxu0
        %v2873 = vadd.f32 %v2477, %v2872
        %v2874 = vpop.f32.mrb[0].mxu0
        %v2875 = vadd.f32 %v2481, %v2874
        %2876 = vmatprep.mubr.bf16.mxu0 0
        %2877 = vmatmul.mubr.bf16.gmra.mrb[0].mxu0 %v2420
        %v2878 = vpop.f32.mrb[0].mxu0
        %v2879 = vadd.f32 %v2477, %v2878
        %v2880 = vpop.f32.mrb[0].mxu0
        %v2881 = vadd.f32 %v2481, %v2880
        %v2882 = vpop.f32.mrb[0].mxu0
        %v2883 = vadd.f32 %v2477, %v2882
        %v2884 = vpop.f32.mrb[0].mxu0
        %v2885 = vadd.f32 %v2481, %v2884
        %2886 = vmatprep.mubr.bf16.mxu0 0
        %2887 = vmatmul.mubr.bf16.gmra.mrb[0].mxu0 %v2421
        %v2888 = vpop.f32.mrb[0].mxu0
        %v2889 = vadd.f32 %v2477, %v2888
        %v2890 = vpop.f32.mrb[0].mxu0
        %v2891 = vadd.f32 %v2481, %v2890
        %v2892 = vpop.f32.mrb[0].mxu0
        %v2893 = vadd.f32 %v2477, %v2892
        %v2894 = vpop.f32.mrb[0].mxu0
        %v2895 = vadd.f32 %v2481, %v2894
        %2896 = vmatprep.mubr.bf16.mxu0 0
        %2897 = vmatmul.mubr.bf16.gmra.mrb[0].mxu0 %v2422
        %v2898 = vpop.f32.mrb[0].mxu0
        %v2899 = vadd.f32 %v2477, %v2898
        %v2900 = vpop.f32.mrb[0].mxu0
        %v2901 = vadd.f32 %v2481, %v2900
        %v2902 = vpop.f32.mrb[0].mxu0
        %v2903 = vadd.f32 %v2477, %v2902
        %v2904 = vpop.f32.mrb[0].mxu0
        %v2905 = vadd.f32 %v2481, %v2904
        %2906 = vmatprep.mubr.bf16.mxu0 0
        %2907 = vmatmul.mubr.bf16.gmra.mrb[0].mxu0 %v2423
        %v2908 = vpop.f32.mrb[0].mxu0
        %v2909 = vadd.f32 %v2477, %v2908
        %v2910 = vpop.f32.mrb[0].mxu0
        %v2911 = vadd.f32 %v2481, %v2910
        %v2912 = vpop.f32.mrb[0].mxu0
        %v2913 = vadd.f32 %v2477, %v2912
        %v2914 = vpop.f32.mrb[0].mxu0
        %v2915 = vadd.f32 %v2481, %v2914
        %2916 = vmatprep.mubr.bf16.mxu0 0
        %2917 = vmatmul.mubr.bf16.gmra.mrb[0].mxu0 %v2424
        %v2918 = vpop.f32.mrb[0].mxu0
        %v2919 = vadd.f32 %v2477, %v2918
        %v2920 = vpop.f32.mrb[0].mxu0
        %v2921 = vadd.f32 %v2481, %v2920
        %v2922 = vpop.f32.mrb[0].mxu0
        %v2923 = vadd.f32 %v2477, %v2922
        %v2924 = vpop.f32.mrb[0].mxu0
        %v2925 = vadd.f32 %v2481, %v2924
        %2926 = vmatprep.mubr.bf16.mxu0 0
        %2927 = vmatmul.mubr.bf16.gmra.mrb[0].mxu0 %v2425
        %v2928 = vpop.f32.mrb[0].mxu0
        %v2929 = vadd.f32 %v2477, %v2928
        %v2930 = vpop.f32.mrb[0].mxu0
        %v2931 = vadd.f32 %v2481, %v2930
        %v2932 = vpop.f32.mrb[0].mxu0
        %v2933 = vadd.f32 %v2477, %v2932
        %v2934 = vpop.f32.mrb[0].mxu0
        %v2935 = vadd.f32 %v2481, %v2934
        %2936 = vmatprep.mubr.bf16.mxu0 0
        %2937 = vmatmul.mubr.bf16.gmra.mrb[0].mxu0 %v2426
        %v2938 = vpop.f32.mrb[0].mxu0
        %v2939 = vadd.f32 %v2477, %v2938
        %v2940 = vpop.f32.mrb[0].mxu0
        %v2941 = vadd.f32 %v2481, %v2940
        %v2942 = vpop.f32.mrb[0].mxu0
        %v2943 = vadd.f32 %v2477, %v2942
        %v2944 = vpop.f32.mrb[0].mxu0
        %v2945 = vadd.f32 %v2481, %v2944
        %2946 = vmatprep.mubr.bf16.mxu0 0
        %2947 = vmatmul.mubr.bf16.gmra.mrb[0].mxu0 %v2427
        %v2948 = vpop.f32.mrb[0].mxu0
        %v2949 = vadd.f32 %v2477, %v2948
        %v2950 = vpop.f32.mrb[0].mxu0
        %v2951 = vadd.f32 %v2481, %v2950
        %v2952 = vpop.f32.mrb[0].mxu0
        %v2953 = vadd.f32 %v2477, %v2952
        %v2954 = vpop.f32.mrb[0].mxu0
        %v2955 = vadd.f32 %v2481, %v2954
        %2956 = vmatprep.mubr.bf16.mxu0 0
        %2957 = vmatmul.mubr.bf16.gmra.mrb[0].mxu0 %v2428
        %v2958 = vpop.f32.mrb[0].mxu0
        %v2959 = vadd.f32 %v2477, %v2958
        %v2960 = vpop.f32.mrb[0].mxu0
        %v2961 = vadd.f32 %v2481, %v2960
        %v2962 = vpop.f32.mrb[0].mxu0
        %v2963 = vadd.f32 %v2477, %v2962
        %v2964 = vpop.f32.mrb[0].mxu0
        %v2965 = vadd.f32 %v2481, %v2964
        %2966 = vmatprep.mubr.bf16.mxu0 0
        %2967 = vmatmul.mubr.bf16.gmra.mrb[0].mxu0 %v2429
        %v2968 = vpop.f32.mrb[0].mxu0
        %v2969 = vadd.f32 %v2477, %v2968
        %v2970 = vpop.f32.mrb[0].mxu0
        %v2971 = vadd.f32 %v2481, %v2970
        %v2972 = vpop.f32.mrb[0].mxu0
        %v2973 = vadd.f32 %v2477, %v2972
        %v2974 = vpop.f32.mrb[0].mxu0
        %v2975 = vadd.f32 %v2481, %v2974
        %2976 = vmatprep.mubr.bf16.mxu0 0
        %2977 = vmatmul.mubr.bf16.gmra.mrb[0].mxu0 %v2430
        %v2978 = vpop.f32.mrb[0].mxu0
        %v2979 = vadd.f32 %v2477, %v2978
        %v2980 = vpop.f32.mrb[0].mxu0
        %v2981 = vadd.f32 %v2481, %v2980
        %v2982 = vpop.f32.mrb[0].mxu0
        %v2983 = vadd.f32 %v2477, %v2982
        %v2984 = vpop.f32.mrb[0].mxu0
        %v2985 = vadd.f32 %v2481, %v2984
        %2986 = vmatprep.mubr.bf16.mxu0 0
        %2987 = vmatmul.mubr.bf16.gmra.mrb[0].mxu0 %v2431
        %v2988 = vpop.f32.mrb[0].mxu0
        %v2989 = vadd.f32 %v2477, %v2988
        %v2990 = vpop.f32.mrb[0].mxu0
        %v2991 = vadd.f32 %v2481, %v2990
        %v2992 = vpop.f32.mrb[0].mxu0
        %v2993 = vadd.f32 %v2477, %v2992
        %v2994 = vpop.f32.mrb[0].mxu0
        %v2995 = vadd.f32 %v2481, %v2994
        %2996 = vmatprep.mubr.bf16.mxu0 0
        %2997 = vmatmul.mubr.bf16.gmra.mrb[0].mxu0 %v2432
        %v2998 = vpop.f32.mrb[0].mxu0
        %v2999 = vadd.f32 %v2477, %v2998
        %v3000 = vpop.f32.mrb[0].mxu0
        %v3001 = vadd.f32 %v2481, %v3000
        %v3002 = vpop.f32.mrb[0].mxu0
        %v3003 = vadd.f32 %v2477, %v3002
        %v3004 = vpop.f32.mrb[0].mxu0
        %v3005 = vadd.f32 %v2481, %v3004
        %3006 = vmatprep.mubr.bf16.mxu0 0
        %3007 = vmatmul.mubr.bf16.gmra.mrb[0].mxu0 %v2433
        %v3008 = vpop.f32.mrb[0].mxu0
        %v3009 = vadd.f32 %v2477, %v3008
        %v3010 = vpop.f32.mrb[0].mxu0
        %v3011 = vadd.f32 %v2481, %v3010
        %v3012 = vpop.f32.mrb[0].mxu0
        %v3013 = vadd.f32 %v2477, %v3012
        %v3014 = vpop.f32.mrb[0].mxu0
        %v3015 = vadd.f32 %v2481, %v3014
        %3016 = vmatprep.mubr.bf16.mxu0 0
        %3017 = vmatmul.mubr.bf16.gmra.mrb[0].mxu0 %v2434
        %v3018 = vpop.f32.mrb[0].mxu0
        %v3019 = vadd.f32 %v2477, %v3018
        %v3020 = vpop.f32.mrb[0].mxu0
        %v3021 = vadd.f32 %v2481, %v3020
        %v3022 = vpop.f32.mrb[0].mxu0
        %v3023 = vadd.f32 %v2477, %v3022
        %v3024 = vpop.f32.mrb[0].mxu0
        %v3025 = vadd.f32 %v2481, %v3024
        %3026 = vmatprep.mubr.bf16.mxu0 0
        %3027 = vmatmul.mubr.bf16.gmra.mrb[0].mxu0 %v2435
        %v3028 = vpop.f32.mrb[0].mxu0
        %v3029 = vadd.f32 %v2477, %v3028
        %v3030 = vpop.f32.mrb[0].mxu0
        %v3031 = vadd.f32 %v2481, %v3030
        %v3032 = vpop.f32.mrb[0].mxu0
        %v3033 = vadd.f32 %v2477, %v3032
        %v3034 = vpop.f32.mrb[0].mxu0
        %v3035 = vadd.f32 %v2481, %v3034
        %3036 = vmatprep.mubr.bf16.mxu0 0
        %3037 = vmatmul.mubr.bf16.gmra.mrb[0].mxu0 %v2436
        %v3038 = vpop.f32.mrb[0].mxu0
        %v3039 = vadd.f32 %v2477, %v3038
        %v3040 = vpop.f32.mrb[0].mxu0
        %v3041 = vadd.f32 %v2481, %v3040
        %v3042 = vpop.f32.mrb[0].mxu0
        %v3043 = vadd.f32 %v2477, %v3042
        %v3044 = vpop.f32.mrb[0].mxu0
        %v3045 = vadd.f32 %v2481, %v3044
        %3046 = vmatprep.mubr.bf16.mxu0 0
        %3047 = vmatmul.mubr.bf16.gmra.mrb[0].mxu0 %v2437
        %v3048 = vpop.f32.mrb[0].mxu0
        %v3049 = vadd.f32 %v2477, %v3048
        %v3050 = vpop.f32.mrb[0].mxu0
        %v3051 = vadd.f32 %v2481, %v3050
        %v3052 = vpop.f32.mrb[0].mxu0
        %v3053 = vadd.f32 %v2477, %v3052
        %v3054 = vpop.f32.mrb[0].mxu0
        %v3055 = vadd.f32 %v2481, %v3054
        %3056 = vmatprep.mubr.bf16.mxu0 0
        %3057 = vmatmul.mubr.bf16.gmra.mrb[0].mxu0 %v2438
        %v3058 = vpop.f32.mrb[0].mxu0
        %v3059 = vadd.f32 %v2477, %v3058
        %v3060 = vpop.f32.mrb[0].mxu0
        %v3061 = vadd.f32 %v2481, %v3060
        %v3062 = vpop.f32.mrb[0].mxu0
        %v3063 = vadd.f32 %v2477, %v3062
        %v3064 = vpop.f32.mrb[0].mxu0
        %v3065 = vadd.f32 %v2481, %v3064
        %3066 = vmatprep.mubr.bf16.mxu0 0
        %3067 = vmatmul.mubr.bf16.gmra.mrb[0].mxu0 %v2439
        %v3068 = vpop.f32.mrb[0].mxu0
        %v3069 = vadd.f32 %v2477, %v3068
        %v3070 = vpop.f32.mrb[0].mxu0
        %v3071 = vadd.f32 %v2481, %v3070
        %v3072 = vpop.f32.mrb[0].mxu0
        %v3073 = vadd.f32 %v2477, %v3072
        %v3074 = vpop.f32.mrb[0].mxu0
        %v3075 = vadd.f32 %v2481, %v3074
        %3076 = vmatprep.mubr.bf16.mxu0 0
        %3077 = vmatmul.mubr.bf16.gmra.mrb[0].mxu0 %v2440
        %v3078 = vpop.f32.mrb[0].mxu0
        %v3079 = vadd.f32 %v2477, %v3078
        %v3080 = vpop.f32.mrb[0].mxu0
        %v3081 = vadd.f32 %v2481, %v3080
        %v3082 = vpop.f32.mrb[0].mxu0
        %v3083 = vadd.f32 %v2477, %v3082
        %v3084 = vpop.f32.mrb[0].mxu0
        %v3085 = vadd.f32 %v2481, %v3084
        %3086 = vmatprep.mubr.bf16.mxu0 0
        %3087 = vmatmul.mubr.bf16.gmra.mrb[0].mxu0 %v2441
        %v3088 = vpop.f32.mrb[0].mxu0
        %v3089 = vadd.f32 %v2477, %v3088
        %v3090 = vpop.f32.mrb[0].mxu0
        %v3091 = vadd.f32 %v2481, %v3090
        %v3092 = vpop.f32.mrb[0].mxu0
        %v3093 = vadd.f32 %v2477, %v3092
        %v3094 = vpop.f32.mrb[0].mxu0
        %v3095 = vadd.f32 %v2481, %v3094
        %3096 = vmatprep.mubr.bf16.mxu0 0
        %3097 = vmatmul.mubr.bf16.gmra.mrb[0].mxu0 %v2442
        %v3098 = vpop.f32.mrb[0].mxu0
        %v3099 = vadd.f32 %v2477, %v3098
        %v3100 = vpop.f32.mrb[0].mxu0
        %v3101 = vadd.f32 %v2481, %v3100
        %v3102 = vpop.f32.mrb[0].mxu0
        %v3103 = vadd.f32 %v2477, %v3102
        %v3104 = vpop.f32.mrb[0].mxu0
        %v3105 = vadd.f32 %v2481, %v3104
        %3106 = vmatprep.mubr.bf16.mxu0 0
        %3107 = vmatmul.mubr.bf16.gmra.mrb[0].mxu0 %v2443
        %v3108 = vpop.f32.mrb[0].mxu0
        %v3109 = vadd.f32 %v2477, %v3108
        %v3110 = vpop.f32.mrb[0].mxu0
        %v3111 = vadd.f32 %v2481, %v3110
        %v3112 = vpop.f32.mrb[0].mxu0
        %v3113 = vadd.f32 %v2477, %v3112
        %v3114 = vpop.f32.mrb[0].mxu0
        %v3115 = vadd.f32 %v2481, %v3114
        %3116 = vmatprep.mubr.bf16.mxu0 0
        %3117 = vmatmul.mubr.bf16.gmra.mrb[0].mxu0 %v2444
        %v3118 = vpop.f32.mrb[0].mxu0
        %v3119 = vadd.f32 %v2477, %v3118
        %v3120 = vpop.f32.mrb[0].mxu0
        %v3121 = vadd.f32 %v2481, %v3120
        %v3122 = vpop.f32.mrb[0].mxu0
        %v3123 = vadd.f32 %v2477, %v3122
        %v3124 = vpop.f32.mrb[0].mxu0
        %v3125 = vadd.f32 %v2481, %v3124
        %3126 = vmatprep.mubr.bf16.mxu0 0
        %3127 = vmatmul.mubr.bf16.gmra.mrb[0].mxu0 %v2445
        %v3128 = vpop.f32.mrb[0].mxu0
        %v3129 = vadd.f32 %v2477, %v3128
        %v3130 = vpop.f32.mrb[0].mxu0
        %v3131 = vadd.f32 %v2481, %v3130
        %v3132 = vpop.f32.mrb[0].mxu0
        %v3133 = vadd.f32 %v2477, %v3132
        %v3134 = vpop.f32.mrb[0].mxu0
        %v3135 = vadd.f32 %v2481, %v3134
        %3136 = vmatprep.mubr.bf16.mxu0 0
        %3137 = vmatmul.mubr.bf16.gmra.mrb[0].mxu0 %v2446
        %v3138 = vpop.f32.mrb[0].mxu0
        %v3139 = vadd.f32 %v2477, %v3138
        %v3140 = vpop.f32.mrb[0].mxu0
        %v3141 = vadd.f32 %v2481, %v3140
        %v3142 = vpop.f32.mrb[0].mxu0
        %v3143 = vadd.f32 %v2477, %v3142
        %v3144 = vpop.f32.mrb[0].mxu0
        %v3145 = vadd.f32 %v2481, %v3144
        %3146 = vmatprep.mubr.bf16.mxu0 0
        %3147 = vmatmul.mubr.bf16.gmra.mrb[0].mxu0 %v2447
        %v3148 = vpop.f32.mrb[0].mxu0
        %v3149 = vadd.f32 %v2477, %v3148
        %v3150 = vpop.f32.mrb[0].mxu0
        %v3151 = vadd.f32 %v2481, %v3150
        %v3152 = vpop.f32.mrb[0].mxu0
        %v3153 = vadd.f32 %v2477, %v3152
        %v3154 = vpop.f32.mrb[0].mxu0
        %v3155 = vadd.f32 %v2481, %v3154
        %3156 = vmatprep.mubr.bf16.mxu0 0
        %3157 = vmatmul.mubr.bf16.gmra.mrb[0].mxu0 %v2448
        %v3158 = vpop.f32.mrb[0].mxu0
        %v3159 = vadd.f32 %v2477, %v3158
        %v3160 = vpop.f32.mrb[0].mxu0
        %v3161 = vadd.f32 %v2481, %v3160
        %v3162 = vpop.f32.mrb[0].mxu0
        %v3163 = vadd.f32 %v2477, %v3162
        %v3164 = vpop.f32.mrb[0].mxu0
        %v3165 = vadd.f32 %v2481, %v3164
        %3166 = vmatprep.mubr.bf16.mxu0 0
        %3167 = vmatmul.mubr.bf16.gmra.mrb[0].mxu0 %v2449
        %v3168 = vpop.f32.mrb[0].mxu0
        %v3169 = vadd.f32 %v2477, %v3168
        %v3170 = vpop.f32.mrb[0].mxu0
        %v3171 = vadd.f32 %v2481, %v3170
        %v3172 = vpop.f32.mrb[0].mxu0
        %v3173 = vadd.f32 %v2477, %v3172
        %v3174 = vpop.f32.mrb[0].mxu0
        %v3175 = vadd.f32 %v2481, %v3174
        %3176 = vmatprep.mubr.bf16.mxu0 0
        %3177 = vmatmul.mubr.bf16.gmra.mrb[0].mxu0 %v2450
        %v3178 = vpop.f32.mrb[0].mxu0
        %v3179 = vadd.f32 %v2477, %v3178
        %v3180 = vpop.f32.mrb[0].mxu0
        %v3181 = vadd.f32 %v2481, %v3180
        %v3182 = vpop.f32.mrb[0].mxu0
        %v3183 = vadd.f32 %v2477, %v3182
        %v3184 = vpop.f32.mrb[0].mxu0
        %v3185 = vadd.f32 %v2481, %v3184
        %3186 = vmatprep.mubr.bf16.mxu0 0
        %3187 = vmatmul.mubr.bf16.gmra.mrb[0].mxu0 %v2451
        %v3188 = vpop.f32.mrb[0].mxu0
        %v3189 = vadd.f32 %v2477, %v3188
        %v3190 = vpop.f32.mrb[0].mxu0
        %v3191 = vadd.f32 %v2481, %v3190
        %v3192 = vpop.f32.mrb[0].mxu0
        %v3193 = vadd.f32 %v2477, %v3192
        %v3194 = vpop.f32.mrb[0].mxu0
        %v3195 = vadd.f32 %v2481, %v3194
        %3196 = vmatprep.mubr.bf16.mxu0 0
        %3197 = vmatmul.mubr.bf16.gmra.mrb[0].mxu0 %v2452
        %v3198 = vpop.f32.mrb[0].mxu0
        %v3199 = vadd.f32 %v2477, %v3198
        %v3200 = vpop.f32.mrb[0].mxu0
        %v3201 = vadd.f32 %v2481, %v3200
        %v3202 = vpop.f32.mrb[0].mxu0
        %v3203 = vadd.f32 %v2477, %v3202
        %v3204 = vpop.f32.mrb[0].mxu0
        %v3205 = vadd.f32 %v2481, %v3204
        %3206 = vmatprep.mubr.bf16.mxu0 0
        %3207 = vmatmul.mubr.bf16.gmra.mrb[0].mxu0 %v2453
        %v3208 = vpop.f32.mrb[0].mxu0
        %v3209 = vadd.f32 %v2477, %v3208
        %v3210 = vpop.f32.mrb[0].mxu0
        %v3211 = vadd.f32 %v2481, %v3210
        %v3212 = vpop.f32.mrb[0].mxu0
        %v3213 = vadd.f32 %v2477, %v3212
        %v3214 = vpop.f32.mrb[0].mxu0
        %v3215 = vadd.f32 %v2481, %v3214
        %3216 = vmatprep.mubr.bf16.mxu0 0
        %3217 = vmatmul.mubr.bf16.gmra.mrb[0].mxu0 %v2454
        %v3218 = vpop.f32.mrb[0].mxu0
        %v3219 = vadd.f32 %v2477, %v3218
        %v3220 = vpop.f32.mrb[0].mxu0
        %v3221 = vadd.f32 %v2481, %v3220
        %v3222 = vpop.f32.mrb[0].mxu0
        %v3223 = vadd.f32 %v2477, %v3222
        %v3224 = vpop.f32.mrb[0].mxu0
        %v3225 = vadd.f32 %v2481, %v3224
        %3226 = vmatprep.mubr.bf16.mxu0 0
        %3227 = vmatmul.mubr.bf16.gmra.mrb[0].mxu0 %v2455
        %v3228 = vpop.f32.mrb[0].mxu0
        %v3229 = vadd.f32 %v2477, %v3228
        %v3230 = vpop.f32.mrb[0].mxu0
        %v3231 = vadd.f32 %v2481, %v3230
        %v3232 = vpop.f32.mrb[0].mxu0
        %v3233 = vadd.f32 %v2477, %v3232
        %v3234 = vpop.f32.mrb[0].mxu0
        %v3235 = vadd.f32 %v2481, %v3234
        %3236 = vdwg.mxu0
        %v3237 = vmax.f32 %v2599, 0.0
        %v3238 = vmax.f32 %v2601, 0.0
        %v3239 = vmax.f32 %v2603, 0.0
        %v3240 = vmax.f32 %v2605, 0.0
        %v3241 = vmax.f32 %v2609, 0.0
        %v3242 = vmax.f32 %v2611, 0.0
        %v3243 = vmax.f32 %v2613, 0.0
        %v3244 = vmax.f32 %v2615, 0.0
        %v3245 = vmax.f32 %v2619, 0.0
        %v3246 = vmax.f32 %v2621, 0.0
        %v3247 = vmax.f32 %v2623, 0.0
        %v3248 = vmax.f32 %v2625, 0.0
        %v3249 = vmax.f32 %v2629, 0.0
        %v3250 = vmax.f32 %v2631, 0.0
        %v3251 = vmax.f32 %v2633, 0.0
        %v3252 = vmax.f32 %v2635, 0.0
        %v3253 = vmax.f32 %v2639, 0.0
        %v3254 = vmax.f32 %v2641, 0.0
        %v3255 = vmax.f32 %v2643, 0.0
        %v3256 = vmax.f32 %v2645, 0.0
        %v3257 = vmax.f32 %v2649, 0.0
        %v3258 = vmax.f32 %v2651, 0.0
        %v3259 = vmax.f32 %v2653, 0.0
        %v3260 = vmax.f32 %v2655, 0.0
        %v3261 = vmax.f32 %v2659, 0.0
        %v3262 = vmax.f32 %v2661, 0.0
        %v3263 = vmax.f32 %v2663, 0.0
        %v3264 = vmax.f32 %v2665, 0.0
        %v3265 = vmax.f32 %v2669, 0.0
        %v3266 = vmax.f32 %v2671, 0.0
        %v3267 = vmax.f32 %v2673, 0.0
        %v3268 = vmax.f32 %v2675, 0.0
        %v3269 = vmax.f32 %v2679, 0.0
        %v3270 = vmax.f32 %v2681, 0.0
        %v3271 = vmax.f32 %v2683, 0.0
        %v3272 = vmax.f32 %v2685, 0.0
        %v3273 = vmax.f32 %v2689, 0.0
        %v3274 = vmax.f32 %v2691, 0.0
        %v3275 = vmax.f32 %v2693, 0.0
        %v3276 = vmax.f32 %v2695, 0.0
        %v3277 = vmax.f32 %v2699, 0.0
        %v3278 = vmax.f32 %v2701, 0.0
        %v3279 = vmax.f32 %v2703, 0.0
        %v3280 = vmax.f32 %v2705, 0.0
        %v3281 = vmax.f32 %v2709, 0.0
        %v3282 = vmax.f32 %v2711, 0.0
        %v3283 = vmax.f32 %v2713, 0.0
        %v3284 = vmax.f32 %v2715, 0.0
        %v3285 = vmax.f32 %v2719, 0.0
        %v3286 = vmax.f32 %v2721, 0.0
        %v3287 = vmax.f32 %v2723, 0.0
        %v3288 = vmax.f32 %v2725, 0.0
        %v3289 = vmax.f32 %v2729, 0.0
        %v3290 = vmax.f32 %v2731, 0.0
        %v3291 = vmax.f32 %v2733, 0.0
        %v3292 = vmax.f32 %v2735, 0.0
        %v3293 = vmax.f32 %v2739, 0.0
        %v3294 = vmax.f32 %v2741, 0.0
        %v3295 = vmax.f32 %v2743, 0.0
        %v3296 = vmax.f32 %v2745, 0.0
        %v3297 = vmax.f32 %v2749, 0.0
        %v3298 = vmax.f32 %v2751, 0.0
        %v3299 = vmax.f32 %v2753, 0.0
        %v3300 = vmax.f32 %v2755, 0.0
        %v3301 = vmax.f32 %v2759, 0.0
        %v3302 = vmax.f32 %v2761, 0.0
        %v3303 = vmax.f32 %v2763, 0.0
        %v3304 = vmax.f32 %v2765, 0.0
        %v3305 = vmax.f32 %v2769, 0.0
        %v3306 = vmax.f32 %v2771, 0.0
        %v3307 = vmax.f32 %v2773, 0.0
        %v3308 = vmax.f32 %v2775, 0.0
        %v3309 = vmax.f32 %v2779, 0.0
        %v3310 = vmax.f32 %v2781, 0.0
        %v3311 = vmax.f32 %v2783, 0.0
        %v3312 = vmax.f32 %v2785, 0.0
        %v3313 = vmax.f32 %v2789, 0.0
        %v3314 = vmax.f32 %v2791, 0.0
        %v3315 = vmax.f32 %v2793, 0.0
        %v3316 = vmax.f32 %v2795, 0.0
        %v3317 = vmax.f32 %v2799, 0.0
        %v3318 = vmax.f32 %v2801, 0.0
        %v3319 = vmax.f32 %v2803, 0.0
        %v3320 = vmax.f32 %v2805, 0.0
        %v3321 = vmax.f32 %v2809, 0.0
        %v3322 = vmax.f32 %v2811, 0.0
        %v3323 = vmax.f32 %v2813, 0.0
        %v3324 = vmax.f32 %v2815, 0.0
        %v3325 = vmax.f32 %v2819, 0.0
        %v3326 = vmax.f32 %v2821, 0.0
        %v3327 = vmax.f32 %v2823, 0.0
        %v3328 = vmax.f32 %v2825, 0.0
        %v3329 = vmax.f32 %v2829, 0.0
        %v3330 = vmax.f32 %v2831, 0.0
        %v3331 = vmax.f32 %v2833, 0.0
        %v3332 = vmax.f32 %v2835, 0.0
        %v3333 = vmax.f32 %v2839, 0.0
        %v3334 = vmax.f32 %v2841, 0.0
        %v3335 = vmax.f32 %v2843, 0.0
        %v3336 = vmax.f32 %v2845, 0.0
        %v3337 = vmax.f32 %v2849, 0.0
        %v3338 = vmax.f32 %v2851, 0.0
        %v3339 = vmax.f32 %v2853, 0.0
        %v3340 = vmax.f32 %v2855, 0.0
        %v3341 = vmax.f32 %v2859, 0.0
        %v3342 = vmax.f32 %v2861, 0.0
        %v3343 = vmax.f32 %v2863, 0.0
        %v3344 = vmax.f32 %v2865, 0.0
        %v3345 = vmax.f32 %v2869, 0.0
        %v3346 = vmax.f32 %v2871, 0.0
        %v3347 = vmax.f32 %v2873, 0.0
        %v3348 = vmax.f32 %v2875, 0.0
        %v3349 = vmax.f32 %v2879, 0.0
        %v3350 = vmax.f32 %v2881, 0.0
        %v3351 = vmax.f32 %v2883, 0.0
        %v3352 = vmax.f32 %v2885, 0.0
        %v3353 = vmax.f32 %v2889, 0.0
        %v3354 = vmax.f32 %v2891, 0.0
        %v3355 = vmax.f32 %v2893, 0.0
        %v3356 = vmax.f32 %v2895, 0.0
        %v3357 = vmax.f32 %v2899, 0.0
        %v3358 = vmax.f32 %v2901, 0.0
        %v3359 = vmax.f32 %v2903, 0.0
        %v3360 = vmax.f32 %v2905, 0.0
        %v3361 = vmax.f32 %v2909, 0.0
        %v3362 = vmax.f32 %v2911, 0.0
        %v3363 = vmax.f32 %v2913, 0.0
        %v3364 = vmax.f32 %v2915, 0.0
        %v3365 = vmax.f32 %v2919, 0.0
        %v3366 = vmax.f32 %v2921, 0.0
        %v3367 = vmax.f32 %v2923, 0.0
        %v3368 = vmax.f32 %v2925, 0.0
        %v3369 = vmax.f32 %v2929, 0.0
        %v3370 = vmax.f32 %v2931, 0.0
        %v3371 = vmax.f32 %v2933, 0.0
        %v3372 = vmax.f32 %v2935, 0.0
        %v3373 = vmax.f32 %v2939, 0.0
        %v3374 = vmax.f32 %v2941, 0.0
        %v3375 = vmax.f32 %v2943, 0.0
        %v3376 = vmax.f32 %v2945, 0.0
        %v3377 = vmax.f32 %v2949, 0.0
        %v3378 = vmax.f32 %v2951, 0.0
        %v3379 = vmax.f32 %v2953, 0.0
        %v3380 = vmax.f32 %v2955, 0.0
        %v3381 = vmax.f32 %v2959, 0.0
        %v3382 = vmax.f32 %v2961, 0.0
        %v3383 = vmax.f32 %v2963, 0.0
        %v3384 = vmax.f32 %v2965, 0.0
        %v3385 = vmax.f32 %v2969, 0.0
        %v3386 = vmax.f32 %v2971, 0.0
        %v3387 = vmax.f32 %v2973, 0.0
        %v3388 = vmax.f32 %v2975, 0.0
        %v3389 = vmax.f32 %v2979, 0.0
        %v3390 = vmax.f32 %v2981, 0.0
        %v3391 = vmax.f32 %v2983, 0.0
        %v3392 = vmax.f32 %v2985, 0.0
        %v3393 = vmax.f32 %v2989, 0.0
        %v3394 = vmax.f32 %v2991, 0.0
        %v3395 = vmax.f32 %v2993, 0.0
        %v3396 = vmax.f32 %v2995, 0.0
        %v3397 = vmax.f32 %v2999, 0.0
        %v3398 = vmax.f32 %v3001, 0.0
        %v3399 = vmax.f32 %v3003, 0.0
        %v3400 = vmax.f32 %v3005, 0.0
        %v3401 = vmax.f32 %v3009, 0.0
        %v3402 = vmax.f32 %v3011, 0.0
        %v3403 = vmax.f32 %v3013, 0.0
        %v3404 = vmax.f32 %v3015, 0.0
        %v3405 = vmax.f32 %v3019, 0.0
        %v3406 = vmax.f32 %v3021, 0.0
        %v3407 = vmax.f32 %v3023, 0.0
        %v3408 = vmax.f32 %v3025, 0.0
        %v3409 = vmax.f32 %v3029, 0.0
        %v3410 = vmax.f32 %v3031, 0.0
        %v3411 = vmax.f32 %v3033, 0.0
        %v3412 = vmax.f32 %v3035, 0.0
        %v3413 = vmax.f32 %v3039, 0.0
        %v3414 = vmax.f32 %v3041, 0.0
        %v3415 = vmax.f32 %v3043, 0.0
        %v3416 = vmax.f32 %v3045, 0.0
        %v3417 = vmax.f32 %v3049, 0.0
        %v3418 = vmax.f32 %v3051, 0.0
        %v3419 = vmax.f32 %v3053, 0.0
        %v3420 = vmax.f32 %v3055, 0.0
        %v3421 = vmax.f32 %v3059, 0.0
        %v3422 = vmax.f32 %v3061, 0.0
        %v3423 = vmax.f32 %v3063, 0.0
        %v3424 = vmax.f32 %v3065, 0.0
        %v3425 = vmax.f32 %v3069, 0.0
        %v3426 = vmax.f32 %v3071, 0.0
        %v3427 = vmax.f32 %v3073, 0.0
        %v3428 = vmax.f32 %v3075, 0.0
        %v3429 = vmax.f32 %v3079, 0.0
        %v3430 = vmax.f32 %v3081, 0.0
        %v3431 = vmax.f32 %v3083, 0.0
        %v3432 = vmax.f32 %v3085, 0.0
        %v3433 = vmax.f32 %v3089, 0.0
        %v3434 = vmax.f32 %v3091, 0.0
        %v3435 = vmax.f32 %v3093, 0.0
        %v3436 = vmax.f32 %v3095, 0.0
        %v3437 = vmax.f32 %v3099, 0.0
        %v3438 = vmax.f32 %v3101, 0.0
        %v3439 = vmax.f32 %v3103, 0.0
        %v3440 = vmax.f32 %v3105, 0.0
        %v3441 = vmax.f32 %v3109, 0.0
        %v3442 = vmax.f32 %v3111, 0.0
        %v3443 = vmax.f32 %v3113, 0.0
        %v3444 = vmax.f32 %v3115, 0.0
        %v3445 = vmax.f32 %v3119, 0.0
        %v3446 = vmax.f32 %v3121, 0.0
        %v3447 = vmax.f32 %v3123, 0.0
        %v3448 = vmax.f32 %v3125, 0.0
        %v3449 = vmax.f32 %v3129, 0.0
        %v3450 = vmax.f32 %v3131, 0.0
        %v3451 = vmax.f32 %v3133, 0.0
        %v3452 = vmax.f32 %v3135, 0.0
        %v3453 = vmax.f32 %v3139, 0.0
        %v3454 = vmax.f32 %v3141, 0.0
        %v3455 = vmax.f32 %v3143, 0.0
        %v3456 = vmax.f32 %v3145, 0.0
        %v3457 = vmax.f32 %v3149, 0.0
        %v3458 = vmax.f32 %v3151, 0.0
        %v3459 = vmax.f32 %v3153, 0.0
        %v3460 = vmax.f32 %v3155, 0.0
        %v3461 = vmax.f32 %v3159, 0.0
        %v3462 = vmax.f32 %v3161, 0.0
        %v3463 = vmax.f32 %v3163, 0.0
        %v3464 = vmax.f32 %v3165, 0.0
        %v3465 = vmax.f32 %v3169, 0.0
        %v3466 = vmax.f32 %v3171, 0.0
        %v3467 = vmax.f32 %v3173, 0.0
        %v3468 = vmax.f32 %v3175, 0.0
        %v3469 = vmax.f32 %v3179, 0.0
        %v3470 = vmax.f32 %v3181, 0.0
        %v3471 = vmax.f32 %v3183, 0.0
        %v3472 = vmax.f32 %v3185, 0.0
        %v3473 = vmax.f32 %v3189, 0.0
        %v3474 = vmax.f32 %v3191, 0.0
        %v3475 = vmax.f32 %v3193, 0.0
        %v3476 = vmax.f32 %v3195, 0.0
        %v3477 = vmax.f32 %v3199, 0.0
        %v3478 = vmax.f32 %v3201, 0.0
        %v3479 = vmax.f32 %v3203, 0.0
        %v3480 = vmax.f32 %v3205, 0.0
        %v3481 = vmax.f32 %v3209, 0.0
        %v3482 = vmax.f32 %v3211, 0.0
        %v3483 = vmax.f32 %v3213, 0.0
        %v3484 = vmax.f32 %v3215, 0.0
        %v3485 = vmax.f32 %v3219, 0.0
        %v3486 = vmax.f32 %v3221, 0.0
        %v3487 = vmax.f32 %v3223, 0.0
        %v3488 = vmax.f32 %v3225, 0.0
        %v3489 = vmax.f32 %v3229, 0.0
        %v3490 = vmax.f32 %v3231, 0.0
        %v3491 = vmax.f32 %v3233, 0.0
        %v3492 = vmax.f32 %v3235, 0.0
        %3493 = vst [vmem:[%s322] sm:$0xff] %v3237
        %3494 = vst [vmem:[%s322 + $0x8] sm:$0xff] %v3238
        %3495 = vst [vmem:[%s322 + $0x10] sm:$0xff] %v3239
        %3496 = vst [vmem:[%s322 + $0x18] sm:$0xff] %v3240
        %3497 = vst [vmem:[%s322 + $0x20] sm:$0xff] %v3241
        %3498 = vst [vmem:[%s322 + $0x28] sm:$0xff] %v3242
        %3499 = vst [vmem:[%s322 + $0x30] sm:$0xff] %v3243
        %3500 = vst [vmem:[%s322 + $0x38] sm:$0xff] %v3244
        %3501 = vst [vmem:[%s322 + $0x40] sm:$0xff] %v3245
        %3502 = vst [vmem:[%s322 + $0x48] sm:$0xff] %v3246
        %3503 = vst [vmem:[%s322 + $0x50] sm:$0xff] %v3247
        %3504 = vst [vmem:[%s322 + $0x58] sm:$0xff] %v3248
        %3505 = vst [vmem:[%s322 + $0x60] sm:$0xff] %v3249
        %3506 = vst [vmem:[%s322 + $0x68] sm:$0xff] %v3250
        %3507 = vst [vmem:[%s322 + $0x70] sm:$0xff] %v3251
        %3508 = vst [vmem:[%s322 + $0x78] sm:$0xff] %v3252
        %3509 = vst [vmem:[%s322 + $0x80] sm:$0xff] %v3253
        %3510 = vst [vmem:[%s322 + $0x88] sm:$0xff] %v3254
        %3511 = vst [vmem:[%s322 + $0x90] sm:$0xff] %v3255
        %3512 = vst [vmem:[%s322 + $0x98] sm:$0xff] %v3256
        %3513 = vst [vmem:[%s322 + $0xa0] sm:$0xff] %v3257
        %3514 = vst [vmem:[%s322 + $0xa8] sm:$0xff] %v3258
        %3515 = vst [vmem:[%s322 + $0xb0] sm:$0xff] %v3259
        %3516 = vst [vmem:[%s322 + $0xb8] sm:$0xff] %v3260
        %3517 = vst [vmem:[%s322 + $0xc0] sm:$0xff] %v3261
        %3518 = vst [vmem:[%s322 + $0xc8] sm:$0xff] %v3262
        %3519 = vst [vmem:[%s322 + $0xd0] sm:$0xff] %v3263
        %3520 = vst [vmem:[%s322 + $0xd8] sm:$0xff] %v3264
        %3521 = vst [vmem:[%s322 + $0xe0] sm:$0xff] %v3265
        %3522 = vst [vmem:[%s322 + $0xe8] sm:$0xff] %v3266
        %3523 = vst [vmem:[%s322 + $0xf0] sm:$0xff] %v3267
        %3524 = vst [vmem:[%s322 + $0xf8] sm:$0xff] %v3268
        %3525 = vst [vmem:[%s322 + $0x100] sm:$0xff] %v3269
        %3526 = vst [vmem:[%s322 + $0x108] sm:$0xff] %v3270
        %3527 = vst [vmem:[%s322 + $0x110] sm:$0xff] %v3271
        %3528 = vst [vmem:[%s322 + $0x118] sm:$0xff] %v3272
        %3529 = vst [vmem:[%s322 + $0x120] sm:$0xff] %v3273
        %3530 = vst [vmem:[%s322 + $0x128] sm:$0xff] %v3274
        %3531 = vst [vmem:[%s322 + $0x130] sm:$0xff] %v3275
        %3532 = vst [vmem:[%s322 + $0x138] sm:$0xff] %v3276
        %3533 = vst [vmem:[%s322 + $0x140] sm:$0xff] %v3277
        %3534 = vst [vmem:[%s322 + $0x148] sm:$0xff] %v3278
        %3535 = vst [vmem:[%s322 + $0x150] sm:$0xff] %v3279
        %3536 = vst [vmem:[%s322 + $0x158] sm:$0xff] %v3280
        %3537 = vst [vmem:[%s322 + $0x160] sm:$0xff] %v3281
        %3538 = vst [vmem:[%s322 + $0x168] sm:$0xff] %v3282
        %3539 = vst [vmem:[%s322 + $0x170] sm:$0xff] %v3283
        %3540 = vst [vmem:[%s322 + $0x178] sm:$0xff] %v3284
        %3541 = vst [vmem:[%s322 + $0x180] sm:$0xff] %v3285
        %3542 = vst [vmem:[%s322 + $0x188] sm:$0xff] %v3286
        %3543 = vst [vmem:[%s322 + $0x190] sm:$0xff] %v3287
        %3544 = vst [vmem:[%s322 + $0x198] sm:$0xff] %v3288
        %3545 = vst [vmem:[%s322 + $0x1a0] sm:$0xff] %v3289
        %3546 = vst [vmem:[%s322 + $0x1a8] sm:$0xff] %v3290
        %3547 = vst [vmem:[%s322 + $0x1b0] sm:$0xff] %v3291
        %3548 = vst [vmem:[%s322 + $0x1b8] sm:$0xff] %v3292
        %3549 = vst [vmem:[%s322 + $0x1c0] sm:$0xff] %v3293
        %3550 = vst [vmem:[%s322 + $0x1c8] sm:$0xff] %v3294
        %3551 = vst [vmem:[%s322 + $0x1d0] sm:$0xff] %v3295
        %3552 = vst [vmem:[%s322 + $0x1d8] sm:$0xff] %v3296
        %3553 = vst [vmem:[%s322 + $0x1e0] sm:$0xff] %v3297
        %3554 = vst [vmem:[%s322 + $0x1e8] sm:$0xff] %v3298
        %3555 = vst [vmem:[%s322 + $0x1f0] sm:$0xff] %v3299
        %3556 = vst [vmem:[%s322 + $0x1f8] sm:$0xff] %v3300
        %3557 = vst [vmem:[%s322 + $0x200] sm:$0xff] %v3301
        %3558 = vst [vmem:[%s322 + $0x208] sm:$0xff] %v3302
        %3559 = vst [vmem:[%s322 + $0x210] sm:$0xff] %v3303
        %3560 = vst [vmem:[%s322 + $0x218] sm:$0xff] %v3304
        %3561 = vst [vmem:[%s322 + $0x220] sm:$0xff] %v3305
        %3562 = vst [vmem:[%s322 + $0x228] sm:$0xff] %v3306
        %3563 = vst [vmem:[%s322 + $0x230] sm:$0xff] %v3307
        %3564 = vst [vmem:[%s322 + $0x238] sm:$0xff] %v3308
        %3565 = vst [vmem:[%s322 + $0x240] sm:$0xff] %v3309
        %3566 = vst [vmem:[%s322 + $0x248] sm:$0xff] %v3310
        %3567 = vst [vmem:[%s322 + $0x250] sm:$0xff] %v3311
        %3568 = vst [vmem:[%s322 + $0x258] sm:$0xff] %v3312
        %3569 = vst [vmem:[%s322 + $0x260] sm:$0xff] %v3313
        %3570 = vst [vmem:[%s322 + $0x268] sm:$0xff] %v3314
        %3571 = vst [vmem:[%s322 + $0x270] sm:$0xff] %v3315
        %3572 = vst [vmem:[%s322 + $0x278] sm:$0xff] %v3316
        %3573 = vst [vmem:[%s322 + $0x280] sm:$0xff] %v3317
        %3574 = vst [vmem:[%s322 + $0x288] sm:$0xff] %v3318
        %3575 = vst [vmem:[%s322 + $0x290] sm:$0xff] %v3319
        %3576 = vst [vmem:[%s322 + $0x298] sm:$0xff] %v3320
        %3577 = vst [vmem:[%s322 + $0x2a0] sm:$0xff] %v3321
        %3578 = vst [vmem:[%s322 + $0x2a8] sm:$0xff] %v3322
        %3579 = vst [vmem:[%s322 + $0x2b0] sm:$0xff] %v3323
        %3580 = vst [vmem:[%s322 + $0x2b8] sm:$0xff] %v3324
        %3581 = vst [vmem:[%s322 + $0x2c0] sm:$0xff] %v3325
        %3582 = vst [vmem:[%s322 + $0x2c8] sm:$0xff] %v3326
        %3583 = vst [vmem:[%s322 + $0x2d0] sm:$0xff] %v3327
        %3584 = vst [vmem:[%s322 + $0x2d8] sm:$0xff] %v3328
        %3585 = vst [vmem:[%s322 + $0x2e0] sm:$0xff] %v3329
        %3586 = vst [vmem:[%s322 + $0x2e8] sm:$0xff] %v3330
        %3587 = vst [vmem:[%s322 + $0x2f0] sm:$0xff] %v3331
        %3588 = vst [vmem:[%s322 + $0x2f8] sm:$0xff] %v3332
        %3589 = vst [vmem:[%s322 + $0x300] sm:$0xff] %v3333
        %3590 = vst [vmem:[%s322 + $0x308] sm:$0xff] %v3334
        %3591 = vst [vmem:[%s322 + $0x310] sm:$0xff] %v3335
        %3592 = vst [vmem:[%s322 + $0x318] sm:$0xff] %v3336
        %3593 = vst [vmem:[%s322 + $0x320] sm:$0xff] %v3337
        %3594 = vst [vmem:[%s322 + $0x328] sm:$0xff] %v3338
        %3595 = vst [vmem:[%s322 + $0x330] sm:$0xff] %v3339
        %3596 = vst [vmem:[%s322 + $0x338] sm:$0xff] %v3340
        %3597 = vst [vmem:[%s322 + $0x340] sm:$0xff] %v3341
        %3598 = vst [vmem:[%s322 + $0x348] sm:$0xff] %v3342
        %3599 = vst [vmem:[%s322 + $0x350] sm:$0xff] %v3343
        %3600 = vst [vmem:[%s322 + $0x358] sm:$0xff] %v3344
        %3601 = vst [vmem:[%s322 + $0x360] sm:$0xff] %v3345
        %3602 = vst [vmem:[%s322 + $0x368] sm:$0xff] %v3346
        %3603 = vst [vmem:[%s322 + $0x370] sm:$0xff] %v3347
        %3604 = vst [vmem:[%s322 + $0x378] sm:$0xff] %v3348
        %3605 = vst [vmem:[%s322 + $0x380] sm:$0xff] %v3349
        %3606 = vst [vmem:[%s322 + $0x388] sm:$0xff] %v3350
        %3607 = vst [vmem:[%s322 + $0x390] sm:$0xff] %v3351
        %3608 = vst [vmem:[%s322 + $0x398] sm:$0xff] %v3352
        %3609 = vst [vmem:[%s322 + $0x3a0] sm:$0xff] %v3353
        %3610 = vst [vmem:[%s322 + $0x3a8] sm:$0xff] %v3354
        %3611 = vst [vmem:[%s322 + $0x3b0] sm:$0xff] %v3355
        %3612 = vst [vmem:[%s322 + $0x3b8] sm:$0xff] %v3356
        %3613 = vst [vmem:[%s322 + $0x3c0] sm:$0xff] %v3357
        %3614 = vst [vmem:[%s322 + $0x3c8] sm:$0xff] %v3358
        %3615 = vst [vmem:[%s322 + $0x3d0] sm:$0xff] %v3359
        %3616 = vst [vmem:[%s322 + $0x3d8] sm:$0xff] %v3360
        %3617 = vst [vmem:[%s322 + $0x3e0] sm:$0xff] %v3361
        %3618 = vst [vmem:[%s322 + $0x3e8] sm:$0xff] %v3362
        %3619 = vst [vmem:[%s322 + $0x3f0] sm:$0xff] %v3363
        %3620 = vst [vmem:[%s322 + $0x3f8] sm:$0xff] %v3364
        %3621 = vst [vmem:[%s322 + $0x400] sm:$0xff] %v3365
        %3622 = vst [vmem:[%s322 + $0x408] sm:$0xff] %v3366
        %3623 = vst [vmem:[%s322 + $0x410] sm:$0xff] %v3367
        %3624 = vst [vmem:[%s322 + $0x418] sm:$0xff] %v3368
        %3625 = vst [vmem:[%s322 + $0x420] sm:$0xff] %v3369
        %3626 = vst [vmem:[%s322 + $0x428] sm:$0xff] %v3370
        %3627 = vst [vmem:[%s322 + $0x430] sm:$0xff] %v3371
        %3628 = vst [vmem:[%s322 + $0x438] sm:$0xff] %v3372
        %3629 = vst [vmem:[%s322 + $0x440] sm:$0xff] %v3373
        %3630 = vst [vmem:[%s322 + $0x448] sm:$0xff] %v3374
        %3631 = vst [vmem:[%s322 + $0x450] sm:$0xff] %v3375
        %3632 = vst [vmem:[%s322 + $0x458] sm:$0xff] %v3376
        %3633 = vst [vmem:[%s322 + $0x460] sm:$0xff] %v3377
        %3634 = vst [vmem:[%s322 + $0x468] sm:$0xff] %v3378
        %3635 = vst [vmem:[%s322 + $0x470] sm:$0xff] %v3379
        %3636 = vst [vmem:[%s322 + $0x478] sm:$0xff] %v3380
        %3637 = vst [vmem:[%s322 + $0x480] sm:$0xff] %v3381
        %3638 = vst [vmem:[%s322 + $0x488] sm:$0xff] %v3382
        %3639 = vst [vmem:[%s322 + $0x490] sm:$0xff] %v3383
        %3640 = vst [vmem:[%s322 + $0x498] sm:$0xff] %v3384
        %3641 = vst [vmem:[%s322 + $0x4a0] sm:$0xff] %v3385
        %3642 = vst [vmem:[%s322 + $0x4a8] sm:$0xff] %v3386
        %3643 = vst [vmem:[%s322 + $0x4b0] sm:$0xff] %v3387
        %3644 = vst [vmem:[%s322 + $0x4b8] sm:$0xff] %v3388
        %3645 = vst [vmem:[%s322 + $0x4c0] sm:$0xff] %v3389
        %3646 = vst [vmem:[%s322 + $0x4c8] sm:$0xff] %v3390
        %3647 = vst [vmem:[%s322 + $0x4d0] sm:$0xff] %v3391
        %3648 = vst [vmem:[%s322 + $0x4d8] sm:$0xff] %v3392
        %3649 = vst [vmem:[%s322 + $0x4e0] sm:$0xff] %v3393
        %3650 = vst [vmem:[%s322 + $0x4e8] sm:$0xff] %v3394
        %3651 = vst [vmem:[%s322 + $0x4f0] sm:$0xff] %v3395
        %3652 = vst [vmem:[%s322 + $0x4f8] sm:$0xff] %v3396
        %3653 = vst [vmem:[%s322 + $0x500] sm:$0xff] %v3397
        %3654 = vst [vmem:[%s322 + $0x508] sm:$0xff] %v3398
        %3655 = vst [vmem:[%s322 + $0x510] sm:$0xff] %v3399
        %3656 = vst [vmem:[%s322 + $0x518] sm:$0xff] %v3400
        %3657 = vst [vmem:[%s322 + $0x520] sm:$0xff] %v3401
        %3658 = vst [vmem:[%s322 + $0x528] sm:$0xff] %v3402
        %3659 = vst [vmem:[%s322 + $0x530] sm:$0xff] %v3403
        %3660 = vst [vmem:[%s322 + $0x538] sm:$0xff] %v3404
        %3661 = vst [vmem:[%s322 + $0x540] sm:$0xff] %v3405
        %3662 = vst [vmem:[%s322 + $0x548] sm:$0xff] %v3406
        %3663 = vst [vmem:[%s322 + $0x550] sm:$0xff] %v3407
        %3664 = vst [vmem:[%s322 + $0x558] sm:$0xff] %v3408
        %3665 = vst [vmem:[%s322 + $0x560] sm:$0xff] %v3409
        %3666 = vst [vmem:[%s322 + $0x568] sm:$0xff] %v3410
        %3667 = vst [vmem:[%s322 + $0x570] sm:$0xff] %v3411
        %3668 = vst [vmem:[%s322 + $0x578] sm:$0xff] %v3412
        %3669 = vst [vmem:[%s322 + $0x580] sm:$0xff] %v3413
        %3670 = vst [vmem:[%s322 + $0x588] sm:$0xff] %v3414
        %3671 = vst [vmem:[%s322 + $0x590] sm:$0xff] %v3415
        %3672 = vst [vmem:[%s322 + $0x598] sm:$0xff] %v3416
        %3673 = vst [vmem:[%s322 + $0x5a0] sm:$0xff] %v3417
        %3674 = vst [vmem:[%s322 + $0x5a8] sm:$0xff] %v3418
        %3675 = vst [vmem:[%s322 + $0x5b0] sm:$0xff] %v3419
        %3676 = vst [vmem:[%s322 + $0x5b8] sm:$0xff] %v3420
        %3677 = vst [vmem:[%s322 + $0x5c0] sm:$0xff] %v3421
        %3678 = vst [vmem:[%s322 + $0x5c8] sm:$0xff] %v3422
        %3679 = vst [vmem:[%s322 + $0x5d0] sm:$0xff] %v3423
        %3680 = vst [vmem:[%s322 + $0x5d8] sm:$0xff] %v3424
        %3681 = vst [vmem:[%s322 + $0x5e0] sm:$0xff] %v3425
        %3682 = vst [vmem:[%s322 + $0x5e8] sm:$0xff] %v3426
        %3683 = vst [vmem:[%s322 + $0x5f0] sm:$0xff] %v3427
        %3684 = vst [vmem:[%s322 + $0x5f8] sm:$0xff] %v3428
        %3685 = vst [vmem:[%s322 + $0x600] sm:$0xff] %v3429
        %3686 = vst [vmem:[%s322 + $0x608] sm:$0xff] %v3430
        %3687 = vst [vmem:[%s322 + $0x610] sm:$0xff] %v3431
        %3688 = vst [vmem:[%s322 + $0x618] sm:$0xff] %v3432
        %3689 = vst [vmem:[%s322 + $0x620] sm:$0xff] %v3433
        %3690 = vst [vmem:[%s322 + $0x628] sm:$0xff] %v3434
        %3691 = vst [vmem:[%s322 + $0x630] sm:$0xff] %v3435
        %3692 = vst [vmem:[%s322 + $0x638] sm:$0xff] %v3436
        %3693 = vst [vmem:[%s322 + $0x640] sm:$0xff] %v3437
        %3694 = vst [vmem:[%s322 + $0x648] sm:$0xff] %v3438
        %3695 = vst [vmem:[%s322 + $0x650] sm:$0xff] %v3439
        %3696 = vst [vmem:[%s322 + $0x658] sm:$0xff] %v3440
        %3697 = vst [vmem:[%s322 + $0x660] sm:$0xff] %v3441
        %3698 = vst [vmem:[%s322 + $0x668] sm:$0xff] %v3442
        %3699 = vst [vmem:[%s322 + $0x670] sm:$0xff] %v3443
        %3700 = vst [vmem:[%s322 + $0x678] sm:$0xff] %v3444
        %3701 = vst [vmem:[%s322 + $0x680] sm:$0xff] %v3445
        %3702 = vst [vmem:[%s322 + $0x688] sm:$0xff] %v3446
        %3703 = vst [vmem:[%s322 + $0x690] sm:$0xff] %v3447
        %3704 = vst [vmem:[%s322 + $0x698] sm:$0xff] %v3448
        %3705 = vst [vmem:[%s322 + $0x6a0] sm:$0xff] %v3449
        %3706 = vst [vmem:[%s322 + $0x6a8] sm:$0xff] %v3450
        %3707 = vst [vmem:[%s322 + $0x6b0] sm:$0xff] %v3451
        %3708 = vst [vmem:[%s322 + $0x6b8] sm:$0xff] %v3452
        %3709 = vst [vmem:[%s322 + $0x6c0] sm:$0xff] %v3453
        %3710 = vst [vmem:[%s322 + $0x6c8] sm:$0xff] %v3454
        %3711 = vst [vmem:[%s322 + $0x6d0] sm:$0xff] %v3455
        %3712 = vst [vmem:[%s322 + $0x6d8] sm:$0xff] %v3456
        %3713 = vst [vmem:[%s322 + $0x6e0] sm:$0xff] %v3457
        %3714 = vst [vmem:[%s322 + $0x6e8] sm:$0xff] %v3458
        %3715 = vst [vmem:[%s322 + $0x6f0] sm:$0xff] %v3459
        %3716 = vst [vmem:[%s322 + $0x6f8] sm:$0xff] %v3460
        %3717 = vst [vmem:[%s322 + $0x700] sm:$0xff] %v3461
        %3718 = vst [vmem:[%s322 + $0x708] sm:$0xff] %v3462
        %3719 = vst [vmem:[%s322 + $0x710] sm:$0xff] %v3463
        %3720 = vst [vmem:[%s322 + $0x718] sm:$0xff] %v3464
        %3721 = vst [vmem:[%s322 + $0x720] sm:$0xff] %v3465
        %3722 = vst [vmem:[%s322 + $0x728] sm:$0xff] %v3466
        %3723 = vst [vmem:[%s322 + $0x730] sm:$0xff] %v3467
        %3724 = vst [vmem:[%s322 + $0x738] sm:$0xff] %v3468
        %3725 = vst [vmem:[%s322 + $0x740] sm:$0xff] %v3469
        %3726 = vst [vmem:[%s322 + $0x748] sm:$0xff] %v3470
        %3727 = vst [vmem:[%s322 + $0x750] sm:$0xff] %v3471
        %3728 = vst [vmem:[%s322 + $0x758] sm:$0xff] %v3472
        %3729 = vst [vmem:[%s322 + $0x760] sm:$0xff] %v3473
        %3730 = vst [vmem:[%s322 + $0x768] sm:$0xff] %v3474
        %3731 = vst [vmem:[%s322 + $0x770] sm:$0xff] %v3475
        %3732 = vst [vmem:[%s322 + $0x778] sm:$0xff] %v3476
        %3733 = vst [vmem:[%s322 + $0x780] sm:$0xff] %v3477
        %3734 = vst [vmem:[%s322 + $0x788] sm:$0xff] %v3478
        %3735 = vst [vmem:[%s322 + $0x790] sm:$0xff] %v3479
        %3736 = vst [vmem:[%s322 + $0x798] sm:$0xff] %v3480
        %3737 = vst [vmem:[%s322 + $0x7a0] sm:$0xff] %v3481
        %3738 = vst [vmem:[%s322 + $0x7a8] sm:$0xff] %v3482
        %3739 = vst [vmem:[%s322 + $0x7b0] sm:$0xff] %v3483
        %3740 = vst [vmem:[%s322 + $0x7b8] sm:$0xff] %v3484
        %3741 = vst [vmem:[%s322 + $0x7c0] sm:$0xff] %v3485
        %3742 = vst [vmem:[%s322 + $0x7c8] sm:$0xff] %v3486
        %3743 = vst [vmem:[%s322 + $0x7d0] sm:$0xff] %v3487
        %3744 = vst [vmem:[%s322 + $0x7d8] sm:$0xff] %v3488
        %3745 = vst [vmem:[%s322 + $0x7e0] sm:$0xff] %v3489
        %3746 = vst [vmem:[%s322 + $0x7e8] sm:$0xff] %v3490
        %3747 = vst [vmem:[%s322 + $0x7f0] sm:$0xff] %v3491
        %3748 = vst [vmem:[%s322 + $0x7f8] sm:$0xff] %v3492
        %s3749 = sand.u32 %s183, 1
        %s3750 = scalar_lea.sflag [#allocation4], %s3749
        %s3751 = sand.u32 %s183, 1
        %s3752 = smul.addr %s3751, 2048
        %s3753 = scalar_lea.vmem [#allocation8], %s3752
        // Predicated region
        $region61: #{mlp_table_encoder.1} parent=47 // pred_check
          %p3754 = pneg %p193
        $region62: #{mlp_table_encoder.1} parent=47 // pred_check_branch
          %3756 = sbr.rel (%p3754) target = $region64
        $region63: #{mlp_table_encoder.1} parent=47 // pred_region
          %s3757 = smul.u32 128, %s23
          %s3758 = ssub.s32 129, %s3757
          %p3759 = scmp.lt.s32.totalorder %s3758, 128
          %s3760 = scalar_select %p3759, %s3758, 128
          %s3761 = smul.u32 128, %s3760
          %s3762 = smul.u32 %s3761, 2
          %s3764 = ssub.s32 32768, %s3762
          %3765 = vsyncadd %s3750, %s3764
          %p3766 = scmp.ne.s32.totalorder 0, %s3762
          %s3767 = smul.addr %s3757, 2
          %s3768 = smul.addr %s3767, 128
          %s3769 = scalar_lea.hbm %s7, %s3768
          %s3770 = smul.u32 16, %s3760
          %s3771 = sshll.u32 %s3753, 4
          %s3772 = int_to_ptr.vmem [resolvable:$true] %s3771
          %s3773 = sshll.u32 %s3770, 4
          %3777 = dma.vmem_to_hbm [thread:$0]  (%p3766), %s3772, %s3773, %s3769, %s3750, 256, 256, 16
        $region64: #{mlp_table_encoder.1} parent=47 // pred_fallthru
          _
      $region48: #{mlp_table_encoder.1} parent=5 // pred_fallthru
        _
      %p3778 = scmp.le.s32.totalorder 2, %s18
      // Predicated region
      $region65: #{mlp_table_encoder.1} parent=5 // pred_check
        %p3779 = pneg %p3778
      $region66: #{mlp_table_encoder.1} parent=5 // pred_check_branch
        %3781 = sbr.rel (%p3779) target = $region68
      $region67: #{mlp_table_encoder.1} parent=5 // pred_region
        %s3782 = ssub.s32 %s18, 2
        // Predicated region
        $region69: #{mlp_table_encoder.1} parent=67 // pred_check
          %p3783 = pneg %p199
        $region70: #{mlp_table_encoder.1} parent=67 // pred_check_branch
          %3785 = sbr.rel (%p3783) target = $region72
        $region71: #{mlp_table_encoder.1} parent=67 // pred_region
          %s3786 = sand.u32 %s184, 1
          %s3787 = scalar_lea.sflag [#allocation4], %s3786
          %s3788 = sand.u32 %s184, 1
          %s3789 = smul.addr %s3788, 2048
          %s3790 = scalar_lea.vmem [#allocation8], %s3789
          %3791 = dma.done %s3787, 32768
        $region72: #{mlp_table_encoder.1} parent=67 // pred_fallthru
          _
      $region68: #{mlp_table_encoder.1} parent=5 // pred_fallthru
        _
    $region6: #{mlp_table_encoder.1} parent=1 // loop_footer
      %s22 = sadd.s32 1, %s18
    $region7: #{mlp_table_encoder.1} parent=1 // loop_footer_branch
      %17 = sbr.rel target = $region3
    $region8: #{mlp_table_encoder.1} parent=1 // loop_exit
      _
    %3792 = vsyncpa [#allocation3], 1
    %s3793 = scalar_lea.sflag [#allocation3], 1
    %3794 = vsyncpa %s3793, 1
    %3795 = vsyncpa [#allocation6], 1
    %3796 = vsyncpa [#allocation4], 1
    %s3797 = scalar_lea.sflag [#allocation4], 1
    %3798 = vsyncpa %s3797, 1

</llo_original>
